<compile_context>
chip_gen: v6e
topology: v6e:2x2x1
jax: 0.10.0
libtpu: 0.0.40
codegen_flags: <defaults>
</compile_context>

<pallas_src>
import functools

import jax
import jax.numpy as jnp
from jax import lax
from jax.experimental import pallas as pl
from jax.experimental.pallas import tpu as pltpu

_NEG_SLOPE = 0.01        # PyTorch nn.LeakyReLU default
_MASK_VAL = -1e30        # finite "-inf" for padded-instance logits (exp underflows to 0)


def _leaky_relu(x):
    return jnp.where(x > 0, x, _NEG_SLOPE * x)


def _sigmoid(x):
    # Overflow-free logistic: only exponentiates non-positive arguments.
    z = jnp.exp(-jnp.abs(x))
    inv = 1.0 / (1.0 + z)
    return jnp.where(x >= 0, inv, z * inv)


def _round_up(x, m):
    return ((x + m - 1) // m) * m


# --------------------------------------------------------------------------
# Fused kernel: feature_represent + branch MLPs + online-softmax pooling
#               + classifier (on the last instance tile)
# --------------------------------------------------------------------------
def _milnet_fused_kernel(x_ref,
                         wfr1_ref, bfr1_ref, wfr2_ref, bfr2_ref,
                         wbr1_ref, bbr1_ref, wbr2_ref, bbr2_ref,
                         wa3_ref, ba3_ref, wfa3_ref, bfa3_ref,
                         tab_ref, wc1m_ref, wc1t_ref, bc1_ref, wc2_ref, bc2_ref,
                         o_ref,
                         m_sc, l_sc, acc_sc,
                         *, num_heads, rep_dim, ia_dim, num_valid):
    i = pl.program_id(0)
    tile_m = x_ref.shape[0]

    @pl.when(i == 0)
    def _init():
        m_sc[...] = jnp.full_like(m_sc, _MASK_VAL)
        l_sc[...] = jnp.zeros_like(l_sc)
        acc_sc[...] = jnp.zeros_like(acc_sc)

    x = x_ref[...]

    # ---- feature_represent: Linear -> LeakyReLU -> Linear -> LeakyReLU (Dropout = id) ----
    h = jnp.dot(x, wfr1_ref[...], preferred_element_type=jnp.float32) + bfr1_ref[...]
    h = _leaky_relu(h)
    h = jnp.dot(h, wfr2_ref[...], preferred_element_type=jnp.float32) + bfr2_ref[...]
    bag = _leaky_relu(h)                                               # (tile_m, R)

    # ---- fused branch layer 1: columns [0:IA] = attention head, [IA:] = feature gate ----
    h1 = jnp.dot(bag, wbr1_ref[...], preferred_element_type=jnp.float32) + bbr1_ref[...]
    col = lax.broadcasted_iota(jnp.int32, h1.shape, 1)
    act1 = jnp.where(col < ia_dim, _leaky_relu(h1), h1 * _sigmoid(h1))  # LeakyReLU | Swish

    # ---- fused branch layer 2: block-diagonal weight, LeakyReLU on both branches ----
    act2 = _leaky_relu(jnp.dot(act1, wbr2_ref[...], preferred_element_type=jnp.float32)
                       + bbr2_ref[...])                                # (tile_m, IA+FA)

    # ---- attention logits (K==1 -> VPU multiply + lane reduce, no N=1 MXU matmul) ----
    if num_heads == 1:
        att = jnp.sum(act2 * wa3_ref[...], axis=-1, keepdims=True) + ba3_ref[...]
    else:
        att = jnp.dot(act2, wa3_ref[...], preferred_element_type=jnp.float32) + ba3_ref[...]

    # ---- sigmoid feature gate and gated bag features ----
    gate = _sigmoid(jnp.dot(act2, wfa3_ref[...], preferred_element_type=jnp.float32)
                    + bfa3_ref[...])
    gated = bag * gate                                                 # (tile_m, R)

    # ---- mask padded instances (their softmax weight becomes exactly 0) ----
    row = lax.broadcasted_iota(jnp.int32, att.shape, 0) + i * tile_m
    att = jnp.where(row < num_valid, att, _MASK_VAL)

    # ---- online softmax-weighted pooling across instance tiles ----
    m_prev = m_sc[...]                                                 # (1, K)
    m_new = jnp.maximum(m_prev, jnp.max(att, axis=0, keepdims=True))
    alpha = jnp.exp(m_prev - m_new)                                    # (1, K)
    p = jnp.exp(att - m_new)                                           # (tile_m, K)
    l_sc[...] = alpha * l_sc[...] + jnp.sum(p, axis=0, keepdims=True)
    if num_heads == 1:
        contrib = jnp.sum(p * gated, axis=0, keepdims=True)            # (1, R)
    else:
        contrib = lax.dot_general(p, gated, (((0,), (0,)), ((), ())),
                                  preferred_element_type=jnp.float32)  # (K, R)
    acc_sc[...] = alpha.reshape(num_heads, 1) * acc_sc[...] + contrib
    m_sc[...] = m_new

    # ---- classifier on the final tile (concat folded into split first-layer weight) ----
    @pl.when(i == pl.num_programs(0) - 1)
    def _finish():
        pooled = acc_sc[...] / l_sc[...].reshape(num_heads, 1)          # (K, R)
        hidden = (jnp.dot(pooled.reshape(1, num_heads * rep_dim), wc1m_ref[...],
                          preferred_element_type=jnp.float32)
                  + jnp.dot(tab_ref[...], wc1t_ref[...],
                            preferred_element_type=jnp.float32)
                  + bc1_ref[...])
        hidden = _leaky_relu(hidden)                                    # Dropout = id (eval)
        # final Linear(R, 1): output width 1 -> VPU multiply + lane reduce.
        y = jnp.sum(hidden * wc2_ref[...], axis=-1, keepdims=True) + bc2_ref[...]
        o_ref[...] = y.astype(o_ref.dtype)


# --------------------------------------------------------------------------
# Wrapper
# --------------------------------------------------------------------------
def milnet_with_tabfeat_forward(batch_data, tab_feat, params, *, max_tile_m=1024):
    """Inference forward of MILNetWithTabFeat.

    batch_data: (N, L) or (1, N, L);  tab_feat: (T,) or (1, T).
    Returns Y_prob of shape (1, 1).
    """
    if batch_data.ndim == 3:
        batch_data = jnp.squeeze(batch_data, axis=0)          # matches .squeeze(0)
    x = batch_data
    N, L = x.shape
    R = params["w_fr1"].shape[1]
    IA = params["w_a1"].shape[1]
    FA = params["w_fa1"].shape[1]
    K = params["w_a3"].shape[1]
    IAFA = IA + FA
    tab = tab_feat.reshape(1, -1)
    T = tab.shape[1]
    dtype = x.dtype
    f32 = jnp.float32

    # ---- instance tiling: big tiles, wrapper-side zero padding (masked in-kernel) ----
    max_tile = max(8, (max_tile_m // 8) * 8)
    n8 = _round_up(N, 8)
    tile_m = n8 if n8 <= max_tile else max_tile
    n_pad = _round_up(n8, tile_m)
    if n_pad != N:
        x = jnp.pad(x, ((0, n_pad - N), (0, 0)))
    num_tiles = n_pad // tile_m

    # ---- fuse the two narrow branch MLPs that share `bag` as their LHS ----
    w_br1 = jnp.concatenate([params["w_a1"], params["w_fa1"]], axis=1)           # (R, IA+FA)
    b_br1 = jnp.concatenate([params["b_a1"], params["b_fa1"]]).reshape(1, IAFA)
    w_br2 = (jnp.zeros((IAFA, IAFA), f32)
             .at[:IA, :IA].set(params["w_a2"])
             .at[IA:, IA:].set(params["w_fa2"]))                                 # block-diagonal
    b_br2 = jnp.concatenate([params["b_a2"], params["b_fa2"]]).reshape(1, IAFA)
    if K == 1:
        w_a3 = jnp.pad(params["w_a3"][:, 0], (0, FA)).reshape(1, IAFA)           # VPU lane row
    else:
        w_a3 = jnp.zeros((IAFA, K), f32).at[:IA, :].set(params["w_a3"])
    b_a3 = params["b_a3"].reshape(1, K)
    w_fa3 = jnp.zeros((IAFA, R), f32).at[IA:, :].set(params["w_fa3"])            # (IA+FA, R)
    b_fa3 = params["b_fa3"].reshape(1, R)

    # ---- classifier: concat([M.view(1,-1), tab]) folded into a split first-layer weight ----
    w_c1 = params["w_c1"]                                                        # (K*R + T, R)
    wc1m, wc1t = w_c1[:K * R, :], w_c1[K * R:, :]
    bc1 = params["b_c1"].reshape(1, R)
    wc2 = params["w_c2"].reshape(1, R)
    bc2 = params["b_c2"].reshape(1, 1)

    def rows(d):        # tiled over instances
        return pl.BlockSpec((tile_m, d), lambda i: (i, 0))

    def resident(shape):  # weights / biases resident in VMEM (constant block index)
        return pl.BlockSpec(shape, lambda i: (0, 0))

    in_specs = [
        rows(L),
        resident((L, R)), resident((1, R)),
        resident((R, R)), resident((1, R)),
        resident((R, IAFA)), resident((1, IAFA)),
        resident((IAFA, IAFA)), resident((1, IAFA)),
        resident(w_a3.shape), resident((1, K)),
        resident((IAFA, R)), resident((1, R)),
        resident((1, T)),
        resident((K * R, R)), resident((T, R)), resident((1, R)),
        resident((1, R)), resident((1, 1)),
    ]

    # ---- VMEM budget computed from actual buffer sizes (headroom for v7x's 64 MiB) ----
    fbytes = 4
    weight_elems = (L * R + R + R * R + R
                    + R * IAFA + IAFA + IAFA * IAFA + IAFA
                    + w_a3.size + K + IAFA * R + R
                    + T + K * R * R + T * R + R + R + 1)
    vmem_need = (2 * tile_m * L * fbytes                  # double-buffered instance tiles
                 + 2 * weight_elems * fbytes              # resident inputs (2 bufs by default)
                 + (2 * K + K * R) * fbytes               # online-softmax scratch
                 + 8 * tile_m * max(R, IAFA) * fbytes)    # live intermediates headroom
    vmem_limit = int(min(max(vmem_need + (8 << 20), 32 << 20), 48 << 20))

    flops = (2 * n_pad * (L * R + R * R + R * IAFA + IAFA * IAFA
                          + IAFA * (K + R) + K * R + R)
             + 2 * (K * R * R + T * R + R))
    cost = pl.CostEstimate(
        flops=int(flops),
        transcendentals=int(n_pad * (IAFA + R + 2 * K)),
        bytes_accessed=int(fbytes * (n_pad * L + weight_elems + T + 1)),
    )

    kernel = functools.partial(_milnet_fused_kernel, num_heads=K, rep_dim=R,
                               ia_dim=IA, num_valid=N)

    y = pl.pallas_call(
        kernel,
        out_shape=jax.ShapeDtypeStruct((1, 1), dtype),
        grid=(num_tiles,),
        in_specs=in_specs,
        out_specs=pl.BlockSpec((1, 1), lambda i: (0, 0)),
        scratch_shapes=[pltpu.VMEM((1, K), jnp.float32),     # running max  m
                        pltpu.VMEM((1, K), jnp.float32),     # running sum  l
                        pltpu.VMEM((K, R), jnp.float32)],    # pooled accumulator
        compiler_params=pltpu.CompilerParams(
            dimension_semantics=("arbitrary",),              # carried accumulator axis
            vmem_limit_bytes=vmem_limit,
        ),
        cost_estimate=cost,
    )(x,
      params["w_fr1"], params["b_fr1"].reshape(1, R),
      params["w_fr2"], params["b_fr2"].reshape(1, R),
      w_br1, b_br1, w_br2, b_br2,
      w_a3, b_a3, w_fa3, b_fa3,
      tab, wc1m, wc1t, bc1, wc2, bc2)
    return y


# --------------------------------------------------------------------------
# Pure-JAX reference (eval-mode forward of the PyTorch module)
# --------------------------------------------------------------------------
def _reference_forward(batch_data, tab_feat, p):
    hp = jax.lax.Precision.HIGHEST
    lrelu = lambda x: jnp.where(x > 0, x, _NEG_SLOPE * x)
    lin = lambda x, w, b: jnp.dot(x, w, precision=hp) + b

    bag = jnp.squeeze(batch_data, axis=0) if batch_data.ndim == 3 else batch_data
    h = lrelu(lin(bag, p["w_fr1"], p["b_fr1"]))
    bag = lrelu(lin(h, p["w_fr2"], p["b_fr2"]))                # feature_represent

    a = lrelu(lin(bag, p["w_a1"], p["b_a1"]))
    a = lrelu(lin(a, p["w_a2"], p["b_a2"]))
    A = lin(a, p["w_a3"], p["b_a3"])                           # (N, K)
    A = jax.nn.softmax(A.T, axis=1)                            # (K, N)

    f = lin(bag, p["w_fa1"], p["b_fa1"])
    f = f * jax.nn.sigmoid(f)                                  # Swish
    f = lrelu(lin(f, p["w_fa2"], p["b_fa2"]))
    gate = jax.nn.sigmoid(lin(f, p["w_fa3"], p["b_fa3"]))

    M = jnp.dot(A, bag * gate, precision=hp)                   # (K, R)
    merge = jnp.concatenate([M.reshape(1, -1), tab_feat.reshape(1, -1)], axis=1)
    h = lrelu(lin(merge, p["w_c1"], p["b_c1"]))
    return lin(h, p["w_c2"], p["b_c2"])


if __name__ == "__main__":
    # Small shapes consistent with the module's forward.
    N, L = 200, 64           # instances per bag, input_dim
    R, IA, FA = 64, 32, 32   # feature_represent_dim, instance_attention_dim, feature_attention_dim
    K, T = 1, 8              # attention_out_dim, tabfeat_dim

    key = jax.random.PRNGKey(0)
    keys = jax.random.split(key, 12)
    ki = iter(keys)

    def linear_params(kin, din, dout):
        kw, kb = jax.random.split(kin)
        s = 1.0 / jnp.sqrt(jnp.float32(din))
        w = jax.random.uniform(kw, (din, dout), jnp.float32, -s, s)
        b = jax.random.uniform(kb, (dout,), jnp.float32, -s, s)
        return w, b

    params = {}
    params["w_fr1"], params["b_fr1"] = linear_params(next(ki), L, R)
    params["w_fr2"], params["b_fr2"] = linear_params(next(ki), R, R)
    params["w_a1"], params["b_a1"] = linear_params(next(ki), R, IA)
    params["w_a2"], params["b_a2"] = linear_params(next(ki), IA, IA)
    params["w_a3"], params["b_a3"] = linear_params(next(ki), IA, K)
    params["w_fa1"], params["b_fa1"] = linear_params(next(ki), R, FA)
    params["w_fa2"], params["b_fa2"] = linear_params(next(ki), FA, FA)
    params["w_fa3"], params["b_fa3"] = linear_params(next(ki), FA, R)
    params["w_c1"], params["b_c1"] = linear_params(next(ki), K * R + T, R)
    params["w_c2"], params["b_c2"] = linear_params(next(ki), R, 1)

    batch_data = jax.random.normal(next(ki), (1, N, L), dtype=jnp.float32)
    tab_feat = jax.random.normal(next(ki), (1, T), dtype=jnp.float32)

    expected = _reference_forward(batch_data, tab_feat, params)

    # Default path: one large tile (no padding).
    y_single = jax.block_until_ready(
        milnet_with_tabfeat_forward(batch_data, tab_feat, params))
    # Forced multi-tile path: exercises the cross-tile online-softmax carry and
    # the padded-row masking (N=200 padded to 256 with tile_m=64).
    y_multi = jax.block_until_ready(
        milnet_with_tabfeat_forward(batch_data, tab_feat, params, max_tile_m=64))

    assert y_single.shape == (1, 1), y_single.shape
    assert y_multi.shape == (1, 1), y_multi.shape
    assert jnp.allclose(y_single, expected, atol=2e-4, rtol=2e-4), (y_single, expected)
    assert jnp.allclose(y_multi, expected, atol=2e-4, rtol=2e-4), (y_multi, expected)

    print("KERNEL_OK")
</pallas_src>

<mosaic_0001>
module attributes {stable_mosaic.version = 11 : i64} {
  func.func @_milnet_fused_kernel(%arg0: i32, %arg1: memref<200x64xf32, #tpu.memory_space<vmem>>, %arg2: memref<64x64xf32, #tpu.memory_space<vmem>>, %arg3: memref<1x64xf32, #tpu.memory_space<vmem>>, %arg4: memref<64x64xf32, #tpu.memory_space<vmem>>, %arg5: memref<1x64xf32, #tpu.memory_space<vmem>>, %arg6: memref<64x64xf32, #tpu.memory_space<vmem>>, %arg7: memref<1x64xf32, #tpu.memory_space<vmem>>, %arg8: memref<64x64xf32, #tpu.memory_space<vmem>>, %arg9: memref<1x64xf32, #tpu.memory_space<vmem>>, %arg10: memref<1x64xf32, #tpu.memory_space<vmem>>, %arg11: memref<1x1xf32, #tpu.memory_space<vmem>>, %arg12: memref<64x64xf32, #tpu.memory_space<vmem>>, %arg13: memref<1x64xf32, #tpu.memory_space<vmem>>, %arg14: memref<1x8xf32, #tpu.memory_space<vmem>>, %arg15: memref<64x64xf32, #tpu.memory_space<vmem>>, %arg16: memref<8x64xf32, #tpu.memory_space<vmem>>, %arg17: memref<1x64xf32, #tpu.memory_space<vmem>>, %arg18: memref<1x64xf32, #tpu.memory_space<vmem>>, %arg19: memref<1x1xf32, #tpu.memory_space<vmem>>, %arg20: memref<1x1xf32, #tpu.memory_space<vmem>>, %arg21: memref<1x1xf32, #tpu.memory_space<vmem>>, %arg22: memref<1x1xf32, #tpu.memory_space<vmem>>, %arg23: memref<1x64xf32, #tpu.memory_space<vmem>>) attributes {dimension_semantics = [#tpu.dimension_semantics<arbitrary>], iteration_bounds = array<i64: 1>, scalar_prefetch = 0 : i64, scratch_operands = 3 : i64, tpu.core_type = #tpu.core_type<tc>, window_params = [{transform_indices = @transform_0, window_bounds = array<i64: 200, 64>}, {pipeline_mode = #tpu.pipeline_mode<synchronous>, transform_indices = @transform_1, window_bounds = array<i64: 64, 64>}, {pipeline_mode = #tpu.pipeline_mode<synchronous>, transform_indices = @transform_2, window_bounds = array<i64: 1, 64>}, {pipeline_mode = #tpu.pipeline_mode<synchronous>, transform_indices = @transform_3, window_bounds = array<i64: 64, 64>}, {pipeline_mode = #tpu.pipeline_mode<synchronous>, transform_indices = @transform_4, window_bounds = array<i64: 1, 64>}, {pipeline_mode = #tpu.pipeline_mode<synchronous>, transform_indices = @transform_5, window_bounds = array<i64: 64, 64>}, {pipeline_mode = #tpu.pipeline_mode<synchronous>, transform_indices = @transform_6, window_bounds = array<i64: 1, 64>}, {pipeline_mode = #tpu.pipeline_mode<synchronous>, transform_indices = @transform_7, window_bounds = array<i64: 64, 64>}, {pipeline_mode = #tpu.pipeline_mode<synchronous>, transform_indices = @transform_8, window_bounds = array<i64: 1, 64>}, {pipeline_mode = #tpu.pipeline_mode<synchronous>, transform_indices = @transform_9, window_bounds = array<i64: 1, 64>}, {pipeline_mode = #tpu.pipeline_mode<synchronous>, transform_indices = @transform_10, window_bounds = array<i64: 1, 1>}, {pipeline_mode = #tpu.pipeline_mode<synchronous>, transform_indices = @transform_11, window_bounds = array<i64: 64, 64>}, {pipeline_mode = #tpu.pipeline_mode<synchronous>, transform_indices = @transform_12, window_bounds = array<i64: 1, 64>}, {pipeline_mode = #tpu.pipeline_mode<synchronous>, transform_indices = @transform_13, window_bounds = array<i64: 1, 8>}, {pipeline_mode = #tpu.pipeline_mode<synchronous>, transform_indices = @transform_14, window_bounds = array<i64: 64, 64>}, {pipeline_mode = #tpu.pipeline_mode<synchronous>, transform_indices = @transform_15, window_bounds = array<i64: 8, 64>}, {pipeline_mode = #tpu.pipeline_mode<synchronous>, transform_indices = @transform_16, window_bounds = array<i64: 1, 64>}, {pipeline_mode = #tpu.pipeline_mode<synchronous>, transform_indices = @transform_17, window_bounds = array<i64: 1, 64>}, {pipeline_mode = #tpu.pipeline_mode<synchronous>, transform_indices = @transform_18, window_bounds = array<i64: 1, 1>}, {pipeline_mode = #tpu.pipeline_mode<synchronous>, transform_indices = @transform_19, window_bounds = array<i64: 1, 1>}]} {
    %c0_i32 = arith.constant 0 : i32
    %0 = arith.cmpi eq, %arg0, %c0_i32 : i32
    %1 = arith.extui %0 : i1 to i32
    %c0_i32_0 = arith.constant 0 : i32
    %2 = arith.cmpi ne, %1, %c0_i32_0 : i32
    scf.if %2 {
      %cst_66 = arith.constant -1.000000e+30 : f32
      %123 = vector.broadcast %cst_66 : f32 to vector<1x1xf32>
      %c0_67 = arith.constant 0 : index
      %c0_68 = arith.constant 0 : index
      %124 = vector.load %arg21[%c0_67, %c0_68] : memref<1x1xf32, #tpu.memory_space<vmem>>, vector<1x1xf32>
      tpu.vector_store %arg21[%c0_67, %c0_68], %123 {strides = array<i32>} : memref<1x1xf32, #tpu.memory_space<vmem>>, vector<1x1xf32>,
      %cst_69 = arith.constant 0.000000e+00 : f32
      %125 = vector.broadcast %cst_69 : f32 to vector<1x1xf32>
      %c0_70 = arith.constant 0 : index
      %c0_71 = arith.constant 0 : index
      %126 = vector.load %arg22[%c0_70, %c0_71] : memref<1x1xf32, #tpu.memory_space<vmem>>, vector<1x1xf32>
      tpu.vector_store %arg22[%c0_70, %c0_71], %125 {strides = array<i32>} : memref<1x1xf32, #tpu.memory_space<vmem>>, vector<1x1xf32>,
      %cst_72 = arith.constant 0.000000e+00 : f32
      %127 = vector.broadcast %cst_72 : f32 to vector<1x64xf32>
      %c0_73 = arith.constant 0 : index
      %c0_74 = arith.constant 0 : index
      %128 = vector.load %arg23[%c0_73, %c0_74] : memref<1x64xf32, #tpu.memory_space<vmem>>, vector<1x64xf32>
      tpu.vector_store %arg23[%c0_73, %c0_74], %127 {strides = array<i32>} : memref<1x64xf32, #tpu.memory_space<vmem>>, vector<1x64xf32>,
    } else {
    }
    %c0 = arith.constant 0 : index
    %c0_1 = arith.constant 0 : index
    %3 = vector.load %arg1[%c0, %c0_1] : memref<200x64xf32, #tpu.memory_space<vmem>>, vector<200x64xf32>
    %c0_2 = arith.constant 0 : index
    %c0_3 = arith.constant 0 : index
    %4 = vector.load %arg2[%c0_2, %c0_3] : memref<64x64xf32, #tpu.memory_space<vmem>>, vector<64x64xf32>
    %cst = arith.constant dense<0.000000e+00> : vector<200x64xf32>
    %5 = tpu.matmul %3, %4, %cst {dimension_numbers = #tpu.dot_dimension_numbers<[1], [0], [0], [1], [0, 0, 1, 1], [], []>} : vector<200x64xf32>, vector<64x64xf32>, vector<200x64xf32> -> vector<200x64xf32>
    %c0_4 = arith.constant 0 : index
    %c0_5 = arith.constant 0 : index
    %6 = vector.load %arg3[%c0_4, %c0_5] : memref<1x64xf32, #tpu.memory_space<vmem>>, vector<1x64xf32>
    %7 = vector.broadcast %6 : vector<1x64xf32> to vector<200x64xf32>
    %8 = arith.addf %5, %7 : vector<200x64xf32>
    %cst_6 = arith.constant 0.000000e+00 : f32
    %9 = vector.broadcast %cst_6 : f32 to vector<200x64xf32>
    %10 = arith.cmpf ogt, %8, %9 : vector<200x64xf32>
    %cst_7 = arith.constant 0.00999999977 : f32
    %11 = vector.broadcast %cst_7 : f32 to vector<200x64xf32>
    %12 = arith.mulf %11, %8 : vector<200x64xf32>
    %13 = arith.select %10, %8, %12 : vector<200x64xi1>, vector<200x64xf32>
    %c0_8 = arith.constant 0 : index
    %c0_9 = arith.constant 0 : index
    %14 = vector.load %arg4[%c0_8, %c0_9] : memref<64x64xf32, #tpu.memory_space<vmem>>, vector<64x64xf32>
    %cst_10 = arith.constant dense<0.000000e+00> : vector<200x64xf32>
    %15 = tpu.matmul %13, %14, %cst_10 {dimension_numbers = #tpu.dot_dimension_numbers<[1], [0], [0], [1], [0, 0, 1, 1], [], []>} : vector<200x64xf32>, vector<64x64xf32>, vector<200x64xf32> -> vector<200x64xf32>
    %c0_11 = arith.constant 0 : index
    %c0_12 = arith.constant 0 : index
    %16 = vector.load %arg5[%c0_11, %c0_12] : memref<1x64xf32, #tpu.memory_space<vmem>>, vector<1x64xf32>
    %17 = vector.broadcast %16 : vector<1x64xf32> to vector<200x64xf32>
    %18 = arith.addf %15, %17 : vector<200x64xf32>
    %cst_13 = arith.constant 0.000000e+00 : f32
    %19 = vector.broadcast %cst_13 : f32 to vector<200x64xf32>
    %20 = arith.cmpf ogt, %18, %19 : vector<200x64xf32>
    %cst_14 = arith.constant 0.00999999977 : f32
    %21 = vector.broadcast %cst_14 : f32 to vector<200x64xf32>
    %22 = arith.mulf %21, %18 : vector<200x64xf32>
    %23 = arith.select %20, %18, %22 : vector<200x64xi1>, vector<200x64xf32>
    %c0_15 = arith.constant 0 : index
    %c0_16 = arith.constant 0 : index
    %24 = vector.load %arg6[%c0_15, %c0_16] : memref<64x64xf32, #tpu.memory_space<vmem>>, vector<64x64xf32>
    %cst_17 = arith.constant dense<0.000000e+00> : vector<200x64xf32>
    %25 = tpu.matmul %23, %24, %cst_17 {dimension_numbers = #tpu.dot_dimension_numbers<[1], [0], [0], [1], [0, 0, 1, 1], [], []>} : vector<200x64xf32>, vector<64x64xf32>, vector<200x64xf32> -> vector<200x64xf32>
    %c0_18 = arith.constant 0 : index
    %c0_19 = arith.constant 0 : index
    %26 = vector.load %arg7[%c0_18, %c0_19] : memref<1x64xf32, #tpu.memory_space<vmem>>, vector<1x64xf32>
    %27 = vector.broadcast %26 : vector<1x64xf32> to vector<200x64xf32>
    %28 = arith.addf %25, %27 : vector<200x64xf32>
    %29 = tpu.iota {dimensions = array<i32: 1>} : vector<200x64xi32>
    %c32_i32 = arith.constant 32 : i32
    %30 = vector.broadcast %c32_i32 : i32 to vector<200x64xi32>
    %31 = arith.cmpi slt, %29, %30 : vector<200x64xi32>
    %cst_20 = arith.constant 0.000000e+00 : f32
    %32 = vector.broadcast %cst_20 : f32 to vector<200x64xf32>
    %33 = arith.cmpf ogt, %28, %32 : vector<200x64xf32>
    %cst_21 = arith.constant 0.00999999977 : f32
    %34 = vector.broadcast %cst_21 : f32 to vector<200x64xf32>
    %35 = arith.mulf %34, %28 : vector<200x64xf32>
    %36 = arith.select %33, %28, %35 : vector<200x64xi1>, vector<200x64xf32>
    %37 = math.absf %28 : vector<200x64xf32>
    %cst_22 = arith.constant 0.000000e+00 : f32
    %38 = vector.broadcast %cst_22 : f32 to vector<200x64xf32>
    %39 = arith.subf %38, %37 : vector<200x64xf32>
    %40 = math.exp %39 : vector<200x64xf32>
    %cst_23 = arith.constant 1.000000e+00 : f32
    %41 = vector.broadcast %cst_23 : f32 to vector<200x64xf32>
    %42 = arith.addf %41, %40 : vector<200x64xf32>
    %cst_24 = arith.constant 1.000000e+00 : f32
    %43 = vector.broadcast %cst_24 : f32 to vector<200x64xf32>
    %44 = arith.divf %43, %42 : vector<200x64xf32>
    %cst_25 = arith.constant 0.000000e+00 : f32
    %45 = vector.broadcast %cst_25 : f32 to vector<200x64xf32>
    %46 = arith.cmpf oge, %28, %45 : vector<200x64xf32>
    %47 = arith.mulf %40, %44 : vector<200x64xf32>
    %48 = arith.select %46, %44, %47 : vector<200x64xi1>, vector<200x64xf32>
    %49 = arith.mulf %28, %48 : vector<200x64xf32>
    %50 = arith.select %31, %36, %49 : vector<200x64xi1>, vector<200x64xf32>
    %c0_26 = arith.constant 0 : index
    %c0_27 = arith.constant 0 : index
    %51 = vector.load %arg8[%c0_26, %c0_27] : memref<64x64xf32, #tpu.memory_space<vmem>>, vector<64x64xf32>
    %cst_28 = arith.constant dense<0.000000e+00> : vector<200x64xf32>
    %52 = tpu.matmul %50, %51, %cst_28 {dimension_numbers = #tpu.dot_dimension_numbers<[1], [0], [0], [1], [0, 0, 1, 1], [], []>} : vector<200x64xf32>, vector<64x64xf32>, vector<200x64xf32> -> vector<200x64xf32>
    %c0_29 = arith.constant 0 : index
    %c0_30 = arith.constant 0 : index
    %53 = vector.load %arg9[%c0_29, %c0_30] : memref<1x64xf32, #tpu.memory_space<vmem>>, vector<1x64xf32>
    %54 = vector.broadcast %53 : vector<1x64xf32> to vector<200x64xf32>
    %55 = arith.addf %52, %54 : vector<200x64xf32>
    %cst_31 = arith.constant 0.000000e+00 : f32
    %56 = vector.broadcast %cst_31 : f32 to vector<200x64xf32>
    %57 = arith.cmpf ogt, %55, %56 : vector<200x64xf32>
    %cst_32 = arith.constant 0.00999999977 : f32
    %58 = vector.broadcast %cst_32 : f32 to vector<200x64xf32>
    %59 = arith.mulf %58, %55 : vector<200x64xf32>
    %60 = arith.select %57, %55, %59 : vector<200x64xi1>, vector<200x64xf32>
    %c0_33 = arith.constant 0 : index
    %c0_34 = arith.constant 0 : index
    %61 = vector.load %arg10[%c0_33, %c0_34] : memref<1x64xf32, #tpu.memory_space<vmem>>, vector<1x64xf32>
    %62 = vector.broadcast %61 : vector<1x64xf32> to vector<200x64xf32>
    %63 = arith.mulf %60, %62 : vector<200x64xf32>
    %cst_35 = arith.constant dense<0.000000e+00> : vector<200xf32>
    %64 = vector.multi_reduction <add>, %63, %cst_35 [1] : vector<200x64xf32> to vector<200xf32>
    %65 = vector.shape_cast %64 : vector<200xf32> to vector<200x1xf32>
    %c0_36 = arith.constant 0 : index
    %c0_37 = arith.constant 0 : index
    %66 = vector.load %arg11[%c0_36, %c0_37] : memref<1x1xf32, #tpu.memory_space<vmem>>, vector<1x1xf32>
    %67 = vector.broadcast %66 : vector<1x1xf32> to vector<200x1xf32>
    %68 = arith.addf %65, %67 : vector<200x1xf32>
    %c0_38 = arith.constant 0 : index
    %c0_39 = arith.constant 0 : index
    %69 = vector.load %arg12[%c0_38, %c0_39] : memref<64x64xf32, #tpu.memory_space<vmem>>, vector<64x64xf32>
    %cst_40 = arith.constant dense<0.000000e+00> : vector<200x64xf32>
    %70 = tpu.matmul %60, %69, %cst_40 {dimension_numbers = #tpu.dot_dimension_numbers<[1], [0], [0], [1], [0, 0, 1, 1], [], []>} : vector<200x64xf32>, vector<64x64xf32>, vector<200x64xf32> -> vector<200x64xf32>
    %c0_41 = arith.constant 0 : index
    %c0_42 = arith.constant 0 : index
    %71 = vector.load %arg13[%c0_41, %c0_42] : memref<1x64xf32, #tpu.memory_space<vmem>>, vector<1x64xf32>
    %72 = vector.broadcast %71 : vector<1x64xf32> to vector<200x64xf32>
    %73 = arith.addf %70, %72 : vector<200x64xf32>
    %74 = math.absf %73 : vector<200x64xf32>
    %cst_43 = arith.constant 0.000000e+00 : f32
    %75 = vector.broadcast %cst_43 : f32 to vector<200x64xf32>
    %76 = arith.subf %75, %74 : vector<200x64xf32>
    %77 = math.exp %76 : vector<200x64xf32>
    %cst_44 = arith.constant 1.000000e+00 : f32
    %78 = vector.broadcast %cst_44 : f32 to vector<200x64xf32>
    %79 = arith.addf %78, %77 : vector<200x64xf32>
    %cst_45 = arith.constant 1.000000e+00 : f32
    %80 = vector.broadcast %cst_45 : f32 to vector<200x64xf32>
    %81 = arith.divf %80, %79 : vector<200x64xf32>
    %cst_46 = arith.constant 0.000000e+00 : f32
    %82 = vector.broadcast %cst_46 : f32 to vector<200x64xf32>
    %83 = arith.cmpf oge, %73, %82 : vector<200x64xf32>
    %84 = arith.mulf %77, %81 : vector<200x64xf32>
    %85 = arith.select %83, %81, %84 : vector<200x64xi1>, vector<200x64xf32>
    %86 = arith.mulf %23, %85 : vector<200x64xf32>
    %87 = tpu.iota {dimensions = array<i32: 0>} : vector<200x1xi32>
    %c200_i32 = arith.constant 200 : i32
    %88 = arith.muli %arg0, %c200_i32 : i32
    %89 = vector.broadcast %88 : i32 to vector<200x1xi32>
    %90 = arith.addi %87, %89 : vector<200x1xi32>
    %c200_i32_47 = arith.constant 200 : i32
    %91 = vector.broadcast %c200_i32_47 : i32 to vector<200x1xi32>
    %92 = arith.cmpi slt, %90, %91 : vector<200x1xi32>
    %cst_48 = arith.constant -1.000000e+30 : f32
    %93 = vector.broadcast %cst_48 : f32 to vector<200x1xf32>
    %94 = arith.select %92, %68, %93 : vector<200x1xi1>, vector<200x1xf32>
    %c0_49 = arith.constant 0 : index
    %c0_50 = arith.constant 0 : index
    %95 = vector.load %arg21[%c0_49, %c0_50] : memref<1x1xf32, #tpu.memory_space<vmem>>, vector<1x1xf32>
    %cst_51 = arith.constant dense<0xFF800000> : vector<1xf32>
    %96 = vector.multi_reduction <maximumf>, %94, %cst_51 [0] : vector<200x1xf32> to vector<1xf32>
    %97 = vector.shape_cast %96 : vector<1xf32> to vector<1x1xf32>
    %98 = arith.maximumf %95, %97 : vector<1x1xf32>
    %99 = arith.subf %95, %98 : vector<1x1xf32>
    %100 = math.exp %99 : vector<1x1xf32>
    %101 = vector.broadcast %98 : vector<1x1xf32> to vector<200x1xf32>
    %102 = arith.subf %94, %101 : vector<200x1xf32>
    %103 = math.exp %102 : vector<200x1xf32>
    %c0_52 = arith.constant 0 : index
    %c0_53 = arith.constant 0 : index
    %104 = vector.load %arg22[%c0_52, %c0_53] : memref<1x1xf32, #tpu.memory_space<vmem>>, vector<1x1xf32>
    %105 = arith.mulf %100, %104 : vector<1x1xf32>
    %cst_54 = arith.constant dense<0.000000e+00> : vector<1xf32>
    %106 = vector.multi_reduction <add>, %103, %cst_54 [0] : vector<200x1xf32> to vector<1xf32>
    %107 = vector.shape_cast %106 : vector<1xf32> to vector<1x1xf32>
    %108 = arith.addf %105, %107 : vector<1x1xf32>
    %c0_55 = arith.constant 0 : index
    %c0_56 = arith.constant 0 : index
    %109 = vector.load %arg22[%c0_55, %c0_56] : memref<1x1xf32, #tpu.memory_space<vmem>>, vector<1x1xf32>
    tpu.vector_store %arg22[%c0_55, %c0_56], %108 {strides = array<i32>} : memref<1x1xf32, #tpu.memory_space<vmem>>, vector<1x1xf32>,
    %110 = vector.broadcast %103 : vector<200x1xf32> to vector<200x64xf32>
    %111 = arith.mulf %110, %86 : vector<200x64xf32>
    %cst_57 = arith.constant dense<0.000000e+00> : vector<64xf32>
    %112 = vector.multi_reduction <add>, %111, %cst_57 [0] : vector<200x64xf32> to vector<64xf32>
    %113 = vector.shape_cast %112 : vector<64xf32> to vector<1x64xf32>
    %c0_58 = arith.constant 0 : index
    %c0_59 = arith.constant 0 : index
    %114 = vector.load %arg23[%c0_58, %c0_59] : memref<1x64xf32, #tpu.memory_space<vmem>>, vector<1x64xf32>
    %115 = vector.broadcast %100 : vector<1x1xf32> to vector<1x64xf32>
    %116 = arith.mulf %115, %114 : vector<1x64xf32>
    %117 = arith.addf %116, %113 : vector<1x64xf32>
    %c0_60 = arith.constant 0 : index
    %c0_61 = arith.constant 0 : index
    %118 = vector.load %arg23[%c0_60, %c0_61] : memref<1x64xf32, #tpu.memory_space<vmem>>, vector<1x64xf32>
    tpu.vector_store %arg23[%c0_60, %c0_61], %117 {strides = array<i32>} : memref<1x64xf32, #tpu.memory_space<vmem>>, vector<1x64xf32>,
    %c0_62 = arith.constant 0 : index
    %c0_63 = arith.constant 0 : index
    %119 = vector.load %arg21[%c0_62, %c0_63] : memref<1x1xf32, #tpu.memory_space<vmem>>, vector<1x1xf32>
    tpu.vector_store %arg21[%c0_62, %c0_63], %98 {strides = array<i32>} : memref<1x1xf32, #tpu.memory_space<vmem>>, vector<1x1xf32>,
    %c0_i32_64 = arith.constant 0 : i32
    %120 = arith.cmpi eq, %arg0, %c0_i32_64 : i32
    %121 = arith.extui %120 : i1 to i32
    %c0_i32_65 = arith.constant 0 : i32
    %122 = arith.cmpi ne, %121, %c0_i32_65 : i32
    scf.if %122 {
      %c0_66 = arith.constant 0 : index
      %c0_67 = arith.constant 0 : index
      %123 = vector.load %arg23[%c0_66, %c0_67] : memref<1x64xf32, #tpu.memory_space<vmem>>, vector<1x64xf32>
      %c0_68 = arith.constant 0 : index
      %c0_69 = arith.constant 0 : index
      %124 = vector.load %arg22[%c0_68, %c0_69] : memref<1x1xf32, #tpu.memory_space<vmem>>, vector<1x1xf32>
      %125 = vector.broadcast %124 : vector<1x1xf32> to vector<1x64xf32>
      %126 = arith.divf %123, %125 : vector<1x64xf32>
      %c0_70 = arith.constant 0 : index
      %c0_71 = arith.constant 0 : index
      %127 = vector.load %arg15[%c0_70, %c0_71] : memref<64x64xf32, #tpu.memory_space<vmem>>, vector<64x64xf32>
      %cst_72 = arith.constant dense<0.000000e+00> : vector<1x64xf32>
      %128 = tpu.matmul %126, %127, %cst_72 {dimension_numbers = #tpu.dot_dimension_numbers<[1], [0], [0], [1], [0, 0, 1, 1], [], []>} : vector<1x64xf32>, vector<64x64xf32>, vector<1x64xf32> -> vector<1x64xf32>
      %c0_73 = arith.constant 0 : index
      %c0_74 = arith.constant 0 : index
      %129 = vector.load %arg14[%c0_73, %c0_74] : memref<1x8xf32, #tpu.memory_space<vmem>>, vector<1x8xf32>
      %c0_75 = arith.constant 0 : index
      %c0_76 = arith.constant 0 : index
      %130 = vector.load %arg16[%c0_75, %c0_76] : memref<8x64xf32, #tpu.memory_space<vmem>>, vector<8x64xf32>
      %cst_77 = arith.constant dense<0.000000e+00> : vector<1x64xf32>
      %131 = tpu.matmul %129, %130, %cst_77 {dimension_numbers = #tpu.dot_dimension_numbers<[1], [0], [0], [1], [0, 0, 1, 1], [], []>} : vector<1x8xf32>, vector<8x64xf32>, vector<1x64xf32> -> vector<1x64xf32>
      %132 = arith.addf %128, %131 : vector<1x64xf32>
      %c0_78 = arith.constant 0 : index
      %c0_79 = arith.constant 0 : index
      %133 = vector.load %arg17[%c0_78, %c0_79] : memref<1x64xf32, #tpu.memory_space<vmem>>, vector<1x64xf32>
      %134 = arith.addf %132, %133 : vector<1x64xf32>
      %cst_80 = arith.constant 0.000000e+00 : f32
      %135 = vector.broadcast %cst_80 : f32 to vector<1x64xf32>
      %136 = arith.cmpf ogt, %134, %135 : vector<1x64xf32>
      %cst_81 = arith.constant 0.00999999977 : f32
      %137 = vector.broadcast %cst_81 : f32 to vector<1x64xf32>
      %138 = arith.mulf %137, %134 : vector<1x64xf32>
      %139 = arith.select %136, %134, %138 : vector<1x64xi1>, vector<1x64xf32>
      %c0_82 = arith.constant 0 : index
      %c0_83 = arith.constant 0 : index
      %140 = vector.load %arg18[%c0_82, %c0_83] : memref<1x64xf32, #tpu.memory_space<vmem>>, vector<1x64xf32>
      %141 = arith.mulf %139, %140 : vector<1x64xf32>
      %cst_84 = arith.constant dense<0.000000e+00> : vector<1xf32>
      %142 = vector.multi_reduction <add>, %141, %cst_84 [1] : vector<1x64xf32> to vector<1xf32>
      %143 = vector.shape_cast %142 : vector<1xf32> to vector<1x1xf32>
      %c0_85 = arith.constant 0 : index
      %c0_86 = arith.constant 0 : index
      %144 = vector.load %arg19[%c0_85, %c0_86] : memref<1x1xf32, #tpu.memory_space<vmem>>, vector<1x1xf32>
      %145 = arith.addf %143, %144 : vector<1x1xf32>
      %c0_87 = arith.constant 0 : index
      %c0_88 = arith.constant 0 : index
      %146 = vector.load %arg20[%c0_87, %c0_88] : memref<1x1xf32, #tpu.memory_space<vmem>>, vector<1x1xf32>
      tpu.vector_store %arg20[%c0_87, %c0_88], %145 {strides = array<i32>} : memref<1x1xf32, #tpu.memory_space<vmem>>, vector<1x1xf32>,
    } else {
    }
    return
  }
  func.func @transform_0(%arg0: i32) -> (i32, i32) {
    %c0_i32 = arith.constant 0 : i32
    %c0_i32_0 = arith.constant 0 : i32
    return %arg0, %c0_i32 : i32, i32
  }
  func.func @transform_1(%arg0: i32) -> (i32, i32) {
    %c0_i32 = arith.constant 0 : i32
    %c0_i32_0 = arith.constant 0 : i32
    %c0_i32_1 = arith.constant 0 : i32
    return %c0_i32, %c0_i32_0 : i32, i32
  }
  func.func @transform_2(%arg0: i32) -> (i32, i32) {
    %c0_i32 = arith.constant 0 : i32
    %c0_i32_0 = arith.constant 0 : i32
    %c0_i32_1 = arith.constant 0 : i32
    return %c0_i32, %c0_i32_0 : i32, i32
  }
  func.func @transform_3(%arg0: i32) -> (i32, i32) {
    %c0_i32 = arith.constant 0 : i32
    %c0_i32_0 = arith.constant 0 : i32
    %c0_i32_1 = arith.constant 0 : i32
    return %c0_i32, %c0_i32_0 : i32, i32
  }
  func.func @transform_4(%arg0: i32) -> (i32, i32) {
    %c0_i32 = arith.constant 0 : i32
    %c0_i32_0 = arith.constant 0 : i32
    %c0_i32_1 = arith.constant 0 : i32
    return %c0_i32, %c0_i32_0 : i32, i32
  }
  func.func @transform_5(%arg0: i32) -> (i32, i32) {
    %c0_i32 = arith.constant 0 : i32
    %c0_i32_0 = arith.constant 0 : i32
    %c0_i32_1 = arith.constant 0 : i32
    return %c0_i32, %c0_i32_0 : i32, i32
  }
  func.func @transform_6(%arg0: i32) -> (i32, i32) {
    %c0_i32 = arith.constant 0 : i32
    %c0_i32_0 = arith.constant 0 : i32
    %c0_i32_1 = arith.constant 0 : i32
    return %c0_i32, %c0_i32_0 : i32, i32
  }
  func.func @transform_7(%arg0: i32) -> (i32, i32) {
    %c0_i32 = arith.constant 0 : i32
    %c0_i32_0 = arith.constant 0 : i32
    %c0_i32_1 = arith.constant 0 : i32
    return %c0_i32, %c0_i32_0 : i32, i32
  }
  func.func @transform_8(%arg0: i32) -> (i32, i32) {
    %c0_i32 = arith.constant 0 : i32
    %c0_i32_0 = arith.constant 0 : i32
    %c0_i32_1 = arith.constant 0 : i32
    return %c0_i32, %c0_i32_0 : i32, i32
  }
  func.func @transform_9(%arg0: i32) -> (i32, i32) {
    %c0_i32 = arith.constant 0 : i32
    %c0_i32_0 = arith.constant 0 : i32
    %c0_i32_1 = arith.constant 0 : i32
    return %c0_i32, %c0_i32_0 : i32, i32
  }
  func.func @transform_10(%arg0: i32) -> (i32, i32) {
    %c0_i32 = arith.constant 0 : i32
    %c0_i32_0 = arith.constant 0 : i32
    %c0_i32_1 = arith.constant 0 : i32
    return %c0_i32, %c0_i32_0 : i32, i32
  }
  func.func @transform_11(%arg0: i32) -> (i32, i32) {
    %c0_i32 = arith.constant 0 : i32
    %c0_i32_0 = arith.constant 0 : i32
    %c0_i32_1 = arith.constant 0 : i32
    return %c0_i32, %c0_i32_0 : i32, i32
  }
  func.func @transform_12(%arg0: i32) -> (i32, i32) {
    %c0_i32 = arith.constant 0 : i32
    %c0_i32_0 = arith.constant 0 : i32
    %c0_i32_1 = arith.constant 0 : i32
    return %c0_i32, %c0_i32_0 : i32, i32
  }
  func.func @transform_13(%arg0: i32) -> (i32, i32) {
    %c0_i32 = arith.constant 0 : i32
    %c0_i32_0 = arith.constant 0 : i32
    %c0_i32_1 = arith.constant 0 : i32
    return %c0_i32, %c0_i32_0 : i32, i32
  }
  func.func @transform_14(%arg0: i32) -> (i32, i32) {
    %c0_i32 = arith.constant 0 : i32
    %c0_i32_0 = arith.constant 0 : i32
    %c0_i32_1 = arith.constant 0 : i32
    return %c0_i32, %c0_i32_0 : i32, i32
  }
  func.func @transform_15(%arg0: i32) -> (i32, i32) {
    %c0_i32 = arith.constant 0 : i32
    %c0_i32_0 = arith.constant 0 : i32
    %c0_i32_1 = arith.constant 0 : i32
    return %c0_i32, %c0_i32_0 : i32, i32
  }
  func.func @transform_16(%arg0: i32) -> (i32, i32) {
    %c0_i32 = arith.constant 0 : i32
    %c0_i32_0 = arith.constant 0 : i32
    %c0_i32_1 = arith.constant 0 : i32
    return %c0_i32, %c0_i32_0 : i32, i32
  }
  func.func @transform_17(%arg0: i32) -> (i32, i32) {
    %c0_i32 = arith.constant 0 : i32
    %c0_i32_0 = arith.constant 0 : i32
    %c0_i32_1 = arith.constant 0 : i32
    return %c0_i32, %c0_i32_0 : i32, i32
  }
  func.func @transform_18(%arg0: i32) -> (i32, i32) {
    %c0_i32 = arith.constant 0 : i32
    %c0_i32_0 = arith.constant 0 : i32
    %c0_i32_1 = arith.constant 0 : i32
    return %c0_i32, %c0_i32_0 : i32, i32
  }
  func.func @transform_19(%arg0: i32) -> (i32, i32) {
    %c0_i32 = arith.constant 0 : i32
    %c0_i32_0 = arith.constant 0 : i32
    %c0_i32_1 = arith.constant 0 : i32
    return %c0_i32, %c0_i32_0 : i32, i32
  }
}

</mosaic_0001>

<llo_original>
// kernel: tpu_custom_call.1
$region0: #{tpu_custom_call.1}
  #allocation0 [shape = 'u32[]', space=smem, size = 0x4, offset = 0x4, fixed_abs, tag = 'smem constant byte address 0x4 - core index']
  #allocation1 [shape = 'u32[144,128]{1,0:T(1,128)}', space=vmem, size = 0x12000, scoped, tag = 'internal scratch']
  #allocation2 [shape = 'f32[1,1]{1,0:T(1,128)}', space=vmem, size = 0x200, scoped, tag = 'scratch operand']
  #allocation3 [shape = 'f32[1,1]{1,0:T(1,128)}', space=vmem, size = 0x200, scoped, tag = 'scratch operand']
  #allocation4 [shape = 'f32[1,64]{1,0:T(1,128)}', space=vmem, size = 0x200, scoped, tag = 'scratch operand']
  #allocation5 [shape = 'f32[1,1]{1,0:T(1,128)S(1)}', space=vmem, size = 0x200, scoped, tag = 'scoped memory for tpu_custom_call.1']
  #allocation6 [shape = 'f32[1,1]{1,0:T(1,128)S(1)}', space=vmem, size = 0x200, scoped, tag = 'scoped memory for tpu_custom_call.1']
  %s0 = inlined_call_operand.vmem [shape: f32[200,64], index: 0, kind: input, shape index: {}]
  %s1 = inlined_call_operand.vmem [shape: f32[64,64], index: 1, kind: input, shape index: {}]
  %s2 = inlined_call_operand.vmem [shape: f32[1,64], index: 2, kind: input, shape index: {}]
  %s3 = inlined_call_operand.vmem [shape: f32[64,64], index: 3, kind: input, shape index: {}]
  %s4 = inlined_call_operand.vmem [shape: f32[1,64], index: 4, kind: input, shape index: {}]
  %s5 = inlined_call_operand.vmem [shape: f32[64,64], index: 5, kind: input, shape index: {}]
  %s6 = inlined_call_operand.vmem [shape: f32[1,64], index: 6, kind: input, shape index: {}]
  %s7 = inlined_call_operand.vmem [shape: f32[64,64], index: 7, kind: input, shape index: {}]
  %s8 = inlined_call_operand.vmem [shape: f32[1,64], index: 8, kind: input, shape index: {}]
  %s9 = inlined_call_operand.vmem [shape: f32[1,64], index: 9, kind: input, shape index: {}]
  %s10 = inlined_call_operand.<no memory space> [shape: f32[1,1], index: 10, kind: input, shape index: {}]
  %s11 = inlined_call_operand.vmem [shape: f32[64,64], index: 11, kind: input, shape index: {}]
  %s12 = inlined_call_operand.vmem [shape: f32[1,64], index: 12, kind: input, shape index: {}]
  %s13 = inlined_call_operand.vmem [shape: f32[1,8], index: 13, kind: input, shape index: {}]
  %s14 = inlined_call_operand.hbm [shape: f32[64,64], index: 14, kind: input, shape index: {}]
  %s15 = inlined_call_operand.vmem [shape: f32[8,64], index: 15, kind: input, shape index: {}]
  %s16 = inlined_call_operand.vmem [shape: f32[1,64], index: 16, kind: input, shape index: {}]
  %s17 = inlined_call_operand.vmem [shape: f32[1,64], index: 17, kind: input, shape index: {}]
  %s18 = inlined_call_operand.<no memory space> [shape: f32[1,1], index: 18, kind: input, shape index: {}]
  %s19 = inlined_call_operand.hbm [shape: f32[1,1], index: 19, kind: output, shape index: {}]
  %s20 = sld [smem:[#allocation0]]
  $region98: #{tpu_custom_call.1} parent=0
    _
  %s22 = ssub.s32 1, %s20
  %s23 = scalar_select 0, %s22, %s20
  %v24 = vstv %s10
  %25 = vst [vmem:[#allocation5] sm:$0x1] %v24
  %v26 = vstv %s18
  %27 = vst [vmem:[#allocation6] sm:$0x1] %v26
  $region1: #{tpu_custom_call.1} parent=0
    #allocation7 [shape = 'u8[32768]{0}', space=vmem, size = 0x8000, scoped, tag = 'input window, operand 14, single buffered']
    #allocation8 [shape = 's32[1]{0}', space=sflag, size = 0x4, scoped, tag = 'scoped memory for tpu_custom_call.1']
    #allocation9 [shape = 's32[1]{0}', space=sflag, size = 0x4, scoped, tag = 'scoped memory for tpu_custom_call.1']
    #allocation10 [shape = 'u8[512]{0}', space=vmem, size = 0x400, scoped, tag = 'output window, operand 0, single buffered']
    %28 = vsyncpa [#allocation8], 0
    %29 = vsyncpa [#allocation9], 0
    // Predicated region
    $region2: #{tpu_custom_call.1} parent=1 // pred_check
      _
    $region3: #{tpu_custom_call.1} parent=1 // pred_check_branch
      %31 = sbr.rel (0) target = $region5
    $region4: #{tpu_custom_call.1} parent=1 // pred_region
      _
    $region5: #{tpu_custom_call.1} parent=1 // pred_fallthru
      _
    // Predicated region
    $region6: #{tpu_custom_call.1} parent=1 // pred_check
      _
    $region7: #{tpu_custom_call.1} parent=1 // pred_check_branch
      %33 = sbr.rel (0) target = $region9
    $region8: #{tpu_custom_call.1} parent=1 // pred_region
      _
    $region9: #{tpu_custom_call.1} parent=1 // pred_fallthru
      _
    // Predicated region
    $region10: #{tpu_custom_call.1} parent=1 // pred_check
      _
    $region11: #{tpu_custom_call.1} parent=1 // pred_check_branch
      %35 = sbr.rel (0) target = $region13
    $region12: #{tpu_custom_call.1} parent=1 // pred_region
      _
    $region13: #{tpu_custom_call.1} parent=1 // pred_fallthru
      _
    // Predicated region
    $region14: #{tpu_custom_call.1} parent=1 // pred_check
      _
    $region15: #{tpu_custom_call.1} parent=1 // pred_check_branch
      %37 = sbr.rel (0) target = $region17
    $region16: #{tpu_custom_call.1} parent=1 // pred_region
      _
    $region17: #{tpu_custom_call.1} parent=1 // pred_fallthru
      _
    // Predicated region
    $region18: #{tpu_custom_call.1} parent=1 // pred_check
      _
    $region19: #{tpu_custom_call.1} parent=1 // pred_check_branch
      %39 = sbr.rel (0) target = $region21
    $region20: #{tpu_custom_call.1} parent=1 // pred_region
      _
    $region21: #{tpu_custom_call.1} parent=1 // pred_fallthru
      _
    // Predicated region
    $region22: #{tpu_custom_call.1} parent=1 // pred_check
      _
    $region23: #{tpu_custom_call.1} parent=1 // pred_check_branch
      %41 = sbr.rel (0) target = $region25
    $region24: #{tpu_custom_call.1} parent=1 // pred_region
      _
    $region25: #{tpu_custom_call.1} parent=1 // pred_fallthru
      _
    // Predicated region
    $region26: #{tpu_custom_call.1} parent=1 // pred_check
      _
    $region27: #{tpu_custom_call.1} parent=1 // pred_check_branch
      %43 = sbr.rel (0) target = $region29
    $region28: #{tpu_custom_call.1} parent=1 // pred_region
      _
    $region29: #{tpu_custom_call.1} parent=1 // pred_fallthru
      _
    // Predicated region
    $region30: #{tpu_custom_call.1} parent=1 // pred_check
      _
    $region31: #{tpu_custom_call.1} parent=1 // pred_check_branch
      %45 = sbr.rel (0) target = $region33
    $region32: #{tpu_custom_call.1} parent=1 // pred_region
      _
    $region33: #{tpu_custom_call.1} parent=1 // pred_fallthru
      _
    // Predicated region
    $region34: #{tpu_custom_call.1} parent=1 // pred_check
      _
    $region35: #{tpu_custom_call.1} parent=1 // pred_check_branch
      %47 = sbr.rel (0) target = $region37
    $region36: #{tpu_custom_call.1} parent=1 // pred_region
      _
    $region37: #{tpu_custom_call.1} parent=1 // pred_fallthru
      _
    // Predicated region
    $region38: #{tpu_custom_call.1} parent=1 // pred_check
      _
    $region39: #{tpu_custom_call.1} parent=1 // pred_check_branch
      %49 = sbr.rel (0) target = $region41
    $region40: #{tpu_custom_call.1} parent=1 // pred_region
      _
    $region41: #{tpu_custom_call.1} parent=1 // pred_fallthru
      _
    // Predicated region
    $region42: #{tpu_custom_call.1} parent=1 // pred_check
      _
    $region43: #{tpu_custom_call.1} parent=1 // pred_check_branch
      %51 = sbr.rel (0) target = $region45
    $region44: #{tpu_custom_call.1} parent=1 // pred_region
      _
    $region45: #{tpu_custom_call.1} parent=1 // pred_fallthru
      _
    // Predicated region
    $region46: #{tpu_custom_call.1} parent=1 // pred_check
      _
    $region47: #{tpu_custom_call.1} parent=1 // pred_check_branch
      %53 = sbr.rel (0) target = $region49
    $region48: #{tpu_custom_call.1} parent=1 // pred_region
      _
    $region49: #{tpu_custom_call.1} parent=1 // pred_fallthru
      _
    // Predicated region
    $region50: #{tpu_custom_call.1} parent=1 // pred_check
      _
    $region51: #{tpu_custom_call.1} parent=1 // pred_check_branch
      %55 = sbr.rel (0) target = $region53
    $region52: #{tpu_custom_call.1} parent=1 // pred_region
      _
    $region53: #{tpu_custom_call.1} parent=1 // pred_fallthru
      _
    // Predicated region
    $region54: #{tpu_custom_call.1} parent=1 // pred_check
      _
    $region55: #{tpu_custom_call.1} parent=1 // pred_check_branch
      %57 = sbr.rel (0) target = $region57
    $region56: #{tpu_custom_call.1} parent=1 // pred_region
      _
    $region57: #{tpu_custom_call.1} parent=1 // pred_fallthru
      _
    // Predicated region
    $region58: #{tpu_custom_call.1} parent=1 // pred_check
      _
    $region59: #{tpu_custom_call.1} parent=1 // pred_check_branch
      %59 = sbr.rel (0) target = $region61
    $region60: #{tpu_custom_call.1} parent=1 // pred_region
      %s61 = ssub.s32 1024, 1024
      %62 = vsyncadd [#allocation8], %s61
      %s63 = sshll.u32 [#allocation7], 4
      %s64 = int_to_ptr.vmem [resolvable:$true] %s63
      %69 = dma.hbm_to_vmem [thread:$0]  %s14, 1024, %s64, [#allocation8], 128, 128, 8
    $region61: #{tpu_custom_call.1} parent=1 // pred_fallthru
      _
    // Predicated region
    $region62: #{tpu_custom_call.1} parent=1 // pred_check
      _
    $region63: #{tpu_custom_call.1} parent=1 // pred_check_branch
      %71 = sbr.rel (0) target = $region65
    $region64: #{tpu_custom_call.1} parent=1 // pred_region
      _
    $region65: #{tpu_custom_call.1} parent=1 // pred_fallthru
      _
    // Predicated region
    $region66: #{tpu_custom_call.1} parent=1 // pred_check
      _
    $region67: #{tpu_custom_call.1} parent=1 // pred_check_branch
      %73 = sbr.rel (0) target = $region69
    $region68: #{tpu_custom_call.1} parent=1 // pred_region
      _
    $region69: #{tpu_custom_call.1} parent=1 // pred_fallthru
      _
    // Predicated region
    $region70: #{tpu_custom_call.1} parent=1 // pred_check
      _
    $region71: #{tpu_custom_call.1} parent=1 // pred_check_branch
      %75 = sbr.rel (0) target = $region73
    $region72: #{tpu_custom_call.1} parent=1 // pred_region
      _
    $region73: #{tpu_custom_call.1} parent=1 // pred_fallthru
      _
    // Predicated region
    $region74: #{tpu_custom_call.1} parent=1 // pred_check
      _
    $region75: #{tpu_custom_call.1} parent=1 // pred_check_branch
      %77 = sbr.rel (0) target = $region77
    $region76: #{tpu_custom_call.1} parent=1 // pred_region
      _
    $region77: #{tpu_custom_call.1} parent=1 // pred_fallthru
      _
    // Predicated region
    $region78: #{tpu_custom_call.1} parent=1 // pred_check
      _
    $region79: #{tpu_custom_call.1} parent=1 // pred_check_branch
      %79 = sbr.rel (0) target = $region81
    $region80: #{tpu_custom_call.1} parent=1 // pred_region
      %80 = dma.done [#allocation8], 1024
    $region81: #{tpu_custom_call.1} parent=1 // pred_fallthru
      _
    %p81 = scmp.eq.s32.totalorder 0, 0
    // Predicated region
    $region82: #{tpu_custom_call.1} parent=1 // pred_check
      %p82 = pneg %p81
    $region83: #{tpu_custom_call.1} parent=1 // pred_check_branch
      %84 = sbr.rel (%p82) target = $region85
    $region84: #{tpu_custom_call.1} parent=1 // pred_region
      %vm85 = vcmask 0
      %86 = vst.msk [vmem:[#allocation2] sm:$0x1] %vm85, -1e+30
      %87 = vst.msk [vmem:[#allocation3] sm:$0x1] %vm85, 0.0
      %vm88 = vcmask 516096
      %89 = vst.msk [vmem:[#allocation4] sm:$0x1] %vm88, 0.0
    $region85: #{tpu_custom_call.1} parent=1 // pred_fallthru
      _
    %v90 = vld [vmem:[%s0] sm:$0xff]
    %v91 = vld [vmem:[%s0 + $0x8] sm:$0xff]
    %v92 = vld [vmem:[%s0 + $0x10] sm:$0xff]
    %v93 = vld [vmem:[%s0 + $0x18] sm:$0xff]
    %v94 = vld [vmem:[%s0 + $0x20] sm:$0xff]
    %v95 = vld [vmem:[%s0 + $0x28] sm:$0xff]
    %v96 = vld [vmem:[%s0 + $0x30] sm:$0xff]
    %v97 = vld [vmem:[%s0 + $0x38] sm:$0xff]
    %v98 = vld [vmem:[%s0 + $0x40] sm:$0xff]
    %v99 = vld [vmem:[%s0 + $0x48] sm:$0xff]
    %v100 = vld [vmem:[%s0 + $0x50] sm:$0xff]
    %v101 = vld [vmem:[%s0 + $0x58] sm:$0xff]
    %v102 = vld [vmem:[%s0 + $0x60] sm:$0xff]
    %v103 = vld [vmem:[%s0 + $0x68] sm:$0xff]
    %v104 = vld [vmem:[%s0 + $0x70] sm:$0xff]
    %v105 = vld [vmem:[%s0 + $0x78] sm:$0xff]
    %v106 = vld [vmem:[%s0 + $0x80] sm:$0xff]
    %v107 = vld [vmem:[%s0 + $0x88] sm:$0xff]
    %v108 = vld [vmem:[%s0 + $0x90] sm:$0xff]
    %v109 = vld [vmem:[%s0 + $0x98] sm:$0xff]
    %v110 = vld [vmem:[%s0 + $0xa0] sm:$0xff]
    %v111 = vld [vmem:[%s0 + $0xa8] sm:$0xff]
    %v112 = vld [vmem:[%s0 + $0xb0] sm:$0xff]
    %v113 = vld [vmem:[%s0 + $0xb8] sm:$0xff]
    %v114 = vld [vmem:[%s0 + $0xc0] sm:$0xff]
    %v115 = vld [vmem:[%s1] sm:$0xff]
    %v116 = vld [vmem:[%s1 + $0x8] sm:$0xff]
    %v117 = vld [vmem:[%s1 + $0x10] sm:$0xff]
    %v118 = vld [vmem:[%s1 + $0x18] sm:$0xff]
    %v119 = vld [vmem:[%s1 + $0x20] sm:$0xff]
    %v120 = vld [vmem:[%s1 + $0x28] sm:$0xff]
    %v121 = vld [vmem:[%s1 + $0x30] sm:$0xff]
    %v122 = vld [vmem:[%s1 + $0x38] sm:$0xff]
    %v123 = vld [vmem:[%s2] sm:$0x1]
    %v125 = vlaneseq
    %v126 = vshrl.u32 %v125, 7
    %v127 = vsub.s32 0, %v126
    %v128 = vrot.slane %v123, %v127
    %vm130 = vcmask 523264
    %v132 = vsel %vm130, %v90, 0
    %v135 = vsel %vm130, %v91, 0
    %v138 = vsel %vm130, %v92, 0
    %v141 = vsel %vm130, %v93, 0
    %v144 = vsel %vm130, %v94, 0
    %v147 = vsel %vm130, %v95, 0
    %v150 = vsel %vm130, %v96, 0
    %v153 = vsel %vm130, %v97, 0
    %v156 = vsel %vm130, %v98, 0
    %v159 = vsel %vm130, %v99, 0
    %v162 = vsel %vm130, %v100, 0
    %v165 = vsel %vm130, %v101, 0
    %v168 = vsel %vm130, %v102, 0
    %v171 = vsel %vm130, %v103, 0
    %v174 = vsel %vm130, %v104, 0
    %v177 = vsel %vm130, %v105, 0
    %v180 = vsel %vm130, %v106, 0
    %v183 = vsel %vm130, %v107, 0
    %v186 = vsel %vm130, %v108, 0
    %v189 = vsel %vm130, %v109, 0
    %v192 = vsel %vm130, %v110, 0
    %v195 = vsel %vm130, %v111, 0
    %v198 = vsel %vm130, %v112, 0
    %v201 = vsel %vm130, %v113, 0
    %v204 = vsel %vm130, %v114, 0
    %206 = vmatprep.subr.mxu0 0.0
    %207 = vmatpush1.msra.mxu0 0.0
    %208 = vmatprep.subr.mxu0 0.0
    %209 = vmatpush1.msra.mxu0 0.0
    %210 = vmatprep.subr.mxu0 0.0
    %211 = vmatpush1.msra.mxu0 0.0
    %212 = vmatprep.subr.mxu0 0.0
    %213 = vmatpush1.msra.mxu0 0.0
    %214 = vmatprep.subr.mxu0 0.0
    %215 = vmatpush1.msra.mxu0 0.0
    %216 = vmatprep.subr.mxu0 0.0
    %217 = vmatpush1.msra.mxu0 0.0
    %218 = vmatprep.subr.mxu0 0.0
    %219 = vmatpush1.msra.mxu0 0.0
    %220 = vmatprep.subr.mxu0 0.0
    %221 = vmatpush1.msra.mxu0 0.0
    %222 = vmatprep.subr.mxu0 0.0
    %223 = vmatpush1.msra.mxu0 %v122
    %224 = vmatprep.subr.mxu0 0.0
    %225 = vmatpush1.msra.mxu0 %v121
    %226 = vmatprep.subr.mxu0 0.0
    %227 = vmatpush1.msra.mxu0 %v120
    %228 = vmatprep.subr.mxu0 0.0
    %229 = vmatpush1.msra.mxu0 %v119
    %230 = vmatprep.subr.mxu0 0.0
    %231 = vmatpush1.msra.mxu0 %v118
    %232 = vmatprep.subr.mxu0 0.0
    %233 = vmatpush1.msra.mxu0 %v117
    %234 = vmatprep.subr.mxu0 0.0
    %235 = vmatpush1.msra.mxu0 %v116
    %236 = vmatprep.subr.mxu0 0.0
    %237 = vmatpush1.msra.mxu0 %v115
    %238 = vmatprep.subr.mxu0 0.0
    %239 = vmatpush2.msra.mxu0 0.0
    %240 = vmatprep.subr.mxu0 0.0
    %241 = vmatpush2.msra.mxu0 0.0
    %242 = vmatprep.subr.mxu0 0.0
    %243 = vmatpush2.msra.mxu0 0.0
    %244 = vmatprep.subr.mxu0 0.0
    %245 = vmatpush2.msra.mxu0 0.0
    %246 = vmatprep.subr.mxu0 0.0
    %247 = vmatpush2.msra.mxu0 0.0
    %248 = vmatprep.subr.mxu0 0.0
    %249 = vmatpush2.msra.mxu0 0.0
    %250 = vmatprep.subr.mxu0 0.0
    %251 = vmatpush2.msra.mxu0 0.0
    %252 = vmatprep.subr.mxu0 0.0
    %253 = vmatpush2.msra.mxu0 0.0
    %254 = vmatprep.subr.mxu0 0.0
    %255 = vmatpush2.msra.mxu0 0.0
    %256 = vmatprep.subr.mxu0 0.0
    %257 = vmatpush2.msra.mxu0 0.0
    %258 = vmatprep.subr.mxu0 0.0
    %259 = vmatpush2.msra.mxu0 0.0
    %260 = vmatprep.subr.mxu0 0.0
    %261 = vmatpush2.msra.mxu0 0.0
    %262 = vmatprep.subr.mxu0 0.0
    %263 = vmatpush2.msra.mxu0 0.0
    %264 = vmatprep.subr.mxu0 0.0
    %265 = vmatpush2.msra.mxu0 0.0
    %266 = vmatprep.subr.mxu0 0.0
    %267 = vmatpush2.msra.mxu0 0.0
    %268 = vmatprep.subr.mxu0 0.0
    %269 = vmatpush2.msra.mxu0 0.0
    %270 = vmatprep.mubr.f32.mxu0 0.0
    %271 = vmatmul.mubr.f32.gmra.mxu0 %v132
    %v272 = vpop.f32.mrf.mxu0
    %v273 = vadd.f32 %v128, %v272
    %v274 = vpop.f32.mrf.mxu0
    %275 = vmatprep.mubr.f32.mxu0 0.0
    %276 = vmatmul.mubr.f32.gmra.mxu0 %v135
    %v277 = vpop.f32.mrf.mxu0
    %v278 = vadd.f32 %v128, %v277
    %v279 = vpop.f32.mrf.mxu0
    %280 = vmatprep.mubr.f32.mxu0 0.0
    %281 = vmatmul.mubr.f32.gmra.mxu0 %v138
    %v282 = vpop.f32.mrf.mxu0
    %v283 = vadd.f32 %v128, %v282
    %v284 = vpop.f32.mrf.mxu0
    %285 = vmatprep.mubr.f32.mxu0 0.0
    %286 = vmatmul.mubr.f32.gmra.mxu0 %v141
    %v287 = vpop.f32.mrf.mxu0
    %v288 = vadd.f32 %v128, %v287
    %v289 = vpop.f32.mrf.mxu0
    %290 = vmatprep.mubr.f32.mxu0 0.0
    %291 = vmatmul.mubr.f32.gmra.mxu0 %v144
    %v292 = vpop.f32.mrf.mxu0
    %v293 = vadd.f32 %v128, %v292
    %v294 = vpop.f32.mrf.mxu0
    %295 = vmatprep.mubr.f32.mxu0 0.0
    %296 = vmatmul.mubr.f32.gmra.mxu0 %v147
    %v297 = vpop.f32.mrf.mxu0
    %v298 = vadd.f32 %v128, %v297
    %v299 = vpop.f32.mrf.mxu0
    %300 = vmatprep.mubr.f32.mxu0 0.0
    %301 = vmatmul.mubr.f32.gmra.mxu0 %v150
    %v302 = vpop.f32.mrf.mxu0
    %v303 = vadd.f32 %v128, %v302
    %v304 = vpop.f32.mrf.mxu0
    %305 = vmatprep.mubr.f32.mxu0 0.0
    %306 = vmatmul.mubr.f32.gmra.mxu0 %v153
    %v307 = vpop.f32.mrf.mxu0
    %v308 = vadd.f32 %v128, %v307
    %v309 = vpop.f32.mrf.mxu0
    %310 = vmatprep.mubr.f32.mxu0 0.0
    %311 = vmatmul.mubr.f32.gmra.mxu0 %v156
    %v312 = vpop.f32.mrf.mxu0
    %v313 = vadd.f32 %v128, %v312
    %v314 = vpop.f32.mrf.mxu0
    %315 = vmatprep.mubr.f32.mxu0 0.0
    %316 = vmatmul.mubr.f32.gmra.mxu0 %v159
    %v317 = vpop.f32.mrf.mxu0
    %v318 = vadd.f32 %v128, %v317
    %v319 = vpop.f32.mrf.mxu0
    %320 = vmatprep.mubr.f32.mxu0 0.0
    %321 = vmatmul.mubr.f32.gmra.mxu0 %v162
    %v322 = vpop.f32.mrf.mxu0
    %v323 = vadd.f32 %v128, %v322
    %v324 = vpop.f32.mrf.mxu0
    %325 = vmatprep.mubr.f32.mxu0 0.0
    %326 = vmatmul.mubr.f32.gmra.mxu0 %v165
    %v327 = vpop.f32.mrf.mxu0
    %v328 = vadd.f32 %v128, %v327
    %v329 = vpop.f32.mrf.mxu0
    %330 = vmatprep.mubr.f32.mxu0 0.0
    %331 = vmatmul.mubr.f32.gmra.mxu0 %v168
    %v332 = vpop.f32.mrf.mxu0
    %v333 = vadd.f32 %v128, %v332
    %v334 = vpop.f32.mrf.mxu0
    %335 = vmatprep.mubr.f32.mxu0 0.0
    %336 = vmatmul.mubr.f32.gmra.mxu0 %v171
    %v337 = vpop.f32.mrf.mxu0
    %v338 = vadd.f32 %v128, %v337
    %v339 = vpop.f32.mrf.mxu0
    %340 = vmatprep.mubr.f32.mxu0 0.0
    %341 = vmatmul.mubr.f32.gmra.mxu0 %v174
    %v342 = vpop.f32.mrf.mxu0
    %v343 = vadd.f32 %v128, %v342
    %v344 = vpop.f32.mrf.mxu0
    %345 = vmatprep.mubr.f32.mxu0 0.0
    %346 = vmatmul.mubr.f32.gmra.mxu0 %v177
    %v347 = vpop.f32.mrf.mxu0
    %v348 = vadd.f32 %v128, %v347
    %v349 = vpop.f32.mrf.mxu0
    %350 = vmatprep.mubr.f32.mxu0 0.0
    %351 = vmatmul.mubr.f32.gmra.mxu0 %v180
    %v352 = vpop.f32.mrf.mxu0
    %v353 = vadd.f32 %v128, %v352
    %v354 = vpop.f32.mrf.mxu0
    %355 = vmatprep.mubr.f32.mxu0 0.0
    %356 = vmatmul.mubr.f32.gmra.mxu0 %v183
    %v357 = vpop.f32.mrf.mxu0
    %v358 = vadd.f32 %v128, %v357
    %v359 = vpop.f32.mrf.mxu0
    %360 = vmatprep.mubr.f32.mxu0 0.0
    %361 = vmatmul.mubr.f32.gmra.mxu0 %v186
    %v362 = vpop.f32.mrf.mxu0
    %v363 = vadd.f32 %v128, %v362
    %v364 = vpop.f32.mrf.mxu0
    %365 = vmatprep.mubr.f32.mxu0 0.0
    %366 = vmatmul.mubr.f32.gmra.mxu0 %v189
    %v367 = vpop.f32.mrf.mxu0
    %v368 = vadd.f32 %v128, %v367
    %v369 = vpop.f32.mrf.mxu0
    %370 = vmatprep.mubr.f32.mxu0 0.0
    %371 = vmatmul.mubr.f32.gmra.mxu0 %v192
    %v372 = vpop.f32.mrf.mxu0
    %v373 = vadd.f32 %v128, %v372
    %v374 = vpop.f32.mrf.mxu0
    %375 = vmatprep.mubr.f32.mxu0 0.0
    %376 = vmatmul.mubr.f32.gmra.mxu0 %v195
    %v377 = vpop.f32.mrf.mxu0
    %v378 = vadd.f32 %v128, %v377
    %v379 = vpop.f32.mrf.mxu0
    %380 = vmatprep.mubr.f32.mxu0 0.0
    %381 = vmatmul.mubr.f32.gmra.mxu0 %v198
    %v382 = vpop.f32.mrf.mxu0
    %v383 = vadd.f32 %v128, %v382
    %v384 = vpop.f32.mrf.mxu0
    %385 = vmatprep.mubr.f32.mxu0 0.0
    %386 = vmatmul.mubr.f32.gmra.mxu0 %v201
    %v387 = vpop.f32.mrf.mxu0
    %v388 = vadd.f32 %v128, %v387
    %v389 = vpop.f32.mrf.mxu0
    %390 = vmatprep.mubr.f32.mxu0 0.0
    %391 = vmatmul.mubr.f32.gmra.mxu0 %v204
    %v392 = vpop.f32.mrf.mxu0
    %v393 = vadd.f32 %v128, %v392
    %v394 = vpop.f32.mrf.mxu0
    %395 = vdwg.mxu0
    %vm396 = vcmp.gt.f32.partialorder %v273, 0.0
    %vm397 = vcmp.gt.f32.partialorder %v278, 0.0
    %vm398 = vcmp.gt.f32.partialorder %v283, 0.0
    %vm399 = vcmp.gt.f32.partialorder %v288, 0.0
    %vm400 = vcmp.gt.f32.partialorder %v293, 0.0
    %vm401 = vcmp.gt.f32.partialorder %v298, 0.0
    %vm402 = vcmp.gt.f32.partialorder %v303, 0.0
    %vm403 = vcmp.gt.f32.partialorder %v308, 0.0
    %vm404 = vcmp.gt.f32.partialorder %v313, 0.0
    %vm405 = vcmp.gt.f32.partialorder %v318, 0.0
    %vm406 = vcmp.gt.f32.partialorder %v323, 0.0
    %vm407 = vcmp.gt.f32.partialorder %v328, 0.0
    %vm408 = vcmp.gt.f32.partialorder %v333, 0.0
    %vm409 = vcmp.gt.f32.partialorder %v338, 0.0
    %vm410 = vcmp.gt.f32.partialorder %v343, 0.0
    %vm411 = vcmp.gt.f32.partialorder %v348, 0.0
    %vm412 = vcmp.gt.f32.partialorder %v353, 0.0
    %vm413 = vcmp.gt.f32.partialorder %v358, 0.0
    %vm414 = vcmp.gt.f32.partialorder %v363, 0.0
    %vm415 = vcmp.gt.f32.partialorder %v368, 0.0
    %vm416 = vcmp.gt.f32.partialorder %v373, 0.0
    %vm417 = vcmp.gt.f32.partialorder %v378, 0.0
    %vm418 = vcmp.gt.f32.partialorder %v383, 0.0
    %vm419 = vcmp.gt.f32.partialorder %v388, 0.0
    %vm420 = vcmp.gt.f32.partialorder %v393, 0.0
    %v421 = vmul.f32 %v273, 0.01
    %v422 = vmul.f32 %v278, 0.01
    %v423 = vmul.f32 %v283, 0.01
    %v424 = vmul.f32 %v288, 0.01
    %v425 = vmul.f32 %v293, 0.01
    %v426 = vmul.f32 %v298, 0.01
    %v427 = vmul.f32 %v303, 0.01
    %v428 = vmul.f32 %v308, 0.01
    %v429 = vmul.f32 %v313, 0.01
    %v430 = vmul.f32 %v318, 0.01
    %v431 = vmul.f32 %v323, 0.01
    %v432 = vmul.f32 %v328, 0.01
    %v433 = vmul.f32 %v333, 0.01
    %v434 = vmul.f32 %v338, 0.01
    %v435 = vmul.f32 %v343, 0.01
    %v436 = vmul.f32 %v348, 0.01
    %v437 = vmul.f32 %v353, 0.01
    %v438 = vmul.f32 %v358, 0.01
    %v439 = vmul.f32 %v363, 0.01
    %v440 = vmul.f32 %v368, 0.01
    %v441 = vmul.f32 %v373, 0.01
    %v442 = vmul.f32 %v378, 0.01
    %v443 = vmul.f32 %v383, 0.01
    %v444 = vmul.f32 %v388, 0.01
    %v445 = vmul.f32 %v393, 0.01
    %v446 = vsel %vm396, %v273, %v421
    %v447 = vsel %vm397, %v278, %v422
    %v448 = vsel %vm398, %v283, %v423
    %v449 = vsel %vm399, %v288, %v424
    %v450 = vsel %vm400, %v293, %v425
    %v451 = vsel %vm401, %v298, %v426
    %v452 = vsel %vm402, %v303, %v427
    %v453 = vsel %vm403, %v308, %v428
    %v454 = vsel %vm404, %v313, %v429
    %v455 = vsel %vm405, %v318, %v430
    %v456 = vsel %vm406, %v323, %v431
    %v457 = vsel %vm407, %v328, %v432
    %v458 = vsel %vm408, %v333, %v433
    %v459 = vsel %vm409, %v338, %v434
    %v460 = vsel %vm410, %v343, %v435
    %v461 = vsel %vm411, %v348, %v436
    %v462 = vsel %vm412, %v353, %v437
    %v463 = vsel %vm413, %v358, %v438
    %v464 = vsel %vm414, %v363, %v439
    %v465 = vsel %vm415, %v368, %v440
    %v466 = vsel %vm416, %v373, %v441
    %v467 = vsel %vm417, %v378, %v442
    %v468 = vsel %vm418, %v383, %v443
    %v469 = vsel %vm419, %v388, %v444
    %v470 = vsel %vm420, %v393, %v445
    %v471 = vld [vmem:[%s3] sm:$0xff]
    %v472 = vld [vmem:[%s3 + $0x8] sm:$0xff]
    %v473 = vld [vmem:[%s3 + $0x10] sm:$0xff]
    %v474 = vld [vmem:[%s3 + $0x18] sm:$0xff]
    %v475 = vld [vmem:[%s3 + $0x20] sm:$0xff]
    %v476 = vld [vmem:[%s3 + $0x28] sm:$0xff]
    %v477 = vld [vmem:[%s3 + $0x30] sm:$0xff]
    %v478 = vld [vmem:[%s3 + $0x38] sm:$0xff]
    %v479 = vld [vmem:[%s4] sm:$0x1]
    %v481 = vlaneseq
    %v482 = vshrl.u32 %v481, 7
    %v483 = vsub.s32 0, %v482
    %v484 = vrot.slane %v479, %v483
    %v487 = vsel %vm130, %v446, 0
    %v490 = vsel %vm130, %v447, 0
    %v493 = vsel %vm130, %v448, 0
    %v496 = vsel %vm130, %v449, 0
    %v499 = vsel %vm130, %v450, 0
    %v502 = vsel %vm130, %v451, 0
    %v505 = vsel %vm130, %v452, 0
    %v508 = vsel %vm130, %v453, 0
    %v511 = vsel %vm130, %v454, 0
    %v514 = vsel %vm130, %v455, 0
    %v517 = vsel %vm130, %v456, 0
    %v520 = vsel %vm130, %v457, 0
    %v523 = vsel %vm130, %v458, 0
    %v526 = vsel %vm130, %v459, 0
    %v529 = vsel %vm130, %v460, 0
    %v532 = vsel %vm130, %v461, 0
    %v535 = vsel %vm130, %v462, 0
    %v538 = vsel %vm130, %v463, 0
    %v541 = vsel %vm130, %v464, 0
    %v544 = vsel %vm130, %v465, 0
    %v547 = vsel %vm130, %v466, 0
    %v550 = vsel %vm130, %v467, 0
    %v553 = vsel %vm130, %v468, 0
    %v556 = vsel %vm130, %v469, 0
    %v559 = vsel %vm130, %v470, 0
    %561 = vmatprep.subr.mxu0 0.0
    %562 = vmatpush1.msra.mxu0 0.0
    %563 = vmatprep.subr.mxu0 0.0
    %564 = vmatpush1.msra.mxu0 0.0
    %565 = vmatprep.subr.mxu0 0.0
    %566 = vmatpush1.msra.mxu0 0.0
    %567 = vmatprep.subr.mxu0 0.0
    %568 = vmatpush1.msra.mxu0 0.0
    %569 = vmatprep.subr.mxu0 0.0
    %570 = vmatpush1.msra.mxu0 0.0
    %571 = vmatprep.subr.mxu0 0.0
    %572 = vmatpush1.msra.mxu0 0.0
    %573 = vmatprep.subr.mxu0 0.0
    %574 = vmatpush1.msra.mxu0 0.0
    %575 = vmatprep.subr.mxu0 0.0
    %576 = vmatpush1.msra.mxu0 0.0
    %577 = vmatprep.subr.mxu0 0.0
    %578 = vmatpush1.msra.mxu0 %v478
    %579 = vmatprep.subr.mxu0 0.0
    %580 = vmatpush1.msra.mxu0 %v477
    %581 = vmatprep.subr.mxu0 0.0
    %582 = vmatpush1.msra.mxu0 %v476
    %583 = vmatprep.subr.mxu0 0.0
    %584 = vmatpush1.msra.mxu0 %v475
    %585 = vmatprep.subr.mxu0 0.0
    %586 = vmatpush1.msra.mxu0 %v474
    %587 = vmatprep.subr.mxu0 0.0
    %588 = vmatpush1.msra.mxu0 %v473
    %589 = vmatprep.subr.mxu0 0.0
    %590 = vmatpush1.msra.mxu0 %v472
    %591 = vmatprep.subr.mxu0 0.0
    %592 = vmatpush1.msra.mxu0 %v471
    %593 = vmatprep.subr.mxu0 0.0
    %594 = vmatpush2.msra.mxu0 0.0
    %595 = vmatprep.subr.mxu0 0.0
    %596 = vmatpush2.msra.mxu0 0.0
    %597 = vmatprep.subr.mxu0 0.0
    %598 = vmatpush2.msra.mxu0 0.0
    %599 = vmatprep.subr.mxu0 0.0
    %600 = vmatpush2.msra.mxu0 0.0
    %601 = vmatprep.subr.mxu0 0.0
    %602 = vmatpush2.msra.mxu0 0.0
    %603 = vmatprep.subr.mxu0 0.0
    %604 = vmatpush2.msra.mxu0 0.0
    %605 = vmatprep.subr.mxu0 0.0
    %606 = vmatpush2.msra.mxu0 0.0
    %607 = vmatprep.subr.mxu0 0.0
    %608 = vmatpush2.msra.mxu0 0.0
    %609 = vmatprep.subr.mxu0 0.0
    %610 = vmatpush2.msra.mxu0 0.0
    %611 = vmatprep.subr.mxu0 0.0
    %612 = vmatpush2.msra.mxu0 0.0
    %613 = vmatprep.subr.mxu0 0.0
    %614 = vmatpush2.msra.mxu0 0.0
    %615 = vmatprep.subr.mxu0 0.0
    %616 = vmatpush2.msra.mxu0 0.0
    %617 = vmatprep.subr.mxu0 0.0
    %618 = vmatpush2.msra.mxu0 0.0
    %619 = vmatprep.subr.mxu0 0.0
    %620 = vmatpush2.msra.mxu0 0.0
    %621 = vmatprep.subr.mxu0 0.0
    %622 = vmatpush2.msra.mxu0 0.0
    %623 = vmatprep.subr.mxu0 0.0
    %624 = vmatpush2.msra.mxu0 0.0
    %625 = vmatprep.mubr.f32.mxu0 0.0
    %626 = vmatmul.mubr.f32.gmra.mxu0 %v487
    %v627 = vpop.f32.mrf.mxu0
    %v628 = vadd.f32 %v484, %v627
    %v629 = vpop.f32.mrf.mxu0
    %630 = vmatprep.mubr.f32.mxu0 0.0
    %631 = vmatmul.mubr.f32.gmra.mxu0 %v490
    %v632 = vpop.f32.mrf.mxu0
    %v633 = vadd.f32 %v484, %v632
    %v634 = vpop.f32.mrf.mxu0
    %635 = vmatprep.mubr.f32.mxu0 0.0
    %636 = vmatmul.mubr.f32.gmra.mxu0 %v493
    %v637 = vpop.f32.mrf.mxu0
    %v638 = vadd.f32 %v484, %v637
    %v639 = vpop.f32.mrf.mxu0
    %640 = vmatprep.mubr.f32.mxu0 0.0
    %641 = vmatmul.mubr.f32.gmra.mxu0 %v496
    %v642 = vpop.f32.mrf.mxu0
    %v643 = vadd.f32 %v484, %v642
    %v644 = vpop.f32.mrf.mxu0
    %645 = vmatprep.mubr.f32.mxu0 0.0
    %646 = vmatmul.mubr.f32.gmra.mxu0 %v499
    %v647 = vpop.f32.mrf.mxu0
    %v648 = vadd.f32 %v484, %v647
    %v649 = vpop.f32.mrf.mxu0
    %650 = vmatprep.mubr.f32.mxu0 0.0
    %651 = vmatmul.mubr.f32.gmra.mxu0 %v502
    %v652 = vpop.f32.mrf.mxu0
    %v653 = vadd.f32 %v484, %v652
    %v654 = vpop.f32.mrf.mxu0
    %655 = vmatprep.mubr.f32.mxu0 0.0
    %656 = vmatmul.mubr.f32.gmra.mxu0 %v505
    %v657 = vpop.f32.mrf.mxu0
    %v658 = vadd.f32 %v484, %v657
    %v659 = vpop.f32.mrf.mxu0
    %660 = vmatprep.mubr.f32.mxu0 0.0
    %661 = vmatmul.mubr.f32.gmra.mxu0 %v508
    %v662 = vpop.f32.mrf.mxu0
    %v663 = vadd.f32 %v484, %v662
    %v664 = vpop.f32.mrf.mxu0
    %665 = vmatprep.mubr.f32.mxu0 0.0
    %666 = vmatmul.mubr.f32.gmra.mxu0 %v511
    %v667 = vpop.f32.mrf.mxu0
    %v668 = vadd.f32 %v484, %v667
    %v669 = vpop.f32.mrf.mxu0
    %670 = vmatprep.mubr.f32.mxu0 0.0
    %671 = vmatmul.mubr.f32.gmra.mxu0 %v514
    %v672 = vpop.f32.mrf.mxu0
    %v673 = vadd.f32 %v484, %v672
    %v674 = vpop.f32.mrf.mxu0
    %675 = vmatprep.mubr.f32.mxu0 0.0
    %676 = vmatmul.mubr.f32.gmra.mxu0 %v517
    %v677 = vpop.f32.mrf.mxu0
    %v678 = vadd.f32 %v484, %v677
    %v679 = vpop.f32.mrf.mxu0
    %680 = vmatprep.mubr.f32.mxu0 0.0
    %681 = vmatmul.mubr.f32.gmra.mxu0 %v520
    %v682 = vpop.f32.mrf.mxu0
    %v683 = vadd.f32 %v484, %v682
    %v684 = vpop.f32.mrf.mxu0
    %685 = vmatprep.mubr.f32.mxu0 0.0
    %686 = vmatmul.mubr.f32.gmra.mxu0 %v523
    %v687 = vpop.f32.mrf.mxu0
    %v688 = vadd.f32 %v484, %v687
    %v689 = vpop.f32.mrf.mxu0
    %690 = vmatprep.mubr.f32.mxu0 0.0
    %691 = vmatmul.mubr.f32.gmra.mxu0 %v526
    %v692 = vpop.f32.mrf.mxu0
    %v693 = vadd.f32 %v484, %v692
    %v694 = vpop.f32.mrf.mxu0
    %695 = vmatprep.mubr.f32.mxu0 0.0
    %696 = vmatmul.mubr.f32.gmra.mxu0 %v529
    %v697 = vpop.f32.mrf.mxu0
    %v698 = vadd.f32 %v484, %v697
    %v699 = vpop.f32.mrf.mxu0
    %700 = vmatprep.mubr.f32.mxu0 0.0
    %701 = vmatmul.mubr.f32.gmra.mxu0 %v532
    %v702 = vpop.f32.mrf.mxu0
    %v703 = vadd.f32 %v484, %v702
    %v704 = vpop.f32.mrf.mxu0
    %705 = vmatprep.mubr.f32.mxu0 0.0
    %706 = vmatmul.mubr.f32.gmra.mxu0 %v535
    %v707 = vpop.f32.mrf.mxu0
    %v708 = vadd.f32 %v484, %v707
    %v709 = vpop.f32.mrf.mxu0
    %710 = vmatprep.mubr.f32.mxu0 0.0
    %711 = vmatmul.mubr.f32.gmra.mxu0 %v538
    %v712 = vpop.f32.mrf.mxu0
    %v713 = vadd.f32 %v484, %v712
    %v714 = vpop.f32.mrf.mxu0
    %715 = vmatprep.mubr.f32.mxu0 0.0
    %716 = vmatmul.mubr.f32.gmra.mxu0 %v541
    %v717 = vpop.f32.mrf.mxu0
    %v718 = vadd.f32 %v484, %v717
    %v719 = vpop.f32.mrf.mxu0
    %720 = vmatprep.mubr.f32.mxu0 0.0
    %721 = vmatmul.mubr.f32.gmra.mxu0 %v544
    %v722 = vpop.f32.mrf.mxu0
    %v723 = vadd.f32 %v484, %v722
    %v724 = vpop.f32.mrf.mxu0
    %725 = vmatprep.mubr.f32.mxu0 0.0
    %726 = vmatmul.mubr.f32.gmra.mxu0 %v547
    %v727 = vpop.f32.mrf.mxu0
    %v728 = vadd.f32 %v484, %v727
    %v729 = vpop.f32.mrf.mxu0
    %730 = vmatprep.mubr.f32.mxu0 0.0
    %731 = vmatmul.mubr.f32.gmra.mxu0 %v550
    %v732 = vpop.f32.mrf.mxu0
    %v733 = vadd.f32 %v484, %v732
    %v734 = vpop.f32.mrf.mxu0
    %735 = vmatprep.mubr.f32.mxu0 0.0
    %736 = vmatmul.mubr.f32.gmra.mxu0 %v553
    %v737 = vpop.f32.mrf.mxu0
    %v738 = vadd.f32 %v484, %v737
    %v739 = vpop.f32.mrf.mxu0
    %740 = vmatprep.mubr.f32.mxu0 0.0
    %741 = vmatmul.mubr.f32.gmra.mxu0 %v556
    %v742 = vpop.f32.mrf.mxu0
    %v743 = vadd.f32 %v484, %v742
    %v744 = vpop.f32.mrf.mxu0
    %745 = vmatprep.mubr.f32.mxu0 0.0
    %746 = vmatmul.mubr.f32.gmra.mxu0 %v559
    %v747 = vpop.f32.mrf.mxu0
    %v748 = vadd.f32 %v484, %v747
    %v749 = vpop.f32.mrf.mxu0
    %750 = vdwg.mxu0
    %vm751 = vcmp.gt.f32.partialorder %v628, 0.0
    %vm752 = vcmp.gt.f32.partialorder %v633, 0.0
    %vm753 = vcmp.gt.f32.partialorder %v638, 0.0
    %vm754 = vcmp.gt.f32.partialorder %v643, 0.0
    %vm755 = vcmp.gt.f32.partialorder %v648, 0.0
    %vm756 = vcmp.gt.f32.partialorder %v653, 0.0
    %vm757 = vcmp.gt.f32.partialorder %v658, 0.0
    %vm758 = vcmp.gt.f32.partialorder %v663, 0.0
    %vm759 = vcmp.gt.f32.partialorder %v668, 0.0
    %vm760 = vcmp.gt.f32.partialorder %v673, 0.0
    %vm761 = vcmp.gt.f32.partialorder %v678, 0.0
    %vm762 = vcmp.gt.f32.partialorder %v683, 0.0
    %vm763 = vcmp.gt.f32.partialorder %v688, 0.0
    %vm764 = vcmp.gt.f32.partialorder %v693, 0.0
    %vm765 = vcmp.gt.f32.partialorder %v698, 0.0
    %vm766 = vcmp.gt.f32.partialorder %v703, 0.0
    %vm767 = vcmp.gt.f32.partialorder %v708, 0.0
    %vm768 = vcmp.gt.f32.partialorder %v713, 0.0
    %vm769 = vcmp.gt.f32.partialorder %v718, 0.0
    %vm770 = vcmp.gt.f32.partialorder %v723, 0.0
    %vm771 = vcmp.gt.f32.partialorder %v728, 0.0
    %vm772 = vcmp.gt.f32.partialorder %v733, 0.0
    %vm773 = vcmp.gt.f32.partialorder %v738, 0.0
    %vm774 = vcmp.gt.f32.partialorder %v743, 0.0
    %vm775 = vcmp.gt.f32.partialorder %v748, 0.0
    %v776 = vmul.f32 %v628, 0.01
    %v777 = vmul.f32 %v633, 0.01
    %v778 = vmul.f32 %v638, 0.01
    %v779 = vmul.f32 %v643, 0.01
    %v780 = vmul.f32 %v648, 0.01
    %v781 = vmul.f32 %v653, 0.01
    %v782 = vmul.f32 %v658, 0.01
    %v783 = vmul.f32 %v663, 0.01
    %v784 = vmul.f32 %v668, 0.01
    %v785 = vmul.f32 %v673, 0.01
    %v786 = vmul.f32 %v678, 0.01
    %v787 = vmul.f32 %v683, 0.01
    %v788 = vmul.f32 %v688, 0.01
    %v789 = vmul.f32 %v693, 0.01
    %v790 = vmul.f32 %v698, 0.01
    %v791 = vmul.f32 %v703, 0.01
    %v792 = vmul.f32 %v708, 0.01
    %v793 = vmul.f32 %v713, 0.01
    %v794 = vmul.f32 %v718, 0.01
    %v795 = vmul.f32 %v723, 0.01
    %v796 = vmul.f32 %v728, 0.01
    %v797 = vmul.f32 %v733, 0.01
    %v798 = vmul.f32 %v738, 0.01
    %v799 = vmul.f32 %v743, 0.01
    %v800 = vmul.f32 %v748, 0.01
    %v801 = vsel %vm751, %v628, %v776
    %v802 = vsel %vm752, %v633, %v777
    %v803 = vsel %vm753, %v638, %v778
    %v804 = vsel %vm754, %v643, %v779
    %v805 = vsel %vm755, %v648, %v780
    %v806 = vsel %vm756, %v653, %v781
    %v807 = vsel %vm757, %v658, %v782
    %v808 = vsel %vm758, %v663, %v783
    %v809 = vsel %vm759, %v668, %v784
    %v810 = vsel %vm760, %v673, %v785
    %v811 = vsel %vm761, %v678, %v786
    %v812 = vsel %vm762, %v683, %v787
    %v813 = vsel %vm763, %v688, %v788
    %v814 = vsel %vm764, %v693, %v789
    %v815 = vsel %vm765, %v698, %v790
    %v816 = vsel %vm766, %v703, %v791
    %v817 = vsel %vm767, %v708, %v792
    %v818 = vsel %vm768, %v713, %v793
    %v819 = vsel %vm769, %v718, %v794
    %v820 = vsel %vm770, %v723, %v795
    %v821 = vsel %vm771, %v728, %v796
    %v822 = vsel %vm772, %v733, %v797
    %v823 = vsel %vm773, %v738, %v798
    %v824 = vsel %vm774, %v743, %v799
    %v825 = vsel %vm775, %v748, %v800
    %v826 = vld [vmem:[%s5] sm:$0xff]
    %v827 = vld [vmem:[%s5 + $0x8] sm:$0xff]
    %v828 = vld [vmem:[%s5 + $0x10] sm:$0xff]
    %v829 = vld [vmem:[%s5 + $0x18] sm:$0xff]
    %v830 = vld [vmem:[%s5 + $0x20] sm:$0xff]
    %v831 = vld [vmem:[%s5 + $0x28] sm:$0xff]
    %v832 = vld [vmem:[%s5 + $0x30] sm:$0xff]
    %v833 = vld [vmem:[%s5 + $0x38] sm:$0xff]
    %v834 = vld [vmem:[%s6] sm:$0x1]
    %v836 = vlaneseq
    %v837 = vshrl.u32 %v836, 7
    %v838 = vsub.s32 0, %v837
    %v839 = vrot.slane %v834, %v838
    %v842 = vsel %vm130, %v801, 0
    %v845 = vsel %vm130, %v802, 0
    %v848 = vsel %vm130, %v803, 0
    %v851 = vsel %vm130, %v804, 0
    %v854 = vsel %vm130, %v805, 0
    %v857 = vsel %vm130, %v806, 0
    %v860 = vsel %vm130, %v807, 0
    %v863 = vsel %vm130, %v808, 0
    %v866 = vsel %vm130, %v809, 0
    %v869 = vsel %vm130, %v810, 0
    %v872 = vsel %vm130, %v811, 0
    %v875 = vsel %vm130, %v812, 0
    %v878 = vsel %vm130, %v813, 0
    %v881 = vsel %vm130, %v814, 0
    %v884 = vsel %vm130, %v815, 0
    %v887 = vsel %vm130, %v816, 0
    %v890 = vsel %vm130, %v817, 0
    %v893 = vsel %vm130, %v818, 0
    %v896 = vsel %vm130, %v819, 0
    %v899 = vsel %vm130, %v820, 0
    %v902 = vsel %vm130, %v821, 0
    %v905 = vsel %vm130, %v822, 0
    %v908 = vsel %vm130, %v823, 0
    %v911 = vsel %vm130, %v824, 0
    %v914 = vsel %vm130, %v825, 0
    %916 = vmatprep.subr.mxu0 0.0
    %917 = vmatpush1.msra.mxu0 0.0
    %918 = vmatprep.subr.mxu0 0.0
    %919 = vmatpush1.msra.mxu0 0.0
    %920 = vmatprep.subr.mxu0 0.0
    %921 = vmatpush1.msra.mxu0 0.0
    %922 = vmatprep.subr.mxu0 0.0
    %923 = vmatpush1.msra.mxu0 0.0
    %924 = vmatprep.subr.mxu0 0.0
    %925 = vmatpush1.msra.mxu0 0.0
    %926 = vmatprep.subr.mxu0 0.0
    %927 = vmatpush1.msra.mxu0 0.0
    %928 = vmatprep.subr.mxu0 0.0
    %929 = vmatpush1.msra.mxu0 0.0
    %930 = vmatprep.subr.mxu0 0.0
    %931 = vmatpush1.msra.mxu0 0.0
    %932 = vmatprep.subr.mxu0 0.0
    %933 = vmatpush1.msra.mxu0 %v833
    %934 = vmatprep.subr.mxu0 0.0
    %935 = vmatpush1.msra.mxu0 %v832
    %936 = vmatprep.subr.mxu0 0.0
    %937 = vmatpush1.msra.mxu0 %v831
    %938 = vmatprep.subr.mxu0 0.0
    %939 = vmatpush1.msra.mxu0 %v830
    %940 = vmatprep.subr.mxu0 0.0
    %941 = vmatpush1.msra.mxu0 %v829
    %942 = vmatprep.subr.mxu0 0.0
    %943 = vmatpush1.msra.mxu0 %v828
    %944 = vmatprep.subr.mxu0 0.0
    %945 = vmatpush1.msra.mxu0 %v827
    %946 = vmatprep.subr.mxu0 0.0
    %947 = vmatpush1.msra.mxu0 %v826
    %948 = vmatprep.subr.mxu0 0.0
    %949 = vmatpush2.msra.mxu0 0.0
    %950 = vmatprep.subr.mxu0 0.0
    %951 = vmatpush2.msra.mxu0 0.0
    %952 = vmatprep.subr.mxu0 0.0
    %953 = vmatpush2.msra.mxu0 0.0
    %954 = vmatprep.subr.mxu0 0.0
    %955 = vmatpush2.msra.mxu0 0.0
    %956 = vmatprep.subr.mxu0 0.0
    %957 = vmatpush2.msra.mxu0 0.0
    %958 = vmatprep.subr.mxu0 0.0
    %959 = vmatpush2.msra.mxu0 0.0
    %960 = vmatprep.subr.mxu0 0.0
    %961 = vmatpush2.msra.mxu0 0.0
    %962 = vmatprep.subr.mxu0 0.0
    %963 = vmatpush2.msra.mxu0 0.0
    %964 = vmatprep.subr.mxu0 0.0
    %965 = vmatpush2.msra.mxu0 0.0
    %966 = vmatprep.subr.mxu0 0.0
    %967 = vmatpush2.msra.mxu0 0.0
    %968 = vmatprep.subr.mxu0 0.0
    %969 = vmatpush2.msra.mxu0 0.0
    %970 = vmatprep.subr.mxu0 0.0
    %971 = vmatpush2.msra.mxu0 0.0
    %972 = vmatprep.subr.mxu0 0.0
    %973 = vmatpush2.msra.mxu0 0.0
    %974 = vmatprep.subr.mxu0 0.0
    %975 = vmatpush2.msra.mxu0 0.0
    %976 = vmatprep.subr.mxu0 0.0
    %977 = vmatpush2.msra.mxu0 0.0
    %978 = vmatprep.subr.mxu0 0.0
    %979 = vmatpush2.msra.mxu0 0.0
    %980 = vmatprep.mubr.f32.mxu0 0.0
    %981 = vmatmul.mubr.f32.gmra.mxu0 %v842
    %v982 = vpop.f32.mrf.mxu0
    %v983 = vadd.f32 %v839, %v982
    %v984 = vpop.f32.mrf.mxu0
    %985 = vmatprep.mubr.f32.mxu0 0.0
    %986 = vmatmul.mubr.f32.gmra.mxu0 %v845
    %v987 = vpop.f32.mrf.mxu0
    %v988 = vadd.f32 %v839, %v987
    %v989 = vpop.f32.mrf.mxu0
    %990 = vmatprep.mubr.f32.mxu0 0.0
    %991 = vmatmul.mubr.f32.gmra.mxu0 %v848
    %v992 = vpop.f32.mrf.mxu0
    %v993 = vadd.f32 %v839, %v992
    %v994 = vpop.f32.mrf.mxu0
    %995 = vmatprep.mubr.f32.mxu0 0.0
    %996 = vmatmul.mubr.f32.gmra.mxu0 %v851
    %v997 = vpop.f32.mrf.mxu0
    %v998 = vadd.f32 %v839, %v997
    %v999 = vpop.f32.mrf.mxu0
    %1000 = vmatprep.mubr.f32.mxu0 0.0
    %1001 = vmatmul.mubr.f32.gmra.mxu0 %v854
    %v1002 = vpop.f32.mrf.mxu0
    %v1003 = vadd.f32 %v839, %v1002
    %v1004 = vpop.f32.mrf.mxu0
    %1005 = vmatprep.mubr.f32.mxu0 0.0
    %1006 = vmatmul.mubr.f32.gmra.mxu0 %v857
    %v1007 = vpop.f32.mrf.mxu0
    %v1008 = vadd.f32 %v839, %v1007
    %v1009 = vpop.f32.mrf.mxu0
    %1010 = vmatprep.mubr.f32.mxu0 0.0
    %1011 = vmatmul.mubr.f32.gmra.mxu0 %v860
    %v1012 = vpop.f32.mrf.mxu0
    %v1013 = vadd.f32 %v839, %v1012
    %v1014 = vpop.f32.mrf.mxu0
    %1015 = vmatprep.mubr.f32.mxu0 0.0
    %1016 = vmatmul.mubr.f32.gmra.mxu0 %v863
    %v1017 = vpop.f32.mrf.mxu0
    %v1018 = vadd.f32 %v839, %v1017
    %v1019 = vpop.f32.mrf.mxu0
    %1020 = vmatprep.mubr.f32.mxu0 0.0
    %1021 = vmatmul.mubr.f32.gmra.mxu0 %v866
    %v1022 = vpop.f32.mrf.mxu0
    %v1023 = vadd.f32 %v839, %v1022
    %v1024 = vpop.f32.mrf.mxu0
    %1025 = vmatprep.mubr.f32.mxu0 0.0
    %1026 = vmatmul.mubr.f32.gmra.mxu0 %v869
    %v1027 = vpop.f32.mrf.mxu0
    %v1028 = vadd.f32 %v839, %v1027
    %v1029 = vpop.f32.mrf.mxu0
    %1030 = vmatprep.mubr.f32.mxu0 0.0
    %1031 = vmatmul.mubr.f32.gmra.mxu0 %v872
    %v1032 = vpop.f32.mrf.mxu0
    %v1033 = vadd.f32 %v839, %v1032
    %v1034 = vpop.f32.mrf.mxu0
    %1035 = vmatprep.mubr.f32.mxu0 0.0
    %1036 = vmatmul.mubr.f32.gmra.mxu0 %v875
    %v1037 = vpop.f32.mrf.mxu0
    %v1038 = vadd.f32 %v839, %v1037
    %v1039 = vpop.f32.mrf.mxu0
    %1040 = vmatprep.mubr.f32.mxu0 0.0
    %1041 = vmatmul.mubr.f32.gmra.mxu0 %v878
    %v1042 = vpop.f32.mrf.mxu0
    %v1043 = vadd.f32 %v839, %v1042
    %v1044 = vpop.f32.mrf.mxu0
    %1045 = vmatprep.mubr.f32.mxu0 0.0
    %1046 = vmatmul.mubr.f32.gmra.mxu0 %v881
    %v1047 = vpop.f32.mrf.mxu0
    %v1048 = vadd.f32 %v839, %v1047
    %v1049 = vpop.f32.mrf.mxu0
    %1050 = vmatprep.mubr.f32.mxu0 0.0
    %1051 = vmatmul.mubr.f32.gmra.mxu0 %v884
    %v1052 = vpop.f32.mrf.mxu0
    %v1053 = vadd.f32 %v839, %v1052
    %v1054 = vpop.f32.mrf.mxu0
    %1055 = vmatprep.mubr.f32.mxu0 0.0
    %1056 = vmatmul.mubr.f32.gmra.mxu0 %v887
    %v1057 = vpop.f32.mrf.mxu0
    %v1058 = vadd.f32 %v839, %v1057
    %v1059 = vpop.f32.mrf.mxu0
    %1060 = vmatprep.mubr.f32.mxu0 0.0
    %1061 = vmatmul.mubr.f32.gmra.mxu0 %v890
    %v1062 = vpop.f32.mrf.mxu0
    %v1063 = vadd.f32 %v839, %v1062
    %v1064 = vpop.f32.mrf.mxu0
    %1065 = vmatprep.mubr.f32.mxu0 0.0
    %1066 = vmatmul.mubr.f32.gmra.mxu0 %v893
    %v1067 = vpop.f32.mrf.mxu0
    %v1068 = vadd.f32 %v839, %v1067
    %v1069 = vpop.f32.mrf.mxu0
    %1070 = vmatprep.mubr.f32.mxu0 0.0
    %1071 = vmatmul.mubr.f32.gmra.mxu0 %v896
    %v1072 = vpop.f32.mrf.mxu0
    %v1073 = vadd.f32 %v839, %v1072
    %v1074 = vpop.f32.mrf.mxu0
    %1075 = vmatprep.mubr.f32.mxu0 0.0
    %1076 = vmatmul.mubr.f32.gmra.mxu0 %v899
    %v1077 = vpop.f32.mrf.mxu0
    %v1078 = vadd.f32 %v839, %v1077
    %v1079 = vpop.f32.mrf.mxu0
    %1080 = vmatprep.mubr.f32.mxu0 0.0
    %1081 = vmatmul.mubr.f32.gmra.mxu0 %v902
    %v1082 = vpop.f32.mrf.mxu0
    %v1083 = vadd.f32 %v839, %v1082
    %v1084 = vpop.f32.mrf.mxu0
    %1085 = vmatprep.mubr.f32.mxu0 0.0
    %1086 = vmatmul.mubr.f32.gmra.mxu0 %v905
    %v1087 = vpop.f32.mrf.mxu0
    %v1088 = vadd.f32 %v839, %v1087
    %v1089 = vpop.f32.mrf.mxu0
    %1090 = vmatprep.mubr.f32.mxu0 0.0
    %1091 = vmatmul.mubr.f32.gmra.mxu0 %v908
    %v1092 = vpop.f32.mrf.mxu0
    %v1093 = vadd.f32 %v839, %v1092
    %v1094 = vpop.f32.mrf.mxu0
    %1095 = vmatprep.mubr.f32.mxu0 0.0
    %1096 = vmatmul.mubr.f32.gmra.mxu0 %v911
    %v1097 = vpop.f32.mrf.mxu0
    %v1098 = vadd.f32 %v839, %v1097
    %v1099 = vpop.f32.mrf.mxu0
    %1100 = vmatprep.mubr.f32.mxu0 0.0
    %1101 = vmatmul.mubr.f32.gmra.mxu0 %v914
    %v1102 = vpop.f32.mrf.mxu0
    %v1103 = vadd.f32 %v839, %v1102
    %v1104 = vpop.f32.mrf.mxu0
    %1105 = vdwg.mxu0
    %v1106 = vlaneseq
    %v1107 = vand.u32 %v1106, 127
    %vm1108 = vcmp.lt.s32.totalorder %v1107, 32
    %vm1109 = vcmp.gt.f32.partialorder %v983, 0.0
    %vm1110 = vcmp.gt.f32.partialorder %v988, 0.0
    %vm1111 = vcmp.gt.f32.partialorder %v993, 0.0
    %vm1112 = vcmp.gt.f32.partialorder %v998, 0.0
    %vm1113 = vcmp.gt.f32.partialorder %v1003, 0.0
    %vm1114 = vcmp.gt.f32.partialorder %v1008, 0.0
    %vm1115 = vcmp.gt.f32.partialorder %v1013, 0.0
    %vm1116 = vcmp.gt.f32.partialorder %v1018, 0.0
    %vm1117 = vcmp.gt.f32.partialorder %v1023, 0.0
    %vm1118 = vcmp.gt.f32.partialorder %v1028, 0.0
    %vm1119 = vcmp.gt.f32.partialorder %v1033, 0.0
    %vm1120 = vcmp.gt.f32.partialorder %v1038, 0.0
    %vm1121 = vcmp.gt.f32.partialorder %v1043, 0.0
    %vm1122 = vcmp.gt.f32.partialorder %v1048, 0.0
    %vm1123 = vcmp.gt.f32.partialorder %v1053, 0.0
    %vm1124 = vcmp.gt.f32.partialorder %v1058, 0.0
    %vm1125 = vcmp.gt.f32.partialorder %v1063, 0.0
    %vm1126 = vcmp.gt.f32.partialorder %v1068, 0.0
    %vm1127 = vcmp.gt.f32.partialorder %v1073, 0.0
    %vm1128 = vcmp.gt.f32.partialorder %v1078, 0.0
    %vm1129 = vcmp.gt.f32.partialorder %v1083, 0.0
    %vm1130 = vcmp.gt.f32.partialorder %v1088, 0.0
    %vm1131 = vcmp.gt.f32.partialorder %v1093, 0.0
    %vm1132 = vcmp.gt.f32.partialorder %v1098, 0.0
    %vm1133 = vcmp.gt.f32.partialorder %v1103, 0.0
    %v1134 = vmul.f32 %v983, 0.01
    %v1135 = vmul.f32 %v988, 0.01
    %v1136 = vmul.f32 %v993, 0.01
    %v1137 = vmul.f32 %v998, 0.01
    %v1138 = vmul.f32 %v1003, 0.01
    %v1139 = vmul.f32 %v1008, 0.01
    %v1140 = vmul.f32 %v1013, 0.01
    %v1141 = vmul.f32 %v1018, 0.01
    %v1142 = vmul.f32 %v1023, 0.01
    %v1143 = vmul.f32 %v1028, 0.01
    %v1144 = vmul.f32 %v1033, 0.01
    %v1145 = vmul.f32 %v1038, 0.01
    %v1146 = vmul.f32 %v1043, 0.01
    %v1147 = vmul.f32 %v1048, 0.01
    %v1148 = vmul.f32 %v1053, 0.01
    %v1149 = vmul.f32 %v1058, 0.01
    %v1150 = vmul.f32 %v1063, 0.01
    %v1151 = vmul.f32 %v1068, 0.01
    %v1152 = vmul.f32 %v1073, 0.01
    %v1153 = vmul.f32 %v1078, 0.01
    %v1154 = vmul.f32 %v1083, 0.01
    %v1155 = vmul.f32 %v1088, 0.01
    %v1156 = vmul.f32 %v1093, 0.01
    %v1157 = vmul.f32 %v1098, 0.01
    %v1158 = vmul.f32 %v1103, 0.01
    %v1159 = vsel %vm1109, %v983, %v1134
    %v1160 = vsel %vm1110, %v988, %v1135
    %v1161 = vsel %vm1111, %v993, %v1136
    %v1162 = vsel %vm1112, %v998, %v1137
    %v1163 = vsel %vm1113, %v1003, %v1138
    %v1164 = vsel %vm1114, %v1008, %v1139
    %v1165 = vsel %vm1115, %v1013, %v1140
    %v1166 = vsel %vm1116, %v1018, %v1141
    %v1167 = vsel %vm1117, %v1023, %v1142
    %v1168 = vsel %vm1118, %v1028, %v1143
    %v1169 = vsel %vm1119, %v1033, %v1144
    %v1170 = vsel %vm1120, %v1038, %v1145
    %v1171 = vsel %vm1121, %v1043, %v1146
    %v1172 = vsel %vm1122, %v1048, %v1147
    %v1173 = vsel %vm1123, %v1053, %v1148
    %v1174 = vsel %vm1124, %v1058, %v1149
    %v1175 = vsel %vm1125, %v1063, %v1150
    %v1176 = vsel %vm1126, %v1068, %v1151
    %v1177 = vsel %vm1127, %v1073, %v1152
    %v1178 = vsel %vm1128, %v1078, %v1153
    %v1179 = vsel %vm1129, %v1083, %v1154
    %v1180 = vsel %vm1130, %v1088, %v1155
    %v1181 = vsel %vm1131, %v1093, %v1156
    %v1182 = vsel %vm1132, %v1098, %v1157
    %v1183 = vsel %vm1133, %v1103, %v1158
    %v1184 = vand.u32 2147483647, %v983
    %v1185 = vand.u32 2147483647, %v988
    %v1186 = vand.u32 2147483647, %v993
    %v1187 = vand.u32 2147483647, %v998
    %v1188 = vand.u32 2147483647, %v1003
    %v1189 = vand.u32 2147483647, %v1008
    %v1190 = vand.u32 2147483647, %v1013
    %v1191 = vand.u32 2147483647, %v1018
    %v1192 = vand.u32 2147483647, %v1023
    %v1193 = vand.u32 2147483647, %v1028
    %v1194 = vand.u32 2147483647, %v1033
    %v1195 = vand.u32 2147483647, %v1038
    %v1196 = vand.u32 2147483647, %v1043
    %v1197 = vand.u32 2147483647, %v1048
    %v1198 = vand.u32 2147483647, %v1053
    %v1199 = vand.u32 2147483647, %v1058
    %v1200 = vand.u32 2147483647, %v1063
    %v1201 = vand.u32 2147483647, %v1068
    %v1202 = vand.u32 2147483647, %v1073
    %v1203 = vand.u32 2147483647, %v1078
    %v1204 = vand.u32 2147483647, %v1083
    %v1205 = vand.u32 2147483647, %v1088
    %v1206 = vand.u32 2147483647, %v1093
    %v1207 = vand.u32 2147483647, %v1098
    %v1208 = vand.u32 2147483647, %v1103
    %v1209 = vsub.f32 0.0, %v1184
    %v1210 = vsub.f32 0.0, %v1185
    %v1211 = vsub.f32 0.0, %v1186
    %v1212 = vsub.f32 0.0, %v1187
    %v1213 = vsub.f32 0.0, %v1188
    %v1214 = vsub.f32 0.0, %v1189
    %v1215 = vsub.f32 0.0, %v1190
    %v1216 = vsub.f32 0.0, %v1191
    %v1217 = vsub.f32 0.0, %v1192
    %v1218 = vsub.f32 0.0, %v1193
    %v1219 = vsub.f32 0.0, %v1194
    %v1220 = vsub.f32 0.0, %v1195
    %v1221 = vsub.f32 0.0, %v1196
    %v1222 = vsub.f32 0.0, %v1197
    %v1223 = vsub.f32 0.0, %v1198
    %v1224 = vsub.f32 0.0, %v1199
    %v1225 = vsub.f32 0.0, %v1200
    %v1226 = vsub.f32 0.0, %v1201
    %v1227 = vsub.f32 0.0, %v1202
    %v1228 = vsub.f32 0.0, %v1203
    %v1229 = vsub.f32 0.0, %v1204
    %v1230 = vsub.f32 0.0, %v1205
    %v1231 = vsub.f32 0.0, %v1206
    %v1232 = vsub.f32 0.0, %v1207
    %v1233 = vsub.f32 0.0, %v1208
    %v1234 = vmul.f32 %v1209, 1.442695
    %v1235 = vpow.pop %v1234
    %v1236 = vmul.f32 %v1210, 1.442695
    %v1237 = vpow.pop %v1236
    %v1238 = vmul.f32 %v1211, 1.442695
    %v1239 = vpow.pop %v1238
    %v1240 = vmul.f32 %v1212, 1.442695
    %v1241 = vpow.pop %v1240
    %v1242 = vmul.f32 %v1213, 1.442695
    %v1243 = vpow.pop %v1242
    %v1244 = vmul.f32 %v1214, 1.442695
    %v1245 = vpow.pop %v1244
    %v1246 = vmul.f32 %v1215, 1.442695
    %v1247 = vpow.pop %v1246
    %v1248 = vmul.f32 %v1216, 1.442695
    %v1249 = vpow.pop %v1248
    %v1250 = vmul.f32 %v1217, 1.442695
    %v1251 = vpow.pop %v1250
    %v1252 = vmul.f32 %v1218, 1.442695
    %v1253 = vpow.pop %v1252
    %v1254 = vmul.f32 %v1219, 1.442695
    %v1255 = vpow.pop %v1254
    %v1256 = vmul.f32 %v1220, 1.442695
    %v1257 = vpow.pop %v1256
    %v1258 = vmul.f32 %v1221, 1.442695
    %v1259 = vpow.pop %v1258
    %v1260 = vmul.f32 %v1222, 1.442695
    %v1261 = vpow.pop %v1260
    %v1262 = vmul.f32 %v1223, 1.442695
    %v1263 = vpow.pop %v1262
    %v1264 = vmul.f32 %v1224, 1.442695
    %v1265 = vpow.pop %v1264
    %v1266 = vmul.f32 %v1225, 1.442695
    %v1267 = vpow.pop %v1266
    %v1268 = vmul.f32 %v1226, 1.442695
    %v1269 = vpow.pop %v1268
    %v1270 = vmul.f32 %v1227, 1.442695
    %v1271 = vpow.pop %v1270
    %v1272 = vmul.f32 %v1228, 1.442695
    %v1273 = vpow.pop %v1272
    %v1274 = vmul.f32 %v1229, 1.442695
    %v1275 = vpow.pop %v1274
    %v1276 = vmul.f32 %v1230, 1.442695
    %v1277 = vpow.pop %v1276
    %v1278 = vmul.f32 %v1231, 1.442695
    %v1279 = vpow.pop %v1278
    %v1280 = vmul.f32 %v1232, 1.442695
    %v1281 = vpow.pop %v1280
    %v1282 = vmul.f32 %v1233, 1.442695
    %v1283 = vpow.pop %v1282
    %v1284 = vadd.f32 %v1235, 1.0
    %v1285 = vadd.f32 %v1237, 1.0
    %v1286 = vadd.f32 %v1239, 1.0
    %v1287 = vadd.f32 %v1241, 1.0
    %v1288 = vadd.f32 %v1243, 1.0
    %v1289 = vadd.f32 %v1245, 1.0
    %v1290 = vadd.f32 %v1247, 1.0
    %v1291 = vadd.f32 %v1249, 1.0
    %v1292 = vadd.f32 %v1251, 1.0
    %v1293 = vadd.f32 %v1253, 1.0
    %v1294 = vadd.f32 %v1255, 1.0
    %v1295 = vadd.f32 %v1257, 1.0
    %v1296 = vadd.f32 %v1259, 1.0
    %v1297 = vadd.f32 %v1261, 1.0
    %v1298 = vadd.f32 %v1263, 1.0
    %v1299 = vadd.f32 %v1265, 1.0
    %v1300 = vadd.f32 %v1267, 1.0
    %v1301 = vadd.f32 %v1269, 1.0
    %v1302 = vadd.f32 %v1271, 1.0
    %v1303 = vadd.f32 %v1273, 1.0
    %v1304 = vadd.f32 %v1275, 1.0
    %v1305 = vadd.f32 %v1277, 1.0
    %v1306 = vadd.f32 %v1279, 1.0
    %v1307 = vadd.f32 %v1281, 1.0
    %v1308 = vadd.f32 %v1283, 1.0
    %v1309 = vrcp.pop %v1284
    %v1310 = vmul.f32 1.0, %v1309
    %v1311 = vrcp.pop %v1285
    %v1312 = vmul.f32 1.0, %v1311
    %v1313 = vrcp.pop %v1286
    %v1314 = vmul.f32 1.0, %v1313
    %v1315 = vrcp.pop %v1287
    %v1316 = vmul.f32 1.0, %v1315
    %v1317 = vrcp.pop %v1288
    %v1318 = vmul.f32 1.0, %v1317
    %v1319 = vrcp.pop %v1289
    %v1320 = vmul.f32 1.0, %v1319
    %v1321 = vrcp.pop %v1290
    %v1322 = vmul.f32 1.0, %v1321
    %v1323 = vrcp.pop %v1291
    %v1324 = vmul.f32 1.0, %v1323
    %v1325 = vrcp.pop %v1292
    %v1326 = vmul.f32 1.0, %v1325
    %v1327 = vrcp.pop %v1293
    %v1328 = vmul.f32 1.0, %v1327
    %v1329 = vrcp.pop %v1294
    %v1330 = vmul.f32 1.0, %v1329
    %v1331 = vrcp.pop %v1295
    %v1332 = vmul.f32 1.0, %v1331
    %v1333 = vrcp.pop %v1296
    %v1334 = vmul.f32 1.0, %v1333
    %v1335 = vrcp.pop %v1297
    %v1336 = vmul.f32 1.0, %v1335
    %v1337 = vrcp.pop %v1298
    %v1338 = vmul.f32 1.0, %v1337
    %v1339 = vrcp.pop %v1299
    %v1340 = vmul.f32 1.0, %v1339
    %v1341 = vrcp.pop %v1300
    %v1342 = vmul.f32 1.0, %v1341
    %v1343 = vrcp.pop %v1301
    %v1344 = vmul.f32 1.0, %v1343
    %v1345 = vrcp.pop %v1302
    %v1346 = vmul.f32 1.0, %v1345
    %v1347 = vrcp.pop %v1303
    %v1348 = vmul.f32 1.0, %v1347
    %v1349 = vrcp.pop %v1304
    %v1350 = vmul.f32 1.0, %v1349
    %v1351 = vrcp.pop %v1305
    %v1352 = vmul.f32 1.0, %v1351
    %v1353 = vrcp.pop %v1306
    %v1354 = vmul.f32 1.0, %v1353
    %v1355 = vrcp.pop %v1307
    %v1356 = vmul.f32 1.0, %v1355
    %v1357 = vrcp.pop %v1308
    %v1358 = vmul.f32 1.0, %v1357
    %vm1359 = vcmp.ge.f32.partialorder %v983, 0.0
    %vm1360 = vcmp.ge.f32.partialorder %v988, 0.0
    %vm1361 = vcmp.ge.f32.partialorder %v993, 0.0
    %vm1362 = vcmp.ge.f32.partialorder %v998, 0.0
    %vm1363 = vcmp.ge.f32.partialorder %v1003, 0.0
    %vm1364 = vcmp.ge.f32.partialorder %v1008, 0.0
    %vm1365 = vcmp.ge.f32.partialorder %v1013, 0.0
    %vm1366 = vcmp.ge.f32.partialorder %v1018, 0.0
    %vm1367 = vcmp.ge.f32.partialorder %v1023, 0.0
    %vm1368 = vcmp.ge.f32.partialorder %v1028, 0.0
    %vm1369 = vcmp.ge.f32.partialorder %v1033, 0.0
    %vm1370 = vcmp.ge.f32.partialorder %v1038, 0.0
    %vm1371 = vcmp.ge.f32.partialorder %v1043, 0.0
    %vm1372 = vcmp.ge.f32.partialorder %v1048, 0.0
    %vm1373 = vcmp.ge.f32.partialorder %v1053, 0.0
    %vm1374 = vcmp.ge.f32.partialorder %v1058, 0.0
    %vm1375 = vcmp.ge.f32.partialorder %v1063, 0.0
    %vm1376 = vcmp.ge.f32.partialorder %v1068, 0.0
    %vm1377 = vcmp.ge.f32.partialorder %v1073, 0.0
    %vm1378 = vcmp.ge.f32.partialorder %v1078, 0.0
    %vm1379 = vcmp.ge.f32.partialorder %v1083, 0.0
    %vm1380 = vcmp.ge.f32.partialorder %v1088, 0.0
    %vm1381 = vcmp.ge.f32.partialorder %v1093, 0.0
    %vm1382 = vcmp.ge.f32.partialorder %v1098, 0.0
    %vm1383 = vcmp.ge.f32.partialorder %v1103, 0.0
    %v1384 = vmul.f32 %v1235, %v1310
    %v1385 = vmul.f32 %v1237, %v1312
    %v1386 = vmul.f32 %v1239, %v1314
    %v1387 = vmul.f32 %v1241, %v1316
    %v1388 = vmul.f32 %v1243, %v1318
    %v1389 = vmul.f32 %v1245, %v1320
    %v1390 = vmul.f32 %v1247, %v1322
    %v1391 = vmul.f32 %v1249, %v1324
    %v1392 = vmul.f32 %v1251, %v1326
    %v1393 = vmul.f32 %v1253, %v1328
    %v1394 = vmul.f32 %v1255, %v1330
    %v1395 = vmul.f32 %v1257, %v1332
    %v1396 = vmul.f32 %v1259, %v1334
    %v1397 = vmul.f32 %v1261, %v1336
    %v1398 = vmul.f32 %v1263, %v1338
    %v1399 = vmul.f32 %v1265, %v1340
    %v1400 = vmul.f32 %v1267, %v1342
    %v1401 = vmul.f32 %v1269, %v1344
    %v1402 = vmul.f32 %v1271, %v1346
    %v1403 = vmul.f32 %v1273, %v1348
    %v1404 = vmul.f32 %v1275, %v1350
    %v1405 = vmul.f32 %v1277, %v1352
    %v1406 = vmul.f32 %v1279, %v1354
    %v1407 = vmul.f32 %v1281, %v1356
    %v1408 = vmul.f32 %v1283, %v1358
    %v1409 = vsel %vm1359, %v1310, %v1384
    %v1410 = vsel %vm1360, %v1312, %v1385
    %v1411 = vsel %vm1361, %v1314, %v1386
    %v1412 = vsel %vm1362, %v1316, %v1387
    %v1413 = vsel %vm1363, %v1318, %v1388
    %v1414 = vsel %vm1364, %v1320, %v1389
    %v1415 = vsel %vm1365, %v1322, %v1390
    %v1416 = vsel %vm1366, %v1324, %v1391
    %v1417 = vsel %vm1367, %v1326, %v1392
    %v1418 = vsel %vm1368, %v1328, %v1393
    %v1419 = vsel %vm1369, %v1330, %v1394
    %v1420 = vsel %vm1370, %v1332, %v1395
    %v1421 = vsel %vm1371, %v1334, %v1396
    %v1422 = vsel %vm1372, %v1336, %v1397
    %v1423 = vsel %vm1373, %v1338, %v1398
    %v1424 = vsel %vm1374, %v1340, %v1399
    %v1425 = vsel %vm1375, %v1342, %v1400
    %v1426 = vsel %vm1376, %v1344, %v1401
    %v1427 = vsel %vm1377, %v1346, %v1402
    %v1428 = vsel %vm1378, %v1348, %v1403
    %v1429 = vsel %vm1379, %v1350, %v1404
    %v1430 = vsel %vm1380, %v1352, %v1405
    %v1431 = vsel %vm1381, %v1354, %v1406
    %v1432 = vsel %vm1382, %v1356, %v1407
    %v1433 = vsel %vm1383, %v1358, %v1408
    %v1434 = vmul.f32 %v983, %v1409
    %v1435 = vmul.f32 %v988, %v1410
    %v1436 = vmul.f32 %v993, %v1411
    %v1437 = vmul.f32 %v998, %v1412
    %v1438 = vmul.f32 %v1003, %v1413
    %v1439 = vmul.f32 %v1008, %v1414
    %v1440 = vmul.f32 %v1013, %v1415
    %v1441 = vmul.f32 %v1018, %v1416
    %v1442 = vmul.f32 %v1023, %v1417
    %v1443 = vmul.f32 %v1028, %v1418
    %v1444 = vmul.f32 %v1033, %v1419
    %v1445 = vmul.f32 %v1038, %v1420
    %v1446 = vmul.f32 %v1043, %v1421
    %v1447 = vmul.f32 %v1048, %v1422
    %v1448 = vmul.f32 %v1053, %v1423
    %v1449 = vmul.f32 %v1058, %v1424
    %v1450 = vmul.f32 %v1063, %v1425
    %v1451 = vmul.f32 %v1068, %v1426
    %v1452 = vmul.f32 %v1073, %v1427
    %v1453 = vmul.f32 %v1078, %v1428
    %v1454 = vmul.f32 %v1083, %v1429
    %v1455 = vmul.f32 %v1088, %v1430
    %v1456 = vmul.f32 %v1093, %v1431
    %v1457 = vmul.f32 %v1098, %v1432
    %v1458 = vmul.f32 %v1103, %v1433
    %v1459 = vsel %vm1108, %v1159, %v1434
    %v1460 = vsel %vm1108, %v1160, %v1435
    %v1461 = vsel %vm1108, %v1161, %v1436
    %v1462 = vsel %vm1108, %v1162, %v1437
    %v1463 = vsel %vm1108, %v1163, %v1438
    %v1464 = vsel %vm1108, %v1164, %v1439
    %v1465 = vsel %vm1108, %v1165, %v1440
    %v1466 = vsel %vm1108, %v1166, %v1441
    %v1467 = vsel %vm1108, %v1167, %v1442
    %v1468 = vsel %vm1108, %v1168, %v1443
    %v1469 = vsel %vm1108, %v1169, %v1444
    %v1470 = vsel %vm1108, %v1170, %v1445
    %v1471 = vsel %vm1108, %v1171, %v1446
    %v1472 = vsel %vm1108, %v1172, %v1447
    %v1473 = vsel %vm1108, %v1173, %v1448
    %v1474 = vsel %vm1108, %v1174, %v1449
    %v1475 = vsel %vm1108, %v1175, %v1450
    %v1476 = vsel %vm1108, %v1176, %v1451
    %v1477 = vsel %vm1108, %v1177, %v1452
    %v1478 = vsel %vm1108, %v1178, %v1453
    %v1479 = vsel %vm1108, %v1179, %v1454
    %v1480 = vsel %vm1108, %v1180, %v1455
    %v1481 = vsel %vm1108, %v1181, %v1456
    %v1482 = vsel %vm1108, %v1182, %v1457
    %v1483 = vsel %vm1108, %v1183, %v1458
    %v1484 = vld [vmem:[%s7] sm:$0xff]
    %v1485 = vld [vmem:[%s7 + $0x8] sm:$0xff]
    %v1486 = vld [vmem:[%s7 + $0x10] sm:$0xff]
    %v1487 = vld [vmem:[%s7 + $0x18] sm:$0xff]
    %v1488 = vld [vmem:[%s7 + $0x20] sm:$0xff]
    %v1489 = vld [vmem:[%s7 + $0x28] sm:$0xff]
    %v1490 = vld [vmem:[%s7 + $0x30] sm:$0xff]
    %v1491 = vld [vmem:[%s7 + $0x38] sm:$0xff]
    %v1492 = vld [vmem:[%s8] sm:$0x1]
    %v1494 = vlaneseq
    %v1495 = vshrl.u32 %v1494, 7
    %v1496 = vsub.s32 0, %v1495
    %v1497 = vrot.slane %v1492, %v1496
    %v1500 = vsel %vm130, %v1459, 0
    %v1503 = vsel %vm130, %v1460, 0
    %v1506 = vsel %vm130, %v1461, 0
    %v1509 = vsel %vm130, %v1462, 0
    %v1512 = vsel %vm130, %v1463, 0
    %v1515 = vsel %vm130, %v1464, 0
    %v1518 = vsel %vm130, %v1465, 0
    %v1521 = vsel %vm130, %v1466, 0
    %v1524 = vsel %vm130, %v1467, 0
    %v1527 = vsel %vm130, %v1468, 0
    %v1530 = vsel %vm130, %v1469, 0
    %v1533 = vsel %vm130, %v1470, 0
    %v1536 = vsel %vm130, %v1471, 0
    %v1539 = vsel %vm130, %v1472, 0
    %v1542 = vsel %vm130, %v1473, 0
    %v1545 = vsel %vm130, %v1474, 0
    %v1548 = vsel %vm130, %v1475, 0
    %v1551 = vsel %vm130, %v1476, 0
    %v1554 = vsel %vm130, %v1477, 0
    %v1557 = vsel %vm130, %v1478, 0
    %v1560 = vsel %vm130, %v1479, 0
    %v1563 = vsel %vm130, %v1480, 0
    %v1566 = vsel %vm130, %v1481, 0
    %v1569 = vsel %vm130, %v1482, 0
    %v1572 = vsel %vm130, %v1483, 0
    %1574 = vmatprep.subr.mxu0 0.0
    %1575 = vmatpush1.msra.mxu0 0.0
    %1576 = vmatprep.subr.mxu0 0.0
    %1577 = vmatpush1.msra.mxu0 0.0
    %1578 = vmatprep.subr.mxu0 0.0
    %1579 = vmatpush1.msra.mxu0 0.0
    %1580 = vmatprep.subr.mxu0 0.0
    %1581 = vmatpush1.msra.mxu0 0.0
    %1582 = vmatprep.subr.mxu0 0.0
    %1583 = vmatpush1.msra.mxu0 0.0
    %1584 = vmatprep.subr.mxu0 0.0
    %1585 = vmatpush1.msra.mxu0 0.0
    %1586 = vmatprep.subr.mxu0 0.0
    %1587 = vmatpush1.msra.mxu0 0.0
    %1588 = vmatprep.subr.mxu0 0.0
    %1589 = vmatpush1.msra.mxu0 0.0
    %1590 = vmatprep.subr.mxu0 0.0
    %1591 = vmatpush1.msra.mxu0 %v1491
    %1592 = vmatprep.subr.mxu0 0.0
    %1593 = vmatpush1.msra.mxu0 %v1490
    %1594 = vmatprep.subr.mxu0 0.0
    %1595 = vmatpush1.msra.mxu0 %v1489
    %1596 = vmatprep.subr.mxu0 0.0
    %1597 = vmatpush1.msra.mxu0 %v1488
    %1598 = vmatprep.subr.mxu0 0.0
    %1599 = vmatpush1.msra.mxu0 %v1487
    %1600 = vmatprep.subr.mxu0 0.0
    %1601 = vmatpush1.msra.mxu0 %v1486
    %1602 = vmatprep.subr.mxu0 0.0
    %1603 = vmatpush1.msra.mxu0 %v1485
    %1604 = vmatprep.subr.mxu0 0.0
    %1605 = vmatpush1.msra.mxu0 %v1484
    %1606 = vmatprep.subr.mxu0 0.0
    %1607 = vmatpush2.msra.mxu0 0.0
    %1608 = vmatprep.subr.mxu0 0.0
    %1609 = vmatpush2.msra.mxu0 0.0
    %1610 = vmatprep.subr.mxu0 0.0
    %1611 = vmatpush2.msra.mxu0 0.0
    %1612 = vmatprep.subr.mxu0 0.0
    %1613 = vmatpush2.msra.mxu0 0.0
    %1614 = vmatprep.subr.mxu0 0.0
    %1615 = vmatpush2.msra.mxu0 0.0
    %1616 = vmatprep.subr.mxu0 0.0
    %1617 = vmatpush2.msra.mxu0 0.0
    %1618 = vmatprep.subr.mxu0 0.0
    %1619 = vmatpush2.msra.mxu0 0.0
    %1620 = vmatprep.subr.mxu0 0.0
    %1621 = vmatpush2.msra.mxu0 0.0
    %1622 = vmatprep.subr.mxu0 0.0
    %1623 = vmatpush2.msra.mxu0 0.0
    %1624 = vmatprep.subr.mxu0 0.0
    %1625 = vmatpush2.msra.mxu0 0.0
    %1626 = vmatprep.subr.mxu0 0.0
    %1627 = vmatpush2.msra.mxu0 0.0
    %1628 = vmatprep.subr.mxu0 0.0
    %1629 = vmatpush2.msra.mxu0 0.0
    %1630 = vmatprep.subr.mxu0 0.0
    %1631 = vmatpush2.msra.mxu0 0.0
    %1632 = vmatprep.subr.mxu0 0.0
    %1633 = vmatpush2.msra.mxu0 0.0
    %1634 = vmatprep.subr.mxu0 0.0
    %1635 = vmatpush2.msra.mxu0 0.0
    %1636 = vmatprep.subr.mxu0 0.0
    %1637 = vmatpush2.msra.mxu0 0.0
    %1638 = vmatprep.mubr.f32.mxu0 0.0
    %1639 = vmatmul.mubr.f32.gmra.mxu0 %v1500
    %v1640 = vpop.f32.mrf.mxu0
    %v1641 = vadd.f32 %v1497, %v1640
    %v1642 = vpop.f32.mrf.mxu0
    %1643 = vmatprep.mubr.f32.mxu0 0.0
    %1644 = vmatmul.mubr.f32.gmra.mxu0 %v1503
    %v1645 = vpop.f32.mrf.mxu0
    %v1646 = vadd.f32 %v1497, %v1645
    %v1647 = vpop.f32.mrf.mxu0
    %1648 = vmatprep.mubr.f32.mxu0 0.0
    %1649 = vmatmul.mubr.f32.gmra.mxu0 %v1506
    %v1650 = vpop.f32.mrf.mxu0
    %v1651 = vadd.f32 %v1497, %v1650
    %v1652 = vpop.f32.mrf.mxu0
    %1653 = vmatprep.mubr.f32.mxu0 0.0
    %1654 = vmatmul.mubr.f32.gmra.mxu0 %v1509
    %v1655 = vpop.f32.mrf.mxu0
    %v1656 = vadd.f32 %v1497, %v1655
    %v1657 = vpop.f32.mrf.mxu0
    %1658 = vmatprep.mubr.f32.mxu0 0.0
    %1659 = vmatmul.mubr.f32.gmra.mxu0 %v1512
    %v1660 = vpop.f32.mrf.mxu0
    %v1661 = vadd.f32 %v1497, %v1660
    %v1662 = vpop.f32.mrf.mxu0
    %1663 = vmatprep.mubr.f32.mxu0 0.0
    %1664 = vmatmul.mubr.f32.gmra.mxu0 %v1515
    %v1665 = vpop.f32.mrf.mxu0
    %v1666 = vadd.f32 %v1497, %v1665
    %v1667 = vpop.f32.mrf.mxu0
    %1668 = vmatprep.mubr.f32.mxu0 0.0
    %1669 = vmatmul.mubr.f32.gmra.mxu0 %v1518
    %v1670 = vpop.f32.mrf.mxu0
    %v1671 = vadd.f32 %v1497, %v1670
    %v1672 = vpop.f32.mrf.mxu0
    %1673 = vmatprep.mubr.f32.mxu0 0.0
    %1674 = vmatmul.mubr.f32.gmra.mxu0 %v1521
    %v1675 = vpop.f32.mrf.mxu0
    %v1676 = vadd.f32 %v1497, %v1675
    %v1677 = vpop.f32.mrf.mxu0
    %1678 = vmatprep.mubr.f32.mxu0 0.0
    %1679 = vmatmul.mubr.f32.gmra.mxu0 %v1524
    %v1680 = vpop.f32.mrf.mxu0
    %v1681 = vadd.f32 %v1497, %v1680
    %v1682 = vpop.f32.mrf.mxu0
    %1683 = vmatprep.mubr.f32.mxu0 0.0
    %1684 = vmatmul.mubr.f32.gmra.mxu0 %v1527
    %v1685 = vpop.f32.mrf.mxu0
    %v1686 = vadd.f32 %v1497, %v1685
    %v1687 = vpop.f32.mrf.mxu0
    %1688 = vmatprep.mubr.f32.mxu0 0.0
    %1689 = vmatmul.mubr.f32.gmra.mxu0 %v1530
    %v1690 = vpop.f32.mrf.mxu0
    %v1691 = vadd.f32 %v1497, %v1690
    %v1692 = vpop.f32.mrf.mxu0
    %1693 = vmatprep.mubr.f32.mxu0 0.0
    %1694 = vmatmul.mubr.f32.gmra.mxu0 %v1533
    %v1695 = vpop.f32.mrf.mxu0
    %v1696 = vadd.f32 %v1497, %v1695
    %v1697 = vpop.f32.mrf.mxu0
    %1698 = vmatprep.mubr.f32.mxu0 0.0
    %1699 = vmatmul.mubr.f32.gmra.mxu0 %v1536
    %v1700 = vpop.f32.mrf.mxu0
    %v1701 = vadd.f32 %v1497, %v1700
    %v1702 = vpop.f32.mrf.mxu0
    %1703 = vmatprep.mubr.f32.mxu0 0.0
    %1704 = vmatmul.mubr.f32.gmra.mxu0 %v1539
    %v1705 = vpop.f32.mrf.mxu0
    %v1706 = vadd.f32 %v1497, %v1705
    %v1707 = vpop.f32.mrf.mxu0
    %1708 = vmatprep.mubr.f32.mxu0 0.0
    %1709 = vmatmul.mubr.f32.gmra.mxu0 %v1542
    %v1710 = vpop.f32.mrf.mxu0
    %v1711 = vadd.f32 %v1497, %v1710
    %v1712 = vpop.f32.mrf.mxu0
    %1713 = vmatprep.mubr.f32.mxu0 0.0
    %1714 = vmatmul.mubr.f32.gmra.mxu0 %v1545
    %v1715 = vpop.f32.mrf.mxu0
    %v1716 = vadd.f32 %v1497, %v1715
    %v1717 = vpop.f32.mrf.mxu0
    %1718 = vmatprep.mubr.f32.mxu0 0.0
    %1719 = vmatmul.mubr.f32.gmra.mxu0 %v1548
    %v1720 = vpop.f32.mrf.mxu0
    %v1721 = vadd.f32 %v1497, %v1720
    %v1722 = vpop.f32.mrf.mxu0
    %1723 = vmatprep.mubr.f32.mxu0 0.0
    %1724 = vmatmul.mubr.f32.gmra.mxu0 %v1551
    %v1725 = vpop.f32.mrf.mxu0
    %v1726 = vadd.f32 %v1497, %v1725
    %v1727 = vpop.f32.mrf.mxu0
    %1728 = vmatprep.mubr.f32.mxu0 0.0
    %1729 = vmatmul.mubr.f32.gmra.mxu0 %v1554
    %v1730 = vpop.f32.mrf.mxu0
    %v1731 = vadd.f32 %v1497, %v1730
    %v1732 = vpop.f32.mrf.mxu0
    %1733 = vmatprep.mubr.f32.mxu0 0.0
    %1734 = vmatmul.mubr.f32.gmra.mxu0 %v1557
    %v1735 = vpop.f32.mrf.mxu0
    %v1736 = vadd.f32 %v1497, %v1735
    %v1737 = vpop.f32.mrf.mxu0
    %1738 = vmatprep.mubr.f32.mxu0 0.0
    %1739 = vmatmul.mubr.f32.gmra.mxu0 %v1560
    %v1740 = vpop.f32.mrf.mxu0
    %v1741 = vadd.f32 %v1497, %v1740
    %v1742 = vpop.f32.mrf.mxu0
    %1743 = vmatprep.mubr.f32.mxu0 0.0
    %1744 = vmatmul.mubr.f32.gmra.mxu0 %v1563
    %v1745 = vpop.f32.mrf.mxu0
    %v1746 = vadd.f32 %v1497, %v1745
    %v1747 = vpop.f32.mrf.mxu0
    %1748 = vmatprep.mubr.f32.mxu0 0.0
    %1749 = vmatmul.mubr.f32.gmra.mxu0 %v1566
    %v1750 = vpop.f32.mrf.mxu0
    %v1751 = vadd.f32 %v1497, %v1750
    %v1752 = vpop.f32.mrf.mxu0
    %1753 = vmatprep.mubr.f32.mxu0 0.0
    %1754 = vmatmul.mubr.f32.gmra.mxu0 %v1569
    %v1755 = vpop.f32.mrf.mxu0
    %v1756 = vadd.f32 %v1497, %v1755
    %v1757 = vpop.f32.mrf.mxu0
    %1758 = vmatprep.mubr.f32.mxu0 0.0
    %1759 = vmatmul.mubr.f32.gmra.mxu0 %v1572
    %v1760 = vpop.f32.mrf.mxu0
    %v1761 = vadd.f32 %v1497, %v1760
    %v1762 = vpop.f32.mrf.mxu0
    %1763 = vdwg.mxu0
    %vm1764 = vcmp.gt.f32.partialorder %v1641, 0.0
    %vm1765 = vcmp.gt.f32.partialorder %v1646, 0.0
    %vm1766 = vcmp.gt.f32.partialorder %v1651, 0.0
    %vm1767 = vcmp.gt.f32.partialorder %v1656, 0.0
    %vm1768 = vcmp.gt.f32.partialorder %v1661, 0.0
    %vm1769 = vcmp.gt.f32.partialorder %v1666, 0.0
    %vm1770 = vcmp.gt.f32.partialorder %v1671, 0.0
    %vm1771 = vcmp.gt.f32.partialorder %v1676, 0.0
    %vm1772 = vcmp.gt.f32.partialorder %v1681, 0.0
    %vm1773 = vcmp.gt.f32.partialorder %v1686, 0.0
    %vm1774 = vcmp.gt.f32.partialorder %v1691, 0.0
    %vm1775 = vcmp.gt.f32.partialorder %v1696, 0.0
    %vm1776 = vcmp.gt.f32.partialorder %v1701, 0.0
    %vm1777 = vcmp.gt.f32.partialorder %v1706, 0.0
    %vm1778 = vcmp.gt.f32.partialorder %v1711, 0.0
    %vm1779 = vcmp.gt.f32.partialorder %v1716, 0.0
    %vm1780 = vcmp.gt.f32.partialorder %v1721, 0.0
    %vm1781 = vcmp.gt.f32.partialorder %v1726, 0.0
    %vm1782 = vcmp.gt.f32.partialorder %v1731, 0.0
    %vm1783 = vcmp.gt.f32.partialorder %v1736, 0.0
    %vm1784 = vcmp.gt.f32.partialorder %v1741, 0.0
    %vm1785 = vcmp.gt.f32.partialorder %v1746, 0.0
    %vm1786 = vcmp.gt.f32.partialorder %v1751, 0.0
    %vm1787 = vcmp.gt.f32.partialorder %v1756, 0.0
    %vm1788 = vcmp.gt.f32.partialorder %v1761, 0.0
    %v1789 = vmul.f32 %v1641, 0.01
    %v1790 = vmul.f32 %v1646, 0.01
    %v1791 = vmul.f32 %v1651, 0.01
    %v1792 = vmul.f32 %v1656, 0.01
    %v1793 = vmul.f32 %v1661, 0.01
    %v1794 = vmul.f32 %v1666, 0.01
    %v1795 = vmul.f32 %v1671, 0.01
    %v1796 = vmul.f32 %v1676, 0.01
    %v1797 = vmul.f32 %v1681, 0.01
    %v1798 = vmul.f32 %v1686, 0.01
    %v1799 = vmul.f32 %v1691, 0.01
    %v1800 = vmul.f32 %v1696, 0.01
    %v1801 = vmul.f32 %v1701, 0.01
    %v1802 = vmul.f32 %v1706, 0.01
    %v1803 = vmul.f32 %v1711, 0.01
    %v1804 = vmul.f32 %v1716, 0.01
    %v1805 = vmul.f32 %v1721, 0.01
    %v1806 = vmul.f32 %v1726, 0.01
    %v1807 = vmul.f32 %v1731, 0.01
    %v1808 = vmul.f32 %v1736, 0.01
    %v1809 = vmul.f32 %v1741, 0.01
    %v1810 = vmul.f32 %v1746, 0.01
    %v1811 = vmul.f32 %v1751, 0.01
    %v1812 = vmul.f32 %v1756, 0.01
    %v1813 = vmul.f32 %v1761, 0.01
    %v1814 = vsel %vm1764, %v1641, %v1789
    %v1815 = vsel %vm1765, %v1646, %v1790
    %v1816 = vsel %vm1766, %v1651, %v1791
    %v1817 = vsel %vm1767, %v1656, %v1792
    %v1818 = vsel %vm1768, %v1661, %v1793
    %v1819 = vsel %vm1769, %v1666, %v1794
    %v1820 = vsel %vm1770, %v1671, %v1795
    %v1821 = vsel %vm1771, %v1676, %v1796
    %v1822 = vsel %vm1772, %v1681, %v1797
    %v1823 = vsel %vm1773, %v1686, %v1798
    %v1824 = vsel %vm1774, %v1691, %v1799
    %v1825 = vsel %vm1775, %v1696, %v1800
    %v1826 = vsel %vm1776, %v1701, %v1801
    %v1827 = vsel %vm1777, %v1706, %v1802
    %v1828 = vsel %vm1778, %v1711, %v1803
    %v1829 = vsel %vm1779, %v1716, %v1804
    %v1830 = vsel %vm1780, %v1721, %v1805
    %v1831 = vsel %vm1781, %v1726, %v1806
    %v1832 = vsel %vm1782, %v1731, %v1807
    %v1833 = vsel %vm1783, %v1736, %v1808
    %v1834 = vsel %vm1784, %v1741, %v1809
    %v1835 = vsel %vm1785, %v1746, %v1810
    %v1836 = vsel %vm1786, %v1751, %v1811
    %v1837 = vsel %vm1787, %v1756, %v1812
    %v1838 = vsel %vm1788, %v1761, %v1813
    %v1839 = vld [vmem:[%s9] sm:$0x1]
    %v1841 = vlaneseq
    %v1842 = vshrl.u32 %v1841, 7
    %v1843 = vsub.s32 0, %v1842
    %v1844 = vrot.slane %v1839, %v1843
    %v1846 = vmul.f32 %v1814, %v1844
    %v1847 = vmul.f32 %v1815, %v1844
    %v1848 = vmul.f32 %v1816, %v1844
    %v1849 = vmul.f32 %v1817, %v1844
    %v1850 = vmul.f32 %v1818, %v1844
    %v1851 = vmul.f32 %v1819, %v1844
    %v1852 = vmul.f32 %v1820, %v1844
    %v1853 = vmul.f32 %v1821, %v1844
    %v1854 = vmul.f32 %v1822, %v1844
    %v1855 = vmul.f32 %v1823, %v1844
    %v1856 = vmul.f32 %v1824, %v1844
    %v1857 = vmul.f32 %v1825, %v1844
    %v1858 = vmul.f32 %v1826, %v1844
    %v1859 = vmul.f32 %v1827, %v1844
    %v1860 = vmul.f32 %v1828, %v1844
    %v1861 = vmul.f32 %v1829, %v1844
    %v1862 = vmul.f32 %v1830, %v1844
    %v1863 = vmul.f32 %v1831, %v1844
    %v1864 = vmul.f32 %v1832, %v1844
    %v1865 = vmul.f32 %v1833, %v1844
    %v1866 = vmul.f32 %v1834, %v1844
    %v1867 = vmul.f32 %v1835, %v1844
    %v1868 = vmul.f32 %v1836, %v1844
    %v1869 = vmul.f32 %v1837, %v1844
    %v1870 = vmul.f32 %v1838, %v1844
    %v1871 = vsel %vm130, %v1846, 0.0
    %1872 = vadd.xlane.f32.xlu0 %v1871
    %v1873 = vpop.xlane.xlu0 %1872
    %v1874 = vsel %vm130, %v1847, 0.0
    %1875 = vadd.xlane.f32.xlu0 %v1874
    %v1876 = vpop.xlane.xlu0 %1875
    %v1877 = vsel %vm130, %v1848, 0.0
    %1878 = vadd.xlane.f32.xlu0 %v1877
    %v1879 = vpop.xlane.xlu0 %1878
    %v1880 = vsel %vm130, %v1849, 0.0
    %1881 = vadd.xlane.f32.xlu0 %v1880
    %v1882 = vpop.xlane.xlu0 %1881
    %v1883 = vsel %vm130, %v1850, 0.0
    %1884 = vadd.xlane.f32.xlu0 %v1883
    %v1885 = vpop.xlane.xlu0 %1884
    %v1886 = vsel %vm130, %v1851, 0.0
    %1887 = vadd.xlane.f32.xlu0 %v1886
    %v1888 = vpop.xlane.xlu0 %1887
    %v1889 = vsel %vm130, %v1852, 0.0
    %1890 = vadd.xlane.f32.xlu0 %v1889
    %v1891 = vpop.xlane.xlu0 %1890
    %v1892 = vsel %vm130, %v1853, 0.0
    %1893 = vadd.xlane.f32.xlu0 %v1892
    %v1894 = vpop.xlane.xlu0 %1893
    %v1895 = vsel %vm130, %v1854, 0.0
    %1896 = vadd.xlane.f32.xlu0 %v1895
    %v1897 = vpop.xlane.xlu0 %1896
    %v1898 = vsel %vm130, %v1855, 0.0
    %1899 = vadd.xlane.f32.xlu0 %v1898
    %v1900 = vpop.xlane.xlu0 %1899
    %v1901 = vsel %vm130, %v1856, 0.0
    %1902 = vadd.xlane.f32.xlu0 %v1901
    %v1903 = vpop.xlane.xlu0 %1902
    %v1904 = vsel %vm130, %v1857, 0.0
    %1905 = vadd.xlane.f32.xlu0 %v1904
    %v1906 = vpop.xlane.xlu0 %1905
    %v1907 = vsel %vm130, %v1858, 0.0
    %1908 = vadd.xlane.f32.xlu0 %v1907
    %v1909 = vpop.xlane.xlu0 %1908
    %v1910 = vsel %vm130, %v1859, 0.0
    %1911 = vadd.xlane.f32.xlu0 %v1910
    %v1912 = vpop.xlane.xlu0 %1911
    %v1913 = vsel %vm130, %v1860, 0.0
    %1914 = vadd.xlane.f32.xlu0 %v1913
    %v1915 = vpop.xlane.xlu0 %1914
    %v1916 = vsel %vm130, %v1861, 0.0
    %1917 = vadd.xlane.f32.xlu0 %v1916
    %v1918 = vpop.xlane.xlu0 %1917
    %v1919 = vsel %vm130, %v1862, 0.0
    %1920 = vadd.xlane.f32.xlu0 %v1919
    %v1921 = vpop.xlane.xlu0 %1920
    %v1922 = vsel %vm130, %v1863, 0.0
    %1923 = vadd.xlane.f32.xlu0 %v1922
    %v1924 = vpop.xlane.xlu0 %1923
    %v1925 = vsel %vm130, %v1864, 0.0
    %1926 = vadd.xlane.f32.xlu0 %v1925
    %v1927 = vpop.xlane.xlu0 %1926
    %v1928 = vsel %vm130, %v1865, 0.0
    %1929 = vadd.xlane.f32.xlu0 %v1928
    %v1930 = vpop.xlane.xlu0 %1929
    %v1931 = vsel %vm130, %v1866, 0.0
    %1932 = vadd.xlane.f32.xlu0 %v1931
    %v1933 = vpop.xlane.xlu0 %1932
    %v1934 = vsel %vm130, %v1867, 0.0
    %1935 = vadd.xlane.f32.xlu0 %v1934
    %v1936 = vpop.xlane.xlu0 %1935
    %v1937 = vsel %vm130, %v1868, 0.0
    %1938 = vadd.xlane.f32.xlu0 %v1937
    %v1939 = vpop.xlane.xlu0 %1938
    %v1940 = vsel %vm130, %v1869, 0.0
    %1941 = vadd.xlane.f32.xlu0 %v1940
    %v1942 = vpop.xlane.xlu0 %1941
    %v1943 = vsel %vm130, %v1870, 0.0
    %1944 = vadd.xlane.f32.xlu0 %v1943
    %v1945 = vpop.xlane.xlu0 %1944
    %v1946 = vld [vmem:[#allocation5] sm:$0x1]
    %v1948 = vlaneseq
    %v1949 = vshrl.u32 %v1948, 7
    %v1950 = vsub.s32 0, %v1949
    %v1951 = vrot.slane %v1946, %v1950
    %v1953 = vadd.f32 %v1873, %v1951
    %v1954 = vadd.f32 %v1876, %v1951
    %v1955 = vadd.f32 %v1879, %v1951
    %v1956 = vadd.f32 %v1882, %v1951
    %v1957 = vadd.f32 %v1885, %v1951
    %v1958 = vadd.f32 %v1888, %v1951
    %v1959 = vadd.f32 %v1891, %v1951
    %v1960 = vadd.f32 %v1894, %v1951
    %v1961 = vadd.f32 %v1897, %v1951
    %v1962 = vadd.f32 %v1900, %v1951
    %v1963 = vadd.f32 %v1903, %v1951
    %v1964 = vadd.f32 %v1906, %v1951
    %v1965 = vadd.f32 %v1909, %v1951
    %v1966 = vadd.f32 %v1912, %v1951
    %v1967 = vadd.f32 %v1915, %v1951
    %v1968 = vadd.f32 %v1918, %v1951
    %v1969 = vadd.f32 %v1921, %v1951
    %v1970 = vadd.f32 %v1924, %v1951
    %v1971 = vadd.f32 %v1927, %v1951
    %v1972 = vadd.f32 %v1930, %v1951
    %v1973 = vadd.f32 %v1933, %v1951
    %v1974 = vadd.f32 %v1936, %v1951
    %v1975 = vadd.f32 %v1939, %v1951
    %v1976 = vadd.f32 %v1942, %v1951
    %v1977 = vadd.f32 %v1945, %v1951
    %v1978 = vld [vmem:[%s11] sm:$0xff]
    %v1979 = vld [vmem:[%s11 + $0x8] sm:$0xff]
    %v1980 = vld [vmem:[%s11 + $0x10] sm:$0xff]
    %v1981 = vld [vmem:[%s11 + $0x18] sm:$0xff]
    %v1982 = vld [vmem:[%s11 + $0x20] sm:$0xff]
    %v1983 = vld [vmem:[%s11 + $0x28] sm:$0xff]
    %v1984 = vld [vmem:[%s11 + $0x30] sm:$0xff]
    %v1985 = vld [vmem:[%s11 + $0x38] sm:$0xff]
    %v1986 = vld [vmem:[%s12] sm:$0x1]
    %v1988 = vlaneseq
    %v1989 = vshrl.u32 %v1988, 7
    %v1990 = vsub.s32 0, %v1989
    %v1991 = vrot.slane %v1986, %v1990
    %v1994 = vsel %vm130, %v1814, 0
    %v1997 = vsel %vm130, %v1815, 0
    %v2000 = vsel %vm130, %v1816, 0
    %v2003 = vsel %vm130, %v1817, 0
    %v2006 = vsel %vm130, %v1818, 0
    %v2009 = vsel %vm130, %v1819, 0
    %v2012 = vsel %vm130, %v1820, 0
    %v2015 = vsel %vm130, %v1821, 0
    %v2018 = vsel %vm130, %v1822, 0
    %v2021 = vsel %vm130, %v1823, 0
    %v2024 = vsel %vm130, %v1824, 0
    %v2027 = vsel %vm130, %v1825, 0
    %v2030 = vsel %vm130, %v1826, 0
    %v2033 = vsel %vm130, %v1827, 0
    %v2036 = vsel %vm130, %v1828, 0
    %v2039 = vsel %vm130, %v1829, 0
    %v2042 = vsel %vm130, %v1830, 0
    %v2045 = vsel %vm130, %v1831, 0
    %v2048 = vsel %vm130, %v1832, 0
    %v2051 = vsel %vm130, %v1833, 0
    %v2054 = vsel %vm130, %v1834, 0
    %v2057 = vsel %vm130, %v1835, 0
    %v2060 = vsel %vm130, %v1836, 0
    %v2063 = vsel %vm130, %v1837, 0
    %v2066 = vsel %vm130, %v1838, 0
    %2068 = vmatprep.subr.mxu0 0.0
    %2069 = vmatpush1.msra.mxu0 0.0
    %2070 = vmatprep.subr.mxu0 0.0
    %2071 = vmatpush1.msra.mxu0 0.0
    %2072 = vmatprep.subr.mxu0 0.0
    %2073 = vmatpush1.msra.mxu0 0.0
    %2074 = vmatprep.subr.mxu0 0.0
    %2075 = vmatpush1.msra.mxu0 0.0
    %2076 = vmatprep.subr.mxu0 0.0
    %2077 = vmatpush1.msra.mxu0 0.0
    %2078 = vmatprep.subr.mxu0 0.0
    %2079 = vmatpush1.msra.mxu0 0.0
    %2080 = vmatprep.subr.mxu0 0.0
    %2081 = vmatpush1.msra.mxu0 0.0
    %2082 = vmatprep.subr.mxu0 0.0
    %2083 = vmatpush1.msra.mxu0 0.0
    %2084 = vmatprep.subr.mxu0 0.0
    %2085 = vmatpush1.msra.mxu0 %v1985
    %2086 = vmatprep.subr.mxu0 0.0
    %2087 = vmatpush1.msra.mxu0 %v1984
    %2088 = vmatprep.subr.mxu0 0.0
    %2089 = vmatpush1.msra.mxu0 %v1983
    %2090 = vmatprep.subr.mxu0 0.0
    %2091 = vmatpush1.msra.mxu0 %v1982
    %2092 = vmatprep.subr.mxu0 0.0
    %2093 = vmatpush1.msra.mxu0 %v1981
    %2094 = vmatprep.subr.mxu0 0.0
    %2095 = vmatpush1.msra.mxu0 %v1980
    %2096 = vmatprep.subr.mxu0 0.0
    %2097 = vmatpush1.msra.mxu0 %v1979
    %2098 = vmatprep.subr.mxu0 0.0
    %2099 = vmatpush1.msra.mxu0 %v1978
    %2100 = vmatprep.subr.mxu0 0.0
    %2101 = vmatpush2.msra.mxu0 0.0
    %2102 = vmatprep.subr.mxu0 0.0
    %2103 = vmatpush2.msra.mxu0 0.0
    %2104 = vmatprep.subr.mxu0 0.0
    %2105 = vmatpush2.msra.mxu0 0.0
    %2106 = vmatprep.subr.mxu0 0.0
    %2107 = vmatpush2.msra.mxu0 0.0
    %2108 = vmatprep.subr.mxu0 0.0
    %2109 = vmatpush2.msra.mxu0 0.0
    %2110 = vmatprep.subr.mxu0 0.0
    %2111 = vmatpush2.msra.mxu0 0.0
    %2112 = vmatprep.subr.mxu0 0.0
    %2113 = vmatpush2.msra.mxu0 0.0
    %2114 = vmatprep.subr.mxu0 0.0
    %2115 = vmatpush2.msra.mxu0 0.0
    %2116 = vmatprep.subr.mxu0 0.0
    %2117 = vmatpush2.msra.mxu0 0.0
    %2118 = vmatprep.subr.mxu0 0.0
    %2119 = vmatpush2.msra.mxu0 0.0
    %2120 = vmatprep.subr.mxu0 0.0
    %2121 = vmatpush2.msra.mxu0 0.0
    %2122 = vmatprep.subr.mxu0 0.0
    %2123 = vmatpush2.msra.mxu0 0.0
    %2124 = vmatprep.subr.mxu0 0.0
    %2125 = vmatpush2.msra.mxu0 0.0
    %2126 = vmatprep.subr.mxu0 0.0
    %2127 = vmatpush2.msra.mxu0 0.0
    %2128 = vmatprep.subr.mxu0 0.0
    %2129 = vmatpush2.msra.mxu0 0.0
    %2130 = vmatprep.subr.mxu0 0.0
    %2131 = vmatpush2.msra.mxu0 0.0
    %2132 = vmatprep.mubr.f32.mxu0 0.0
    %2133 = vmatmul.mubr.f32.gmra.mxu0 %v1994
    %v2134 = vpop.f32.mrf.mxu0
    %v2135 = vadd.f32 %v1991, %v2134
    %v2136 = vpop.f32.mrf.mxu0
    %2137 = vmatprep.mubr.f32.mxu0 0.0
    %2138 = vmatmul.mubr.f32.gmra.mxu0 %v1997
    %v2139 = vpop.f32.mrf.mxu0
    %v2140 = vadd.f32 %v1991, %v2139
    %v2141 = vpop.f32.mrf.mxu0
    %2142 = vmatprep.mubr.f32.mxu0 0.0
    %2143 = vmatmul.mubr.f32.gmra.mxu0 %v2000
    %v2144 = vpop.f32.mrf.mxu0
    %v2145 = vadd.f32 %v1991, %v2144
    %v2146 = vpop.f32.mrf.mxu0
    %2147 = vmatprep.mubr.f32.mxu0 0.0
    %2148 = vmatmul.mubr.f32.gmra.mxu0 %v2003
    %v2149 = vpop.f32.mrf.mxu0
    %v2150 = vadd.f32 %v1991, %v2149
    %v2151 = vpop.f32.mrf.mxu0
    %2152 = vmatprep.mubr.f32.mxu0 0.0
    %2153 = vmatmul.mubr.f32.gmra.mxu0 %v2006
    %v2154 = vpop.f32.mrf.mxu0
    %v2155 = vadd.f32 %v1991, %v2154
    %v2156 = vpop.f32.mrf.mxu0
    %2157 = vmatprep.mubr.f32.mxu0 0.0
    %2158 = vmatmul.mubr.f32.gmra.mxu0 %v2009
    %v2159 = vpop.f32.mrf.mxu0
    %v2160 = vadd.f32 %v1991, %v2159
    %v2161 = vpop.f32.mrf.mxu0
    %2162 = vmatprep.mubr.f32.mxu0 0.0
    %2163 = vmatmul.mubr.f32.gmra.mxu0 %v2012
    %v2164 = vpop.f32.mrf.mxu0
    %v2165 = vadd.f32 %v1991, %v2164
    %v2166 = vpop.f32.mrf.mxu0
    %2167 = vmatprep.mubr.f32.mxu0 0.0
    %2168 = vmatmul.mubr.f32.gmra.mxu0 %v2015
    %v2169 = vpop.f32.mrf.mxu0
    %v2170 = vadd.f32 %v1991, %v2169
    %v2171 = vpop.f32.mrf.mxu0
    %2172 = vmatprep.mubr.f32.mxu0 0.0
    %2173 = vmatmul.mubr.f32.gmra.mxu0 %v2018
    %v2174 = vpop.f32.mrf.mxu0
    %v2175 = vadd.f32 %v1991, %v2174
    %v2176 = vpop.f32.mrf.mxu0
    %2177 = vmatprep.mubr.f32.mxu0 0.0
    %2178 = vmatmul.mubr.f32.gmra.mxu0 %v2021
    %v2179 = vpop.f32.mrf.mxu0
    %v2180 = vadd.f32 %v1991, %v2179
    %v2181 = vpop.f32.mrf.mxu0
    %2182 = vmatprep.mubr.f32.mxu0 0.0
    %2183 = vmatmul.mubr.f32.gmra.mxu0 %v2024
    %v2184 = vpop.f32.mrf.mxu0
    %v2185 = vadd.f32 %v1991, %v2184
    %v2186 = vpop.f32.mrf.mxu0
    %2187 = vmatprep.mubr.f32.mxu0 0.0
    %2188 = vmatmul.mubr.f32.gmra.mxu0 %v2027
    %v2189 = vpop.f32.mrf.mxu0
    %v2190 = vadd.f32 %v1991, %v2189
    %v2191 = vpop.f32.mrf.mxu0
    %2192 = vmatprep.mubr.f32.mxu0 0.0
    %2193 = vmatmul.mubr.f32.gmra.mxu0 %v2030
    %v2194 = vpop.f32.mrf.mxu0
    %v2195 = vadd.f32 %v1991, %v2194
    %v2196 = vpop.f32.mrf.mxu0
    %2197 = vmatprep.mubr.f32.mxu0 0.0
    %2198 = vmatmul.mubr.f32.gmra.mxu0 %v2033
    %v2199 = vpop.f32.mrf.mxu0
    %v2200 = vadd.f32 %v1991, %v2199
    %v2201 = vpop.f32.mrf.mxu0
    %2202 = vmatprep.mubr.f32.mxu0 0.0
    %2203 = vmatmul.mubr.f32.gmra.mxu0 %v2036
    %v2204 = vpop.f32.mrf.mxu0
    %v2205 = vadd.f32 %v1991, %v2204
    %v2206 = vpop.f32.mrf.mxu0
    %2207 = vmatprep.mubr.f32.mxu0 0.0
    %2208 = vmatmul.mubr.f32.gmra.mxu0 %v2039
    %v2209 = vpop.f32.mrf.mxu0
    %v2210 = vadd.f32 %v1991, %v2209
    %v2211 = vpop.f32.mrf.mxu0
    %2212 = vmatprep.mubr.f32.mxu0 0.0
    %2213 = vmatmul.mubr.f32.gmra.mxu0 %v2042
    %v2214 = vpop.f32.mrf.mxu0
    %v2215 = vadd.f32 %v1991, %v2214
    %v2216 = vpop.f32.mrf.mxu0
    %2217 = vmatprep.mubr.f32.mxu0 0.0
    %2218 = vmatmul.mubr.f32.gmra.mxu0 %v2045
    %v2219 = vpop.f32.mrf.mxu0
    %v2220 = vadd.f32 %v1991, %v2219
    %v2221 = vpop.f32.mrf.mxu0
    %2222 = vmatprep.mubr.f32.mxu0 0.0
    %2223 = vmatmul.mubr.f32.gmra.mxu0 %v2048
    %v2224 = vpop.f32.mrf.mxu0
    %v2225 = vadd.f32 %v1991, %v2224
    %v2226 = vpop.f32.mrf.mxu0
    %2227 = vmatprep.mubr.f32.mxu0 0.0
    %2228 = vmatmul.mubr.f32.gmra.mxu0 %v2051
    %v2229 = vpop.f32.mrf.mxu0
    %v2230 = vadd.f32 %v1991, %v2229
    %v2231 = vpop.f32.mrf.mxu0
    %2232 = vmatprep.mubr.f32.mxu0 0.0
    %2233 = vmatmul.mubr.f32.gmra.mxu0 %v2054
    %v2234 = vpop.f32.mrf.mxu0
    %v2235 = vadd.f32 %v1991, %v2234
    %v2236 = vpop.f32.mrf.mxu0
    %2237 = vmatprep.mubr.f32.mxu0 0.0
    %2238 = vmatmul.mubr.f32.gmra.mxu0 %v2057
    %v2239 = vpop.f32.mrf.mxu0
    %v2240 = vadd.f32 %v1991, %v2239
    %v2241 = vpop.f32.mrf.mxu0
    %2242 = vmatprep.mubr.f32.mxu0 0.0
    %2243 = vmatmul.mubr.f32.gmra.mxu0 %v2060
    %v2244 = vpop.f32.mrf.mxu0
    %v2245 = vadd.f32 %v1991, %v2244
    %v2246 = vpop.f32.mrf.mxu0
    %2247 = vmatprep.mubr.f32.mxu0 0.0
    %2248 = vmatmul.mubr.f32.gmra.mxu0 %v2063
    %v2249 = vpop.f32.mrf.mxu0
    %v2250 = vadd.f32 %v1991, %v2249
    %v2251 = vpop.f32.mrf.mxu0
    %2252 = vmatprep.mubr.f32.mxu0 0.0
    %2253 = vmatmul.mubr.f32.gmra.mxu0 %v2066
    %v2254 = vpop.f32.mrf.mxu0
    %v2255 = vadd.f32 %v1991, %v2254
    %v2256 = vpop.f32.mrf.mxu0
    %2257 = vdwg.mxu0
    %v2258 = vand.u32 2147483647, %v2135
    %v2259 = vand.u32 2147483647, %v2140
    %v2260 = vand.u32 2147483647, %v2145
    %v2261 = vand.u32 2147483647, %v2150
    %v2262 = vand.u32 2147483647, %v2155
    %v2263 = vand.u32 2147483647, %v2160
    %v2264 = vand.u32 2147483647, %v2165
    %v2265 = vand.u32 2147483647, %v2170
    %v2266 = vand.u32 2147483647, %v2175
    %v2267 = vand.u32 2147483647, %v2180
    %v2268 = vand.u32 2147483647, %v2185
    %v2269 = vand.u32 2147483647, %v2190
    %v2270 = vand.u32 2147483647, %v2195
    %v2271 = vand.u32 2147483647, %v2200
    %v2272 = vand.u32 2147483647, %v2205
    %v2273 = vand.u32 2147483647, %v2210
    %v2274 = vand.u32 2147483647, %v2215
    %v2275 = vand.u32 2147483647, %v2220
    %v2276 = vand.u32 2147483647, %v2225
    %v2277 = vand.u32 2147483647, %v2230
    %v2278 = vand.u32 2147483647, %v2235
    %v2279 = vand.u32 2147483647, %v2240
    %v2280 = vand.u32 2147483647, %v2245
    %v2281 = vand.u32 2147483647, %v2250
    %v2282 = vand.u32 2147483647, %v2255
    %v2283 = vsub.f32 0.0, %v2258
    %v2284 = vsub.f32 0.0, %v2259
    %v2285 = vsub.f32 0.0, %v2260
    %v2286 = vsub.f32 0.0, %v2261
    %v2287 = vsub.f32 0.0, %v2262
    %v2288 = vsub.f32 0.0, %v2263
    %v2289 = vsub.f32 0.0, %v2264
    %v2290 = vsub.f32 0.0, %v2265
    %v2291 = vsub.f32 0.0, %v2266
    %v2292 = vsub.f32 0.0, %v2267
    %v2293 = vsub.f32 0.0, %v2268
    %v2294 = vsub.f32 0.0, %v2269
    %v2295 = vsub.f32 0.0, %v2270
    %v2296 = vsub.f32 0.0, %v2271
    %v2297 = vsub.f32 0.0, %v2272
    %v2298 = vsub.f32 0.0, %v2273
    %v2299 = vsub.f32 0.0, %v2274
    %v2300 = vsub.f32 0.0, %v2275
    %v2301 = vsub.f32 0.0, %v2276
    %v2302 = vsub.f32 0.0, %v2277
    %v2303 = vsub.f32 0.0, %v2278
    %v2304 = vsub.f32 0.0, %v2279
    %v2305 = vsub.f32 0.0, %v2280
    %v2306 = vsub.f32 0.0, %v2281
    %v2307 = vsub.f32 0.0, %v2282
    %v2308 = vmul.f32 %v2283, 1.442695
    %v2309 = vpow.pop %v2308
    %v2310 = vmul.f32 %v2284, 1.442695
    %v2311 = vpow.pop %v2310
    %v2312 = vmul.f32 %v2285, 1.442695
    %v2313 = vpow.pop %v2312
    %v2314 = vmul.f32 %v2286, 1.442695
    %v2315 = vpow.pop %v2314
    %v2316 = vmul.f32 %v2287, 1.442695
    %v2317 = vpow.pop %v2316
    %v2318 = vmul.f32 %v2288, 1.442695
    %v2319 = vpow.pop %v2318
    %v2320 = vmul.f32 %v2289, 1.442695
    %v2321 = vpow.pop %v2320
    %v2322 = vmul.f32 %v2290, 1.442695
    %v2323 = vpow.pop %v2322
    %v2324 = vmul.f32 %v2291, 1.442695
    %v2325 = vpow.pop %v2324
    %v2326 = vmul.f32 %v2292, 1.442695
    %v2327 = vpow.pop %v2326
    %v2328 = vmul.f32 %v2293, 1.442695
    %v2329 = vpow.pop %v2328
    %v2330 = vmul.f32 %v2294, 1.442695
    %v2331 = vpow.pop %v2330
    %v2332 = vmul.f32 %v2295, 1.442695
    %v2333 = vpow.pop %v2332
    %v2334 = vmul.f32 %v2296, 1.442695
    %v2335 = vpow.pop %v2334
    %v2336 = vmul.f32 %v2297, 1.442695
    %v2337 = vpow.pop %v2336
    %v2338 = vmul.f32 %v2298, 1.442695
    %v2339 = vpow.pop %v2338
    %v2340 = vmul.f32 %v2299, 1.442695
    %v2341 = vpow.pop %v2340
    %v2342 = vmul.f32 %v2300, 1.442695
    %v2343 = vpow.pop %v2342
    %v2344 = vmul.f32 %v2301, 1.442695
    %v2345 = vpow.pop %v2344
    %v2346 = vmul.f32 %v2302, 1.442695
    %v2347 = vpow.pop %v2346
    %v2348 = vmul.f32 %v2303, 1.442695
    %v2349 = vpow.pop %v2348
    %v2350 = vmul.f32 %v2304, 1.442695
    %v2351 = vpow.pop %v2350
    %v2352 = vmul.f32 %v2305, 1.442695
    %v2353 = vpow.pop %v2352
    %v2354 = vmul.f32 %v2306, 1.442695
    %v2355 = vpow.pop %v2354
    %v2356 = vmul.f32 %v2307, 1.442695
    %v2357 = vpow.pop %v2356
    %v2358 = vadd.f32 %v2309, 1.0
    %v2359 = vadd.f32 %v2311, 1.0
    %v2360 = vadd.f32 %v2313, 1.0
    %v2361 = vadd.f32 %v2315, 1.0
    %v2362 = vadd.f32 %v2317, 1.0
    %v2363 = vadd.f32 %v2319, 1.0
    %v2364 = vadd.f32 %v2321, 1.0
    %v2365 = vadd.f32 %v2323, 1.0
    %v2366 = vadd.f32 %v2325, 1.0
    %v2367 = vadd.f32 %v2327, 1.0
    %v2368 = vadd.f32 %v2329, 1.0
    %v2369 = vadd.f32 %v2331, 1.0
    %v2370 = vadd.f32 %v2333, 1.0
    %v2371 = vadd.f32 %v2335, 1.0
    %v2372 = vadd.f32 %v2337, 1.0
    %v2373 = vadd.f32 %v2339, 1.0
    %v2374 = vadd.f32 %v2341, 1.0
    %v2375 = vadd.f32 %v2343, 1.0
    %v2376 = vadd.f32 %v2345, 1.0
    %v2377 = vadd.f32 %v2347, 1.0
    %v2378 = vadd.f32 %v2349, 1.0
    %v2379 = vadd.f32 %v2351, 1.0
    %v2380 = vadd.f32 %v2353, 1.0
    %v2381 = vadd.f32 %v2355, 1.0
    %v2382 = vadd.f32 %v2357, 1.0
    %v2383 = vrcp.pop %v2358
    %v2384 = vmul.f32 1.0, %v2383
    %v2385 = vrcp.pop %v2359
    %v2386 = vmul.f32 1.0, %v2385
    %v2387 = vrcp.pop %v2360
    %v2388 = vmul.f32 1.0, %v2387
    %v2389 = vrcp.pop %v2361
    %v2390 = vmul.f32 1.0, %v2389
    %v2391 = vrcp.pop %v2362
    %v2392 = vmul.f32 1.0, %v2391
    %v2393 = vrcp.pop %v2363
    %v2394 = vmul.f32 1.0, %v2393
    %v2395 = vrcp.pop %v2364
    %v2396 = vmul.f32 1.0, %v2395
    %v2397 = vrcp.pop %v2365
    %v2398 = vmul.f32 1.0, %v2397
    %v2399 = vrcp.pop %v2366
    %v2400 = vmul.f32 1.0, %v2399
    %v2401 = vrcp.pop %v2367
    %v2402 = vmul.f32 1.0, %v2401
    %v2403 = vrcp.pop %v2368
    %v2404 = vmul.f32 1.0, %v2403
    %v2405 = vrcp.pop %v2369
    %v2406 = vmul.f32 1.0, %v2405
    %v2407 = vrcp.pop %v2370
    %v2408 = vmul.f32 1.0, %v2407
    %v2409 = vrcp.pop %v2371
    %v2410 = vmul.f32 1.0, %v2409
    %v2411 = vrcp.pop %v2372
    %v2412 = vmul.f32 1.0, %v2411
    %v2413 = vrcp.pop %v2373
    %v2414 = vmul.f32 1.0, %v2413
    %v2415 = vrcp.pop %v2374
    %v2416 = vmul.f32 1.0, %v2415
    %v2417 = vrcp.pop %v2375
    %v2418 = vmul.f32 1.0, %v2417
    %v2419 = vrcp.pop %v2376
    %v2420 = vmul.f32 1.0, %v2419
    %v2421 = vrcp.pop %v2377
    %v2422 = vmul.f32 1.0, %v2421
    %v2423 = vrcp.pop %v2378
    %v2424 = vmul.f32 1.0, %v2423
    %v2425 = vrcp.pop %v2379
    %v2426 = vmul.f32 1.0, %v2425
    %v2427 = vrcp.pop %v2380
    %v2428 = vmul.f32 1.0, %v2427
    %v2429 = vrcp.pop %v2381
    %v2430 = vmul.f32 1.0, %v2429
    %v2431 = vrcp.pop %v2382
    %v2432 = vmul.f32 1.0, %v2431
    %vm2433 = vcmp.ge.f32.partialorder %v2135, 0.0
    %vm2434 = vcmp.ge.f32.partialorder %v2140, 0.0
    %vm2435 = vcmp.ge.f32.partialorder %v2145, 0.0
    %vm2436 = vcmp.ge.f32.partialorder %v2150, 0.0
    %vm2437 = vcmp.ge.f32.partialorder %v2155, 0.0
    %vm2438 = vcmp.ge.f32.partialorder %v2160, 0.0
    %vm2439 = vcmp.ge.f32.partialorder %v2165, 0.0
    %vm2440 = vcmp.ge.f32.partialorder %v2170, 0.0
    %vm2441 = vcmp.ge.f32.partialorder %v2175, 0.0
    %vm2442 = vcmp.ge.f32.partialorder %v2180, 0.0
    %vm2443 = vcmp.ge.f32.partialorder %v2185, 0.0
    %vm2444 = vcmp.ge.f32.partialorder %v2190, 0.0
    %vm2445 = vcmp.ge.f32.partialorder %v2195, 0.0
    %vm2446 = vcmp.ge.f32.partialorder %v2200, 0.0
    %vm2447 = vcmp.ge.f32.partialorder %v2205, 0.0
    %vm2448 = vcmp.ge.f32.partialorder %v2210, 0.0
    %vm2449 = vcmp.ge.f32.partialorder %v2215, 0.0
    %vm2450 = vcmp.ge.f32.partialorder %v2220, 0.0
    %vm2451 = vcmp.ge.f32.partialorder %v2225, 0.0
    %vm2452 = vcmp.ge.f32.partialorder %v2230, 0.0
    %vm2453 = vcmp.ge.f32.partialorder %v2235, 0.0
    %vm2454 = vcmp.ge.f32.partialorder %v2240, 0.0
    %vm2455 = vcmp.ge.f32.partialorder %v2245, 0.0
    %vm2456 = vcmp.ge.f32.partialorder %v2250, 0.0
    %vm2457 = vcmp.ge.f32.partialorder %v2255, 0.0
    %v2458 = vmul.f32 %v2309, %v2384
    %v2459 = vmul.f32 %v2311, %v2386
    %v2460 = vmul.f32 %v2313, %v2388
    %v2461 = vmul.f32 %v2315, %v2390
    %v2462 = vmul.f32 %v2317, %v2392
    %v2463 = vmul.f32 %v2319, %v2394
    %v2464 = vmul.f32 %v2321, %v2396
    %v2465 = vmul.f32 %v2323, %v2398
    %v2466 = vmul.f32 %v2325, %v2400
    %v2467 = vmul.f32 %v2327, %v2402
    %v2468 = vmul.f32 %v2329, %v2404
    %v2469 = vmul.f32 %v2331, %v2406
    %v2470 = vmul.f32 %v2333, %v2408
    %v2471 = vmul.f32 %v2335, %v2410
    %v2472 = vmul.f32 %v2337, %v2412
    %v2473 = vmul.f32 %v2339, %v2414
    %v2474 = vmul.f32 %v2341, %v2416
    %v2475 = vmul.f32 %v2343, %v2418
    %v2476 = vmul.f32 %v2345, %v2420
    %v2477 = vmul.f32 %v2347, %v2422
    %v2478 = vmul.f32 %v2349, %v2424
    %v2479 = vmul.f32 %v2351, %v2426
    %v2480 = vmul.f32 %v2353, %v2428
    %v2481 = vmul.f32 %v2355, %v2430
    %v2482 = vmul.f32 %v2357, %v2432
    %v2483 = vsel %vm2433, %v2384, %v2458
    %v2484 = vsel %vm2434, %v2386, %v2459
    %v2485 = vsel %vm2435, %v2388, %v2460
    %v2486 = vsel %vm2436, %v2390, %v2461
    %v2487 = vsel %vm2437, %v2392, %v2462
    %v2488 = vsel %vm2438, %v2394, %v2463
    %v2489 = vsel %vm2439, %v2396, %v2464
    %v2490 = vsel %vm2440, %v2398, %v2465
    %v2491 = vsel %vm2441, %v2400, %v2466
    %v2492 = vsel %vm2442, %v2402, %v2467
    %v2493 = vsel %vm2443, %v2404, %v2468
    %v2494 = vsel %vm2444, %v2406, %v2469
    %v2495 = vsel %vm2445, %v2408, %v2470
    %v2496 = vsel %vm2446, %v2410, %v2471
    %v2497 = vsel %vm2447, %v2412, %v2472
    %v2498 = vsel %vm2448, %v2414, %v2473
    %v2499 = vsel %vm2449, %v2416, %v2474
    %v2500 = vsel %vm2450, %v2418, %v2475
    %v2501 = vsel %vm2451, %v2420, %v2476
    %v2502 = vsel %vm2452, %v2422, %v2477
    %v2503 = vsel %vm2453, %v2424, %v2478
    %v2504 = vsel %vm2454, %v2426, %v2479
    %v2505 = vsel %vm2455, %v2428, %v2480
    %v2506 = vsel %vm2456, %v2430, %v2481
    %v2507 = vsel %vm2457, %v2432, %v2482
    %v2508 = vmul.f32 %v801, %v2483
    %v2509 = vmul.f32 %v802, %v2484
    %v2510 = vmul.f32 %v803, %v2485
    %v2511 = vmul.f32 %v804, %v2486
    %v2512 = vmul.f32 %v805, %v2487
    %v2513 = vmul.f32 %v806, %v2488
    %v2514 = vmul.f32 %v807, %v2489
    %v2515 = vmul.f32 %v808, %v2490
    %v2516 = vmul.f32 %v809, %v2491
    %v2517 = vmul.f32 %v810, %v2492
    %v2518 = vmul.f32 %v811, %v2493
    %v2519 = vmul.f32 %v812, %v2494
    %v2520 = vmul.f32 %v813, %v2495
    %v2521 = vmul.f32 %v814, %v2496
    %v2522 = vmul.f32 %v815, %v2497
    %v2523 = vmul.f32 %v816, %v2498
    %v2524 = vmul.f32 %v817, %v2499
    %v2525 = vmul.f32 %v818, %v2500
    %v2526 = vmul.f32 %v819, %v2501
    %v2527 = vmul.f32 %v820, %v2502
    %v2528 = vmul.f32 %v821, %v2503
    %v2529 = vmul.f32 %v822, %v2504
    %v2530 = vmul.f32 %v823, %v2505
    %v2531 = vmul.f32 %v824, %v2506
    %v2532 = vmul.f32 %v825, %v2507
    %v2533 = vlaneseq
    %v2534 = vshrl.u32 %v2533, 7
    %v2535 = vadd.s32 %v2534, 8
    %v2536 = vadd.s32 %v2534, 16
    %v2537 = vadd.s32 %v2534, 24
    %v2538 = vadd.s32 %v2534, 32
    %v2539 = vadd.s32 %v2534, 40
    %v2540 = vadd.s32 %v2534, 48
    %v2541 = vadd.s32 %v2534, 56
    %v2542 = vadd.s32 %v2534, 64
    %v2543 = vadd.s32 %v2534, 72
    %v2544 = vadd.s32 %v2534, 80
    %v2545 = vadd.s32 %v2534, 88
    %v2546 = vadd.s32 %v2534, 96
    %v2547 = vadd.s32 %v2534, 104
    %v2548 = vadd.s32 %v2534, 112
    %v2549 = vadd.s32 %v2534, 120
    %v2550 = vadd.s32 %v2534, 128
    %v2551 = vadd.s32 %v2534, 136
    %v2552 = vadd.s32 %v2534, 144
    %v2553 = vadd.s32 %v2534, 152
    %v2554 = vadd.s32 %v2534, 160
    %v2555 = vadd.s32 %v2534, 168
    %v2556 = vadd.s32 %v2534, 176
    %v2557 = vadd.s32 %v2534, 184
    %v2558 = vadd.s32 %v2534, 192
    %s2559 = smul.u32 0, 200
    %v2560 = vstv %s2559
    %v2561 = vadd.s32 %v2534, %v2560
    %v2562 = vadd.s32 %v2535, %v2560
    %v2563 = vadd.s32 %v2536, %v2560
    %v2564 = vadd.s32 %v2537, %v2560
    %v2565 = vadd.s32 %v2538, %v2560
    %v2566 = vadd.s32 %v2539, %v2560
    %v2567 = vadd.s32 %v2540, %v2560
    %v2568 = vadd.s32 %v2541, %v2560
    %v2569 = vadd.s32 %v2542, %v2560
    %v2570 = vadd.s32 %v2543, %v2560
    %v2571 = vadd.s32 %v2544, %v2560
    %v2572 = vadd.s32 %v2545, %v2560
    %v2573 = vadd.s32 %v2546, %v2560
    %v2574 = vadd.s32 %v2547, %v2560
    %v2575 = vadd.s32 %v2548, %v2560
    %v2576 = vadd.s32 %v2549, %v2560
    %v2577 = vadd.s32 %v2550, %v2560
    %v2578 = vadd.s32 %v2551, %v2560
    %v2579 = vadd.s32 %v2552, %v2560
    %v2580 = vadd.s32 %v2553, %v2560
    %v2581 = vadd.s32 %v2554, %v2560
    %v2582 = vadd.s32 %v2555, %v2560
    %v2583 = vadd.s32 %v2556, %v2560
    %v2584 = vadd.s32 %v2557, %v2560
    %v2585 = vadd.s32 %v2558, %v2560
    %vm2586 = vcmp.lt.s32.totalorder %v2561, 200
    %vm2587 = vcmp.lt.s32.totalorder %v2562, 200
    %vm2588 = vcmp.lt.s32.totalorder %v2563, 200
    %vm2589 = vcmp.lt.s32.totalorder %v2564, 200
    %vm2590 = vcmp.lt.s32.totalorder %v2565, 200
    %vm2591 = vcmp.lt.s32.totalorder %v2566, 200
    %vm2592 = vcmp.lt.s32.totalorder %v2567, 200
    %vm2593 = vcmp.lt.s32.totalorder %v2568, 200
    %vm2594 = vcmp.lt.s32.totalorder %v2569, 200
    %vm2595 = vcmp.lt.s32.totalorder %v2570, 200
    %vm2596 = vcmp.lt.s32.totalorder %v2571, 200
    %vm2597 = vcmp.lt.s32.totalorder %v2572, 200
    %vm2598 = vcmp.lt.s32.totalorder %v2573, 200
    %vm2599 = vcmp.lt.s32.totalorder %v2574, 200
    %vm2600 = vcmp.lt.s32.totalorder %v2575, 200
    %vm2601 = vcmp.lt.s32.totalorder %v2576, 200
    %vm2602 = vcmp.lt.s32.totalorder %v2577, 200
    %vm2603 = vcmp.lt.s32.totalorder %v2578, 200
    %vm2604 = vcmp.lt.s32.totalorder %v2579, 200
    %vm2605 = vcmp.lt.s32.totalorder %v2580, 200
    %vm2606 = vcmp.lt.s32.totalorder %v2581, 200
    %vm2607 = vcmp.lt.s32.totalorder %v2582, 200
    %vm2608 = vcmp.lt.s32.totalorder %v2583, 200
    %vm2609 = vcmp.lt.s32.totalorder %v2584, 200
    %vm2610 = vcmp.lt.s32.totalorder %v2585, 200
    %v2611 = vsel %vm2586, %v1953, -1e+30
    %v2612 = vsel %vm2587, %v1954, -1e+30
    %v2613 = vsel %vm2588, %v1955, -1e+30
    %v2614 = vsel %vm2589, %v1956, -1e+30
    %v2615 = vsel %vm2590, %v1957, -1e+30
    %v2616 = vsel %vm2591, %v1958, -1e+30
    %v2617 = vsel %vm2592, %v1959, -1e+30
    %v2618 = vsel %vm2593, %v1960, -1e+30
    %v2619 = vsel %vm2594, %v1961, -1e+30
    %v2620 = vsel %vm2595, %v1962, -1e+30
    %v2621 = vsel %vm2596, %v1963, -1e+30
    %v2622 = vsel %vm2597, %v1964, -1e+30
    %v2623 = vsel %vm2598, %v1965, -1e+30
    %v2624 = vsel %vm2599, %v1966, -1e+30
    %v2625 = vsel %vm2600, %v1967, -1e+30
    %v2626 = vsel %vm2601, %v1968, -1e+30
    %v2627 = vsel %vm2602, %v1969, -1e+30
    %v2628 = vsel %vm2603, %v1970, -1e+30
    %v2629 = vsel %vm2604, %v1971, -1e+30
    %v2630 = vsel %vm2605, %v1972, -1e+30
    %v2631 = vsel %vm2606, %v1973, -1e+30
    %v2632 = vsel %vm2607, %v1974, -1e+30
    %v2633 = vsel %vm2608, %v1975, -1e+30
    %v2634 = vsel %vm2609, %v1976, -1e+30
    %v2635 = vsel %vm2610, %v1977, -1e+30
    %v2636 = vld [vmem:[#allocation2] sm:$0x1]
    %vm2637 = vcmask 7168
    %v2638 = vsel %vm2637, %v2611, -inf
    %v2639 = vsel %vm2637, %v2612, -inf
    %v2640 = vsel %vm2637, %v2613, -inf
    %v2641 = vsel %vm2637, %v2614, -inf
    %v2642 = vsel %vm2637, %v2615, -inf
    %v2643 = vmax.f32 %v2638, %v2642
    %v2644 = vsel %vm2637, %v2616, -inf
    %v2645 = vmax.f32 %v2639, %v2644
    %v2646 = vsel %vm2637, %v2617, -inf
    %v2647 = vmax.f32 %v2640, %v2646
    %v2648 = vsel %vm2637, %v2618, -inf
    %v2649 = vmax.f32 %v2641, %v2648
    %v2650 = vsel %vm2637, %v2619, -inf
    %v2651 = vmax.f32 %v2643, %v2650
    %v2652 = vsel %vm2637, %v2620, -inf
    %v2653 = vmax.f32 %v2645, %v2652
    %v2654 = vsel %vm2637, %v2621, -inf
    %v2655 = vmax.f32 %v2647, %v2654
    %v2656 = vsel %vm2637, %v2622, -inf
    %v2657 = vmax.f32 %v2649, %v2656
    %v2658 = vsel %vm2637, %v2623, -inf
    %v2659 = vmax.f32 %v2651, %v2658
    %v2660 = vsel %vm2637, %v2624, -inf
    %v2661 = vmax.f32 %v2653, %v2660
    %v2662 = vsel %vm2637, %v2625, -inf
    %v2663 = vmax.f32 %v2655, %v2662
    %v2664 = vsel %vm2637, %v2626, -inf
    %v2665 = vmax.f32 %v2657, %v2664
    %v2666 = vsel %vm2637, %v2627, -inf
    %v2667 = vmax.f32 %v2659, %v2666
    %v2668 = vsel %vm2637, %v2628, -inf
    %v2669 = vmax.f32 %v2661, %v2668
    %v2670 = vsel %vm2637, %v2629, -inf
    %v2671 = vmax.f32 %v2663, %v2670
    %v2672 = vsel %vm2637, %v2630, -inf
    %v2673 = vmax.f32 %v2665, %v2672
    %v2674 = vsel %vm2637, %v2631, -inf
    %v2675 = vmax.f32 %v2667, %v2674
    %v2676 = vsel %vm2637, %v2632, -inf
    %v2677 = vmax.f32 %v2669, %v2676
    %v2678 = vsel %vm2637, %v2633, -inf
    %v2679 = vmax.f32 %v2671, %v2678
    %v2680 = vsel %vm2637, %v2634, -inf
    %v2681 = vmax.f32 %v2673, %v2680
    %v2682 = vsel %vm2637, %v2635, -inf
    %v2683 = vmax.f32 %v2675, %v2682
    %v2684 = vmax.f32 %v2683, %v2677
    %v2685 = vmax.f32 %v2679, %v2681
    %v2686 = vmax.f32 %v2684, %v2685
    %v2687 = vrot.slane %v2686, 4
    %v2688 = vmax.f32 %v2686, %v2687
    %v2689 = vrot.slane %v2688, 2
    %v2690 = vmax.f32 %v2688, %v2689
    %v2691 = vrot.slane %v2690, 1
    %v2692 = vmax.f32 %v2690, %v2691
    %v2693 = vmax.f32 %v2636, %v2692
    %v2694 = vsub.f32 %v2636, %v2693
    %v2695 = vmul.f32 %v2694, 1.442695
    %v2696 = vpow.pop %v2695
    %v2698 = vlaneseq
    %v2699 = vshrl.u32 %v2698, 7
    %v2700 = vsub.s32 0, %v2699
    %v2701 = vrot.slane %v2693, %v2700
    %v2703 = vsub.f32 %v2611, %v2701
    %v2704 = vsub.f32 %v2612, %v2701
    %v2705 = vsub.f32 %v2613, %v2701
    %v2706 = vsub.f32 %v2614, %v2701
    %v2707 = vsub.f32 %v2615, %v2701
    %v2708 = vsub.f32 %v2616, %v2701
    %v2709 = vsub.f32 %v2617, %v2701
    %v2710 = vsub.f32 %v2618, %v2701
    %v2711 = vsub.f32 %v2619, %v2701
    %v2712 = vsub.f32 %v2620, %v2701
    %v2713 = vsub.f32 %v2621, %v2701
    %v2714 = vsub.f32 %v2622, %v2701
    %v2715 = vsub.f32 %v2623, %v2701
    %v2716 = vsub.f32 %v2624, %v2701
    %v2717 = vsub.f32 %v2625, %v2701
    %v2718 = vsub.f32 %v2626, %v2701
    %v2719 = vsub.f32 %v2627, %v2701
    %v2720 = vsub.f32 %v2628, %v2701
    %v2721 = vsub.f32 %v2629, %v2701
    %v2722 = vsub.f32 %v2630, %v2701
    %v2723 = vsub.f32 %v2631, %v2701
    %v2724 = vsub.f32 %v2632, %v2701
    %v2725 = vsub.f32 %v2633, %v2701
    %v2726 = vsub.f32 %v2634, %v2701
    %v2727 = vsub.f32 %v2635, %v2701
    %v2728 = vmul.f32 %v2703, 1.442695
    %v2729 = vpow.pop %v2728
    %v2730 = vmul.f32 %v2704, 1.442695
    %v2731 = vpow.pop %v2730
    %v2732 = vmul.f32 %v2705, 1.442695
    %v2733 = vpow.pop %v2732
    %v2734 = vmul.f32 %v2706, 1.442695
    %v2735 = vpow.pop %v2734
    %v2736 = vmul.f32 %v2707, 1.442695
    %v2737 = vpow.pop %v2736
    %v2738 = vmul.f32 %v2708, 1.442695
    %v2739 = vpow.pop %v2738
    %v2740 = vmul.f32 %v2709, 1.442695
    %v2741 = vpow.pop %v2740
    %v2742 = vmul.f32 %v2710, 1.442695
    %v2743 = vpow.pop %v2742
    %v2744 = vmul.f32 %v2711, 1.442695
    %v2745 = vpow.pop %v2744
    %v2746 = vmul.f32 %v2712, 1.442695
    %v2747 = vpow.pop %v2746
    %v2748 = vmul.f32 %v2713, 1.442695
    %v2749 = vpow.pop %v2748
    %v2750 = vmul.f32 %v2714, 1.442695
    %v2751 = vpow.pop %v2750
    %v2752 = vmul.f32 %v2715, 1.442695
    %v2753 = vpow.pop %v2752
    %v2754 = vmul.f32 %v2716, 1.442695
    %v2755 = vpow.pop %v2754
    %v2756 = vmul.f32 %v2717, 1.442695
    %v2757 = vpow.pop %v2756
    %v2758 = vmul.f32 %v2718, 1.442695
    %v2759 = vpow.pop %v2758
    %v2760 = vmul.f32 %v2719, 1.442695
    %v2761 = vpow.pop %v2760
    %v2762 = vmul.f32 %v2720, 1.442695
    %v2763 = vpow.pop %v2762
    %v2764 = vmul.f32 %v2721, 1.442695
    %v2765 = vpow.pop %v2764
    %v2766 = vmul.f32 %v2722, 1.442695
    %v2767 = vpow.pop %v2766
    %v2768 = vmul.f32 %v2723, 1.442695
    %v2769 = vpow.pop %v2768
    %v2770 = vmul.f32 %v2724, 1.442695
    %v2771 = vpow.pop %v2770
    %v2772 = vmul.f32 %v2725, 1.442695
    %v2773 = vpow.pop %v2772
    %v2774 = vmul.f32 %v2726, 1.442695
    %v2775 = vpow.pop %v2774
    %v2776 = vmul.f32 %v2727, 1.442695
    %v2777 = vpow.pop %v2776
    %v2778 = vld [vmem:[#allocation3] sm:$0x1]
    %v2779 = vmul.f32 %v2696, %v2778
    %v2780 = vsel %vm2637, %v2729, 0.0
    %v2781 = vsel %vm2637, %v2731, 0.0
    %v2782 = vadd.f32 %v2780, %v2781
    %v2783 = vsel %vm2637, %v2733, 0.0
    %v2784 = vadd.f32 %v2782, %v2783
    %v2785 = vsel %vm2637, %v2735, 0.0
    %v2786 = vadd.f32 %v2784, %v2785
    %v2787 = vsel %vm2637, %v2737, 0.0
    %v2788 = vadd.f32 %v2786, %v2787
    %v2789 = vsel %vm2637, %v2739, 0.0
    %v2790 = vadd.f32 %v2788, %v2789
    %v2791 = vsel %vm2637, %v2741, 0.0
    %v2792 = vadd.f32 %v2790, %v2791
    %v2793 = vsel %vm2637, %v2743, 0.0
    %v2794 = vadd.f32 %v2792, %v2793
    %v2795 = vsel %vm2637, %v2745, 0.0
    %v2796 = vadd.f32 %v2794, %v2795
    %v2797 = vsel %vm2637, %v2747, 0.0
    %v2798 = vadd.f32 %v2796, %v2797
    %v2799 = vsel %vm2637, %v2749, 0.0
    %v2800 = vadd.f32 %v2798, %v2799
    %v2801 = vsel %vm2637, %v2751, 0.0
    %v2802 = vadd.f32 %v2800, %v2801
    %v2803 = vsel %vm2637, %v2753, 0.0
    %v2804 = vadd.f32 %v2802, %v2803
    %v2805 = vsel %vm2637, %v2755, 0.0
    %v2806 = vadd.f32 %v2804, %v2805
    %v2807 = vsel %vm2637, %v2757, 0.0
    %v2808 = vadd.f32 %v2806, %v2807
    %v2809 = vsel %vm2637, %v2759, 0.0
    %v2810 = vadd.f32 %v2808, %v2809
    %v2811 = vsel %vm2637, %v2761, 0.0
    %v2812 = vadd.f32 %v2810, %v2811
    %v2813 = vsel %vm2637, %v2763, 0.0
    %v2814 = vadd.f32 %v2812, %v2813
    %v2815 = vsel %vm2637, %v2765, 0.0
    %v2816 = vadd.f32 %v2814, %v2815
    %v2817 = vsel %vm2637, %v2767, 0.0
    %v2818 = vadd.f32 %v2816, %v2817
    %v2819 = vsel %vm2637, %v2769, 0.0
    %v2820 = vadd.f32 %v2818, %v2819
    %v2821 = vsel %vm2637, %v2771, 0.0
    %v2822 = vadd.f32 %v2820, %v2821
    %v2823 = vsel %vm2637, %v2773, 0.0
    %v2824 = vadd.f32 %v2822, %v2823
    %v2825 = vsel %vm2637, %v2775, 0.0
    %v2826 = vadd.f32 %v2824, %v2825
    %v2827 = vsel %vm2637, %v2777, 0.0
    %v2828 = vadd.f32 %v2826, %v2827
    %v2829 = vrot.slane %v2828, 4
    %v2830 = vadd.f32 %v2828, %v2829
    %v2831 = vrot.slane %v2830, 2
    %v2832 = vadd.f32 %v2830, %v2831
    %v2833 = vrot.slane %v2832, 1
    %v2834 = vadd.f32 %v2832, %v2833
    %v2835 = vadd.f32 %v2779, %v2834
    %vm2836 = vcmask 0
    %2837 = vst.msk [vmem:[#allocation3] sm:$0x1] %vm2836, %v2835
    %2839 = vset.pattern.permute.xlu0 0
    %2840 = vperm.xlu0 %2839, %v2729
    %v2841 = vpop.permute.xlu0 %2840
    %2844 = vset.pattern.permute.xlu0 0
    %2845 = vperm.xlu0 %2844, %v2731
    %v2846 = vpop.permute.xlu0 %2845
    %2849 = vset.pattern.permute.xlu0 0
    %2850 = vperm.xlu0 %2849, %v2733
    %v2851 = vpop.permute.xlu0 %2850
    %2854 = vset.pattern.permute.xlu0 0
    %2855 = vperm.xlu0 %2854, %v2735
    %v2856 = vpop.permute.xlu0 %2855
    %2859 = vset.pattern.permute.xlu0 0
    %2860 = vperm.xlu0 %2859, %v2737
    %v2861 = vpop.permute.xlu0 %2860
    %2864 = vset.pattern.permute.xlu0 0
    %2865 = vperm.xlu0 %2864, %v2739
    %v2866 = vpop.permute.xlu0 %2865
    %2869 = vset.pattern.permute.xlu0 0
    %2870 = vperm.xlu0 %2869, %v2741
    %v2871 = vpop.permute.xlu0 %2870
    %2874 = vset.pattern.permute.xlu0 0
    %2875 = vperm.xlu0 %2874, %v2743
    %v2876 = vpop.permute.xlu0 %2875
    %2879 = vset.pattern.permute.xlu0 0
    %2880 = vperm.xlu0 %2879, %v2745
    %v2881 = vpop.permute.xlu0 %2880
    %2884 = vset.pattern.permute.xlu0 0
    %2885 = vperm.xlu0 %2884, %v2747
    %v2886 = vpop.permute.xlu0 %2885
    %2889 = vset.pattern.permute.xlu0 0
    %2890 = vperm.xlu0 %2889, %v2749
    %v2891 = vpop.permute.xlu0 %2890
    %2894 = vset.pattern.permute.xlu0 0
    %2895 = vperm.xlu0 %2894, %v2751
    %v2896 = vpop.permute.xlu0 %2895
    %2899 = vset.pattern.permute.xlu0 0
    %2900 = vperm.xlu0 %2899, %v2753
    %v2901 = vpop.permute.xlu0 %2900
    %2904 = vset.pattern.permute.xlu0 0
    %2905 = vperm.xlu0 %2904, %v2755
    %v2906 = vpop.permute.xlu0 %2905
    %2909 = vset.pattern.permute.xlu0 0
    %2910 = vperm.xlu0 %2909, %v2757
    %v2911 = vpop.permute.xlu0 %2910
    %2914 = vset.pattern.permute.xlu0 0
    %2915 = vperm.xlu0 %2914, %v2759
    %v2916 = vpop.permute.xlu0 %2915
    %2919 = vset.pattern.permute.xlu0 0
    %2920 = vperm.xlu0 %2919, %v2761
    %v2921 = vpop.permute.xlu0 %2920
    %2924 = vset.pattern.permute.xlu0 0
    %2925 = vperm.xlu0 %2924, %v2763
    %v2926 = vpop.permute.xlu0 %2925
    %2929 = vset.pattern.permute.xlu0 0
    %2930 = vperm.xlu0 %2929, %v2765
    %v2931 = vpop.permute.xlu0 %2930
    %2934 = vset.pattern.permute.xlu0 0
    %2935 = vperm.xlu0 %2934, %v2767
    %v2936 = vpop.permute.xlu0 %2935
    %2939 = vset.pattern.permute.xlu0 0
    %2940 = vperm.xlu0 %2939, %v2769
    %v2941 = vpop.permute.xlu0 %2940
    %2944 = vset.pattern.permute.xlu0 0
    %2945 = vperm.xlu0 %2944, %v2771
    %v2946 = vpop.permute.xlu0 %2945
    %2949 = vset.pattern.permute.xlu0 0
    %2950 = vperm.xlu0 %2949, %v2773
    %v2951 = vpop.permute.xlu0 %2950
    %2954 = vset.pattern.permute.xlu0 0
    %2955 = vperm.xlu0 %2954, %v2775
    %v2956 = vpop.permute.xlu0 %2955
    %2959 = vset.pattern.permute.xlu0 0
    %2960 = vperm.xlu0 %2959, %v2777
    %v2961 = vpop.permute.xlu0 %2960
    %v2963 = vmul.f32 %v2841, %v2508
    %v2964 = vmul.f32 %v2846, %v2509
    %v2965 = vmul.f32 %v2851, %v2510
    %v2966 = vmul.f32 %v2856, %v2511
    %v2967 = vmul.f32 %v2861, %v2512
    %v2968 = vmul.f32 %v2866, %v2513
    %v2969 = vmul.f32 %v2871, %v2514
    %v2970 = vmul.f32 %v2876, %v2515
    %v2971 = vmul.f32 %v2881, %v2516
    %v2972 = vmul.f32 %v2886, %v2517
    %v2973 = vmul.f32 %v2891, %v2518
    %v2974 = vmul.f32 %v2896, %v2519
    %v2975 = vmul.f32 %v2901, %v2520
    %v2976 = vmul.f32 %v2906, %v2521
    %v2977 = vmul.f32 %v2911, %v2522
    %v2978 = vmul.f32 %v2916, %v2523
    %v2979 = vmul.f32 %v2921, %v2524
    %v2980 = vmul.f32 %v2926, %v2525
    %v2981 = vmul.f32 %v2931, %v2526
    %v2982 = vmul.f32 %v2936, %v2527
    %v2983 = vmul.f32 %v2941, %v2528
    %v2984 = vmul.f32 %v2946, %v2529
    %v2985 = vmul.f32 %v2951, %v2530
    %v2986 = vmul.f32 %v2956, %v2531
    %v2987 = vmul.f32 %v2961, %v2532
    %v2988 = vsel %vm130, %v2963, 0.0
    %v2989 = vsel %vm130, %v2964, 0.0
    %v2990 = vadd.f32 %v2988, %v2989
    %v2991 = vsel %vm130, %v2965, 0.0
    %v2992 = vadd.f32 %v2990, %v2991
    %v2993 = vsel %vm130, %v2966, 0.0
    %v2994 = vadd.f32 %v2992, %v2993
    %v2995 = vsel %vm130, %v2967, 0.0
    %v2996 = vadd.f32 %v2994, %v2995
    %v2997 = vsel %vm130, %v2968, 0.0
    %v2998 = vadd.f32 %v2996, %v2997
    %v2999 = vsel %vm130, %v2969, 0.0
    %v3000 = vadd.f32 %v2998, %v2999
    %v3001 = vsel %vm130, %v2970, 0.0
    %v3002 = vadd.f32 %v3000, %v3001
    %v3003 = vsel %vm130, %v2971, 0.0
    %v3004 = vadd.f32 %v3002, %v3003
    %v3005 = vsel %vm130, %v2972, 0.0
    %v3006 = vadd.f32 %v3004, %v3005
    %v3007 = vsel %vm130, %v2973, 0.0
    %v3008 = vadd.f32 %v3006, %v3007
    %v3009 = vsel %vm130, %v2974, 0.0
    %v3010 = vadd.f32 %v3008, %v3009
    %v3011 = vsel %vm130, %v2975, 0.0
    %v3012 = vadd.f32 %v3010, %v3011
    %v3013 = vsel %vm130, %v2976, 0.0
    %v3014 = vadd.f32 %v3012, %v3013
    %v3015 = vsel %vm130, %v2977, 0.0
    %v3016 = vadd.f32 %v3014, %v3015
    %v3017 = vsel %vm130, %v2978, 0.0
    %v3018 = vadd.f32 %v3016, %v3017
    %v3019 = vsel %vm130, %v2979, 0.0
    %v3020 = vadd.f32 %v3018, %v3019
    %v3021 = vsel %vm130, %v2980, 0.0
    %v3022 = vadd.f32 %v3020, %v3021
    %v3023 = vsel %vm130, %v2981, 0.0
    %v3024 = vadd.f32 %v3022, %v3023
    %v3025 = vsel %vm130, %v2982, 0.0
    %v3026 = vadd.f32 %v3024, %v3025
    %v3027 = vsel %vm130, %v2983, 0.0
    %v3028 = vadd.f32 %v3026, %v3027
    %v3029 = vsel %vm130, %v2984, 0.0
    %v3030 = vadd.f32 %v3028, %v3029
    %v3031 = vsel %vm130, %v2985, 0.0
    %v3032 = vadd.f32 %v3030, %v3031
    %v3033 = vsel %vm130, %v2986, 0.0
    %v3034 = vadd.f32 %v3032, %v3033
    %v3035 = vsel %vm130, %v2987, 0.0
    %v3036 = vadd.f32 %v3034, %v3035
    %v3037 = vrot.slane %v3036, 4
    %v3038 = vadd.f32 %v3036, %v3037
    %v3039 = vrot.slane %v3038, 2
    %v3040 = vadd.f32 %v3038, %v3039
    %v3041 = vrot.slane %v3040, 1
    %v3042 = vadd.f32 %v3040, %v3041
    %v3043 = vld [vmem:[#allocation4] sm:$0x1]
    %3045 = vset.pattern.permute.xlu0 0
    %3046 = vperm.xlu0 %3045, %v2696
    %v3047 = vpop.permute.xlu0 %3046
    %v3049 = vlaneseq
    %v3050 = vshrl.u32 %v3049, 7
    %v3051 = vsub.s32 0, %v3050
    %v3052 = vrot.slane %v3047, %v3051
    %v3053 = vmul.f32 %v3052, %v3043
    %v3054 = vadd.f32 %v3053, %v3042
    %vm3055 = vcmask 516096
    %3056 = vst.msk [vmem:[#allocation4] sm:$0x1] %vm3055, %v3054
    %3057 = vst.msk [vmem:[#allocation2] sm:$0x1] %vm2836, %v2693
    // Predicated region
    $region86: #{tpu_custom_call.1} parent=1 // pred_check
      %p3058 = pneg %p81
    $region87: #{tpu_custom_call.1} parent=1 // pred_check_branch
      %3060 = sbr.rel (%p3058) target = $region89
    $region88: #{tpu_custom_call.1} parent=1 // pred_region
      %v3061 = vld [vmem:[#allocation4] sm:$0x1]
      %v3062 = vld [vmem:[#allocation3] sm:$0x1]
      %3064 = vset.pattern.permute.xlu0 0
      %3065 = vperm.xlu0 %3064, %v3062
      %v3066 = vpop.permute.xlu0 %3065
      %v3068 = vlaneseq
      %v3069 = vshrl.u32 %v3068, 7
      %v3070 = vsub.s32 0, %v3069
      %v3071 = vrot.slane %v3066, %v3070
      %v3072 = vrcp.pop %v3071
      %v3073 = vmul.f32 %v3061, %v3072
      %v3074 = vld [vmem:[#allocation7] sm:$0xff]
      %v3075 = vld [vmem:[#allocation7 + $0x8] sm:$0xff]
      %v3076 = vld [vmem:[#allocation7 + $0x10] sm:$0xff]
      %v3077 = vld [vmem:[#allocation7 + $0x18] sm:$0xff]
      %v3078 = vld [vmem:[#allocation7 + $0x20] sm:$0xff]
      %v3079 = vld [vmem:[#allocation7 + $0x28] sm:$0xff]
      %v3080 = vld [vmem:[#allocation7 + $0x30] sm:$0xff]
      %v3081 = vld [vmem:[#allocation7 + $0x38] sm:$0xff]
      %v3082 = vld [vmem:[%s13] sm:$0x1]
      %v3083 = vld [vmem:[%s15] sm:$0xff]
      %vm3084 = vcmask 64512
      %v3086 = vsel %vm3084, %v3082, 0
      %3088 = vmatprep.subr.mxu0 0.0
      %3089 = vmatpush1.msra.mxu0 0.0
      %3090 = vmatprep.subr.mxu0 0.0
      %3091 = vmatpush1.msra.mxu0 0.0
      %3092 = vmatprep.subr.mxu0 0.0
      %3093 = vmatpush1.msra.mxu0 0.0
      %3094 = vmatprep.subr.mxu0 0.0
      %3095 = vmatpush1.msra.mxu0 0.0
      %3096 = vmatprep.subr.mxu0 0.0
      %3097 = vmatpush1.msra.mxu0 0.0
      %3098 = vmatprep.subr.mxu0 0.0
      %3099 = vmatpush1.msra.mxu0 0.0
      %3100 = vmatprep.subr.mxu0 0.0
      %3101 = vmatpush1.msra.mxu0 0.0
      %3102 = vmatprep.subr.mxu0 0.0
      %3103 = vmatpush1.msra.mxu0 0.0
      %3104 = vmatprep.subr.mxu0 0.0
      %3105 = vmatpush1.msra.mxu0 0.0
      %3106 = vmatprep.subr.mxu0 0.0
      %3107 = vmatpush1.msra.mxu0 0.0
      %3108 = vmatprep.subr.mxu0 0.0
      %3109 = vmatpush1.msra.mxu0 0.0
      %3110 = vmatprep.subr.mxu0 0.0
      %3111 = vmatpush1.msra.mxu0 0.0
      %3112 = vmatprep.subr.mxu0 0.0
      %3113 = vmatpush1.msra.mxu0 0.0
      %3114 = vmatprep.subr.mxu0 0.0
      %3115 = vmatpush1.msra.mxu0 0.0
      %3116 = vmatprep.subr.mxu0 0.0
      %3117 = vmatpush1.msra.mxu0 0.0
      %3118 = vmatprep.subr.mxu0 0.0
      %3119 = vmatpush1.msra.mxu0 %v3083
      %3120 = vmatprep.subr.mxu0 0.0
      %3121 = vmatpush2.msra.mxu0 0.0
      %3122 = vmatprep.subr.mxu0 0.0
      %3123 = vmatpush2.msra.mxu0 0.0
      %3124 = vmatprep.subr.mxu0 0.0
      %3125 = vmatpush2.msra.mxu0 0.0
      %3126 = vmatprep.subr.mxu0 0.0
      %3127 = vmatpush2.msra.mxu0 0.0
      %3128 = vmatprep.subr.mxu0 0.0
      %3129 = vmatpush2.msra.mxu0 0.0
      %3130 = vmatprep.subr.mxu0 0.0
      %3131 = vmatpush2.msra.mxu0 0.0
      %3132 = vmatprep.subr.mxu0 0.0
      %3133 = vmatpush2.msra.mxu0 0.0
      %3134 = vmatprep.subr.mxu0 0.0
      %3135 = vmatpush2.msra.mxu0 0.0
      %3136 = vmatprep.subr.mxu0 0.0
      %3137 = vmatpush2.msra.mxu0 0.0
      %3138 = vmatprep.subr.mxu0 0.0
      %3139 = vmatpush2.msra.mxu0 0.0
      %3140 = vmatprep.subr.mxu0 0.0
      %3141 = vmatpush2.msra.mxu0 0.0
      %3142 = vmatprep.subr.mxu0 0.0
      %3143 = vmatpush2.msra.mxu0 0.0
      %3144 = vmatprep.subr.mxu0 0.0
      %3145 = vmatpush2.msra.mxu0 0.0
      %3146 = vmatprep.subr.mxu0 0.0
      %3147 = vmatpush2.msra.mxu0 0.0
      %3148 = vmatprep.subr.mxu0 0.0
      %3149 = vmatpush2.msra.mxu0 0.0
      %3150 = vmatprep.subr.mxu0 0.0
      %3151 = vmatpush2.msra.mxu0 0.0
      %3152 = vmatprep.mubr.f32.mxu0 0.0
      %3153 = vmatmul.mubr.f32.gmra.mxu0 %v3086
      %v3154 = vpop.f32.mrf.mxu0
      %v3155 = vadd.f32 0.0, %v3154
      %v3156 = vpop.f32.mrf.mxu0
      %3157 = vdwg.mxu0
      %v3159 = vsel %vm130, %v3073, 0
      %3161 = vmatprep.subr.mxu0 0.0
      %3162 = vmatpush1.msra.mxu0 0.0
      %3163 = vmatprep.subr.mxu0 0.0
      %3164 = vmatpush1.msra.mxu0 0.0
      %3165 = vmatprep.subr.mxu0 0.0
      %3166 = vmatpush1.msra.mxu0 0.0
      %3167 = vmatprep.subr.mxu0 0.0
      %3168 = vmatpush1.msra.mxu0 0.0
      %3169 = vmatprep.subr.mxu0 0.0
      %3170 = vmatpush1.msra.mxu0 0.0
      %3171 = vmatprep.subr.mxu0 0.0
      %3172 = vmatpush1.msra.mxu0 0.0
      %3173 = vmatprep.subr.mxu0 0.0
      %3174 = vmatpush1.msra.mxu0 0.0
      %3175 = vmatprep.subr.mxu0 0.0
      %3176 = vmatpush1.msra.mxu0 0.0
      %3177 = vmatprep.subr.mxu0 0.0
      %3178 = vmatpush1.msra.mxu0 %v3081
      %3179 = vmatprep.subr.mxu0 0.0
      %3180 = vmatpush1.msra.mxu0 %v3080
      %3181 = vmatprep.subr.mxu0 0.0
      %3182 = vmatpush1.msra.mxu0 %v3079
      %3183 = vmatprep.subr.mxu0 0.0
      %3184 = vmatpush1.msra.mxu0 %v3078
      %3185 = vmatprep.subr.mxu0 0.0
      %3186 = vmatpush1.msra.mxu0 %v3077
      %3187 = vmatprep.subr.mxu0 0.0
      %3188 = vmatpush1.msra.mxu0 %v3076
      %3189 = vmatprep.subr.mxu0 0.0
      %3190 = vmatpush1.msra.mxu0 %v3075
      %3191 = vmatprep.subr.mxu0 0.0
      %3192 = vmatpush1.msra.mxu0 %v3074
      %3193 = vmatprep.subr.mxu0 0.0
      %3194 = vmatpush2.msra.mxu0 0.0
      %3195 = vmatprep.subr.mxu0 0.0
      %3196 = vmatpush2.msra.mxu0 0.0
      %3197 = vmatprep.subr.mxu0 0.0
      %3198 = vmatpush2.msra.mxu0 0.0
      %3199 = vmatprep.subr.mxu0 0.0
      %3200 = vmatpush2.msra.mxu0 0.0
      %3201 = vmatprep.subr.mxu0 0.0
      %3202 = vmatpush2.msra.mxu0 0.0
      %3203 = vmatprep.subr.mxu0 0.0
      %3204 = vmatpush2.msra.mxu0 0.0
      %3205 = vmatprep.subr.mxu0 0.0
      %3206 = vmatpush2.msra.mxu0 0.0
      %3207 = vmatprep.subr.mxu0 0.0
      %3208 = vmatpush2.msra.mxu0 0.0
      %3209 = vmatprep.subr.mxu0 0.0
      %3210 = vmatpush2.msra.mxu0 0.0
      %3211 = vmatprep.subr.mxu0 0.0
      %3212 = vmatpush2.msra.mxu0 0.0
      %3213 = vmatprep.subr.mxu0 0.0
      %3214 = vmatpush2.msra.mxu0 0.0
      %3215 = vmatprep.subr.mxu0 0.0
      %3216 = vmatpush2.msra.mxu0 0.0
      %3217 = vmatprep.subr.mxu0 0.0
      %3218 = vmatpush2.msra.mxu0 0.0
      %3219 = vmatprep.subr.mxu0 0.0
      %3220 = vmatpush2.msra.mxu0 0.0
      %3221 = vmatprep.subr.mxu0 0.0
      %3222 = vmatpush2.msra.mxu0 0.0
      %3223 = vmatprep.subr.mxu0 0.0
      %3224 = vmatpush2.msra.mxu0 0.0
      %3225 = vmatprep.mubr.f32.mxu0 0.0
      %3226 = vmatmul.mubr.f32.gmra.mxu0 %v3159
      %v3227 = vpop.f32.mrf.mxu0
      %v3228 = vadd.f32 %v3155, %v3227
      %v3229 = vpop.f32.mrf.mxu0
      %3230 = vdwg.mxu0
      %v3231 = vld [vmem:[%s16] sm:$0x1]
      %v3232 = vadd.f32 %v3228, %v3231
      %vm3233 = vcmp.gt.f32.partialorder %v3232, 0.0
      %v3234 = vmul.f32 %v3232, 0.01
      %v3235 = vsel %vm3233, %v3232, %v3234
      %v3236 = vld [vmem:[%s17] sm:$0x1]
      %v3237 = vmul.f32 %v3235, %v3236
      %v3238 = vsel %vm3055, %v3237, 0.0
      %3239 = vadd.xlane.f32.xlu0 %v3238
      %v3240 = vpop.xlane.xlu0 %3239
      %v3241 = vld [vmem:[#allocation6] sm:$0x1]
      %v3242 = vadd.f32 %v3240, %v3241
      %3243 = vst.msk [vmem:[#allocation10] sm:$0x1] %vm2836, %v3242
    $region89: #{tpu_custom_call.1} parent=1 // pred_fallthru
      _
    // Predicated region
    $region90: #{tpu_custom_call.1} parent=1 // pred_check
      _
    $region91: #{tpu_custom_call.1} parent=1 // pred_check_branch
      %3245 = sbr.rel (0) target = $region93
    $region92: #{tpu_custom_call.1} parent=1 // pred_region
      %s3247 = ssub.s32 16, 16
      %3248 = vsyncadd [#allocation9], %s3247
      %s3250 = sshll.u32 [#allocation10], 4
      %s3251 = int_to_ptr.vmem [resolvable:$true] %s3250
      %3253 = dma.vmem_to_hbm [thread:$0]  %s3251, 16, %s19, [#allocation9]
    $region93: #{tpu_custom_call.1} parent=1 // pred_fallthru
      _
    // Predicated region
    $region94: #{tpu_custom_call.1} parent=1 // pred_check
      _
    $region95: #{tpu_custom_call.1} parent=1 // pred_check_branch
      %3255 = sbr.rel (0) target = $region97
    $region96: #{tpu_custom_call.1} parent=1 // pred_region
      %3256 = dma.done [#allocation9], 16
    $region97: #{tpu_custom_call.1} parent=1 // pred_fallthru
      _
    %3257 = vsyncpa [#allocation8], 1
    %3258 = vsyncpa [#allocation9], 1

</llo_original>
